<compile_context>
chip_gen: v7x
topology: tpu7x:2x2x1
jax: 0.10.0
libtpu: 0.0.40
codegen_flags: <defaults>
</compile_context>

<pallas_src>
import functools

import jax
import jax.numpy as jnp
from jax.experimental import pallas as pl
from jax.experimental.pallas import tpu as pltpu


def _round_up(a, b):
    return (a + b - 1) // b * b


# ----------------------------------------------------------------------------
# Pallas kernel 1: batched transposed conv matmul
#   for each of NB batch elements in the block:
#     out[i, Cout, M] = relu( W[Cout, K] @ patches[i, K, M] + b[Cout, 1] )
#   (lane dim = M = Ho*Wo, result already channel-major NCHW)
# ----------------------------------------------------------------------------
def _conv_t_kernel(p_ref, w_ref, b_ref, o_ref, *, nb):
    w = w_ref[...]                                    # [Cout, K] bf16
    bias = b_ref[...]                                 # [Cout, 1] f32
    for i in range(nb):                               # static unroll over NB
        y = jnp.dot(w, p_ref[i],                      # bf16 MXU, f32 accumulate
                    preferred_element_type=jnp.float32)      # [Cout, M]
        o_ref[i] = jnp.maximum(y + bias, 0.0).astype(o_ref.dtype)


def conv2d_t_pallas(x, wT, b, *, stride, kh, kw, nb):
    """x: [N, Cin, H, W] bf16 (N multiple of nb); wT: [Cout, Cin*kh*kw] bf16;
    b: [Cout, 1] f32.  Returns [N, Cout, Ho, Wo] bf16 (NCHW)."""
    N, C, H, W = x.shape
    cout, K = wT.shape
    patches, Ho, Wo = im2col_t(x, kh, kw, stride)     # [N, K, Ho*Wo] bf16
    M = Ho * Wo

    out = pl.pallas_call(
        functools.partial(_conv_t_kernel, nb=nb),
        out_shape=jax.ShapeDtypeStruct((N, cout, M), jnp.bfloat16),
        grid=(N // nb,),
        in_specs=[
            pl.BlockSpec((nb, K, M), lambda n: (n, 0, 0)),   # NB elems of patches
            pl.BlockSpec((cout, K), lambda n: (0, 0)),       # shared weight
            pl.BlockSpec((cout, 1), lambda n: (0, 0)),       # shared bias
        ],
        out_specs=pl.BlockSpec((nb, cout, M), lambda n: (n, 0, 0)),
        compiler_params=pltpu.CompilerParams(
            dimension_semantics=("parallel",),               # 2 TCs on v7x
            vmem_limit_bytes=32 * 1024 * 1024),
    )(patches, wT, b)
    return out.reshape(N, cout, Ho, Wo)


# ----------------------------------------------------------------------------
# Pallas kernel 2: fused fc1 + fc2 (hidden activation never leaves VMEM/vregs)
#   out = relu(h @ W1 + b1) @ W2 + b2
# ----------------------------------------------------------------------------
def _fc_fused_kernel(h_ref, w1_ref, b1_ref, w2_ref, b2_ref, o_ref):
    z1 = jnp.dot(h_ref[...], w1_ref[...],             # bf16 x bf16 -> f32
                 preferred_element_type=jnp.float32)
    z1 = jnp.maximum(z1 + b1_ref[...], 0.0)           # f32 epilogue
    z2 = jnp.dot(z1.astype(jnp.bfloat16), w2_ref[...],
                 preferred_element_type=jnp.float32)
    o_ref[...] = z2 + b2_ref[...]


def fc_fused_pallas(h, w1, b1, w2, b2):
    """h: [N, K1] bf16; w1: [K1, H1] bf16; b1: [1, H1] f32; w2: [H1, A_pad]
    bf16; b2: [1, A_pad] f32.  Returns [Mp, A_pad] f32 (rows >= N padding)."""
    N, K1 = h.shape
    H1 = w1.shape[1]
    A_pad = w2.shape[1]

    # Pad batch to >=8 sublanes; cap M tile at 128 so v7x's two TCs both get
    # grid steps for large batches.
    Mp = _round_up(max(N, 8), 8)
    TM = min(Mp, 128)
    Mp = _round_up(Mp, TM)
    if Mp != N:
        h = jnp.pad(h, ((0, Mp - N), (0, 0)))

    return pl.pallas_call(
        _fc_fused_kernel,
        out_shape=jax.ShapeDtypeStruct((Mp, A_pad), jnp.float32),
        grid=(Mp // TM,),
        in_specs=[
            pl.BlockSpec((TM, K1), lambda i: (i, 0)),
            pl.BlockSpec((K1, H1), lambda i: (0, 0)),
            pl.BlockSpec((1, H1), lambda i: (0, 0)),
            pl.BlockSpec((H1, A_pad), lambda i: (0, 0)),
            pl.BlockSpec((1, A_pad), lambda i: (0, 0)),
        ],
        out_specs=pl.BlockSpec((TM, A_pad), lambda i: (i, 0)),
        compiler_params=pltpu.CompilerParams(
            dimension_semantics=("parallel",),
            vmem_limit_bytes=32 * 1024 * 1024),
    )(h, w1, b1, w2, b2)


# ----------------------------------------------------------------------------
# im2col glue (pure indexing/reshape; no arithmetic), transposed layout:
#   x: [N, C, H, W] -> patches [N, C*kh*kw, Ho*Wo], feature order (C, kh, kw)
#   matching PyTorch's conv-weight flattening.  Dtype is preserved (bf16 in).
# ----------------------------------------------------------------------------
def im2col_t(x, kh, kw, stride):
    N, C, H, W = x.shape
    Ho = (H - kh) // stride + 1
    Wo = (W - kw) // stride + 1
    cols = []
    for i in range(kh):
        for j in range(kw):
            cols.append(x[:, :, i:i + stride * Ho:stride,
                            j:j + stride * Wo:stride])          # [N, C, Ho, Wo]
    p = jnp.stack(cols, axis=2)                                 # [N, C, kh*kw, Ho, Wo]
    return p.reshape(N, C * kh * kw, Ho * Wo), Ho, Wo


# ----------------------------------------------------------------------------
# Parameters (PyTorch layout) and kernel-ready prepared parameters
# ----------------------------------------------------------------------------
def init_dqn_params(key, action_space):
    k1, k2, k3, k4 = jax.random.split(key, 4)
    std = 0.05
    return {
        "conv1_w": jax.random.normal(k1, (16, 4, 8, 8), jnp.float32) * std,
        "conv1_b": jnp.zeros((16,), jnp.float32),
        "conv2_w": jax.random.normal(k2, (32, 16, 4, 4), jnp.float32) * std,
        "conv2_b": jnp.zeros((32,), jnp.float32),
        "fc1_w": jax.random.normal(k3, (256, 2592), jnp.float32) * std,  # [out, in]
        "fc1_b": jnp.zeros((256,), jnp.float32),
        "fc2_w": jax.random.normal(k4, (action_space, 256), jnp.float32) * std,
        "fc2_b": jnp.zeros((action_space,), jnp.float32),
    }


def make_prepared_params(params, action_space):
    """One-time layout prep: pre-reshape/transpose/pad weights, cast to bf16.
    The 1/255 input scale is folded into the conv1 weights (f32 divide, then
    bf16 cast), so the kernels never touch it."""
    a_pad = _round_up(max(action_space, 1), 128)
    fc2_wT = jnp.zeros((256, a_pad), jnp.bfloat16)
    fc2_wT = fc2_wT.at[:, :action_space].set(params["fc2_w"].T.astype(jnp.bfloat16))
    fc2_b = jnp.zeros((1, a_pad), jnp.float32)
    fc2_b = fc2_b.at[0, :action_space].set(params["fc2_b"])
    conv1_w_scaled = params["conv1_w"] / 255.0                   # fold /255
    return {
        "conv1_wT": conv1_w_scaled.reshape(16, 4 * 8 * 8).astype(jnp.bfloat16),
        "conv1_b": params["conv1_b"].reshape(16, 1).astype(jnp.float32),
        "conv2_wT": params["conv2_w"].reshape(32, 16 * 4 * 4).astype(jnp.bfloat16),
        "conv2_b": params["conv2_b"].reshape(32, 1).astype(jnp.float32),
        "fc1_wT": params["fc1_w"].T.astype(jnp.bfloat16),        # [2592, 256]
        "fc1_b": params["fc1_b"].reshape(1, 256).astype(jnp.float32),
        "fc2_wT": fc2_wT,                                        # [256, a_pad]
        "fc2_b": fc2_b,                                          # [1, a_pad]
    }


# ----------------------------------------------------------------------------
# DQN forward
# ----------------------------------------------------------------------------
@functools.partial(jax.jit, static_argnums=(2,))
def dqn_forward(prep, x, action_space):
    # x: [N, 4, 84, 84] NCHW f32.  /255 is folded into conv1 weights; the
    # activations flow through the conv path in bf16.
    N = x.shape[0]
    NB = min(8, N)                       # batch elements per conv grid step
    Np = _round_up(N, NB)
    xb = x.astype(jnp.bfloat16)
    if Np != N:
        xb = jnp.pad(xb, ((0, Np - N), (0, 0), (0, 0), (0, 0)))
    h = conv2d_t_pallas(xb, prep["conv1_wT"], prep["conv1_b"],
                        stride=4, kh=8, kw=8, nb=NB)             # [Np,16,20,20] bf16
    h = conv2d_t_pallas(h, prep["conv2_wT"], prep["conv2_b"],
                        stride=2, kh=4, kw=4, nb=NB)             # [Np,32,9,9] bf16
    h = h.reshape(Np, 32 * 9 * 9)                                # torch flatten order
    q = fc_fused_pallas(h, prep["fc1_wT"], prep["fc1_b"],
                        prep["fc2_wT"], prep["fc2_b"])           # [Mp, a_pad] f32
    return q[:N, :action_space]


# Pure-JAX f32 reference for validation (independent of the im2col path).
def dqn_reference(params, x):
    x = x / 255.0
    h = jax.lax.conv_general_dilated(x, params["conv1_w"], (4, 4), "VALID",
                                     dimension_numbers=("NCHW", "OIHW", "NCHW"))
    h = jax.nn.relu(h + params["conv1_b"][None, :, None, None])
    h = jax.lax.conv_general_dilated(h, params["conv2_w"], (2, 2), "VALID",
                                     dimension_numbers=("NCHW", "OIHW", "NCHW"))
    h = jax.nn.relu(h + params["conv2_b"][None, :, None, None])
    h = h.reshape(h.shape[0], -1)
    h = jax.nn.relu(h @ params["fc1_w"].T + params["fc1_b"])
    return h @ params["fc2_w"].T + params["fc2_b"]


if __name__ == "__main__":
    key = jax.random.PRNGKey(0)
    kp, kx = jax.random.split(key)

    action_space = 6
    params = init_dqn_params(kp, action_space)
    prep = make_prepared_params(params, action_space)

    # Input spatial size is fixed at 84x84 by Linear(2592, 256) = 32*9*9.
    batch = 2
    x = jax.random.uniform(kx, (batch, 4, 84, 84), jnp.float32,
                           minval=0.0, maxval=255.0)

    q = dqn_forward(prep, x, action_space)
    jax.block_until_ready(q)
    assert q.shape == (batch, action_space), q.shape

    q_ref = dqn_reference(params, x)
    err = float(jnp.max(jnp.abs(q - q_ref)))
    ref_scale = float(jnp.max(jnp.abs(q_ref))) + 1.0
    assert err <= 5e-2 * ref_scale, (err, ref_scale)  # bf16-MXU tolerance

    print("KERNEL_OK")
</pallas_src>

<mosaic_0001>
module attributes {stable_mosaic.version = 11 : i64} {
  func.func @_conv_t_kernel(%arg0: i32, %arg1: memref<2x256x400xbf16, #tpu.memory_space<vmem>>, %arg2: memref<16x256xbf16, #tpu.memory_space<vmem>>, %arg3: memref<16x1xf32, #tpu.memory_space<vmem>>, %arg4: memref<2x16x400xbf16, #tpu.memory_space<vmem>>) attributes {dimension_semantics = [#tpu.dimension_semantics<parallel>], iteration_bounds = array<i64: 1>, scalar_prefetch = 0 : i64, scratch_operands = 0 : i64, tpu.core_type = #tpu.core_type<tc>, window_params = [{transform_indices = @transform_0, window_bounds = array<i64: 2, 256, 400>}, {pipeline_mode = #tpu.pipeline_mode<synchronous>, transform_indices = @transform_1, window_bounds = array<i64: 16, 256>}, {pipeline_mode = #tpu.pipeline_mode<synchronous>, transform_indices = @transform_2, window_bounds = array<i64: 16, 1>}, {transform_indices = @transform_3, window_bounds = array<i64: 2, 16, 400>}]} {
    %c0 = arith.constant 0 : index
    %c0_0 = arith.constant 0 : index
    %0 = vector.load %arg2[%c0, %c0_0] : memref<16x256xbf16, #tpu.memory_space<vmem>>, vector<16x256xbf16>
    %c0_1 = arith.constant 0 : index
    %c0_2 = arith.constant 0 : index
    %1 = vector.load %arg3[%c0_1, %c0_2] : memref<16x1xf32, #tpu.memory_space<vmem>>, vector<16x1xf32>
    %c0_3 = arith.constant 0 : index
    %c0_4 = arith.constant 0 : index
    %c0_5 = arith.constant 0 : index
    %2 = vector.load %arg1[%c0_3, %c0_4, %c0_5] : memref<2x256x400xbf16, #tpu.memory_space<vmem>>, vector<1x256x400xbf16>
    %3 = vector.shape_cast %2 : vector<1x256x400xbf16> to vector<256x400xbf16>
    %cst = arith.constant dense<0.000000e+00> : vector<16x400xf32>
    %4 = tpu.matmul %0, %3, %cst {dimension_numbers = #tpu.dot_dimension_numbers<[1], [0], [0], [1], [0, 0, 1, 1], [], []>} : vector<16x256xbf16>, vector<256x400xbf16>, vector<16x400xf32> -> vector<16x400xf32>
    %5 = vector.broadcast %1 : vector<16x1xf32> to vector<16x400xf32>
    %6 = arith.addf %4, %5 : vector<16x400xf32>
    %cst_6 = arith.constant 0.000000e+00 : f32
    %7 = vector.broadcast %cst_6 : f32 to vector<16x400xf32>
    %8 = arith.maximumf %6, %7 : vector<16x400xf32>
    %9 = arith.truncf %8 : vector<16x400xf32> to vector<16x400xbf16>
    %c0_7 = arith.constant 0 : index
    %c0_8 = arith.constant 0 : index
    %c0_9 = arith.constant 0 : index
    %10 = vector.load %arg4[%c0_7, %c0_8, %c0_9] : memref<2x16x400xbf16, #tpu.memory_space<vmem>>, vector<1x16x400xbf16>
    %11 = vector.shape_cast %10 : vector<1x16x400xbf16> to vector<16x400xbf16>
    %12 = vector.shape_cast %9 : vector<16x400xbf16> to vector<1x16x400xbf16>
    tpu.vector_store %arg4[%c0_7, %c0_8, %c0_9], %12 {strides = array<i32>} : memref<2x16x400xbf16, #tpu.memory_space<vmem>>, vector<1x16x400xbf16>,
    %c1 = arith.constant 1 : index
    %c0_10 = arith.constant 0 : index
    %c0_11 = arith.constant 0 : index
    %13 = vector.load %arg1[%c1, %c0_10, %c0_11] : memref<2x256x400xbf16, #tpu.memory_space<vmem>>, vector<1x256x400xbf16>
    %14 = vector.shape_cast %13 : vector<1x256x400xbf16> to vector<256x400xbf16>
    %cst_12 = arith.constant dense<0.000000e+00> : vector<16x400xf32>
    %15 = tpu.matmul %0, %14, %cst_12 {dimension_numbers = #tpu.dot_dimension_numbers<[1], [0], [0], [1], [0, 0, 1, 1], [], []>} : vector<16x256xbf16>, vector<256x400xbf16>, vector<16x400xf32> -> vector<16x400xf32>
    %16 = vector.broadcast %1 : vector<16x1xf32> to vector<16x400xf32>
    %17 = arith.addf %15, %16 : vector<16x400xf32>
    %cst_13 = arith.constant 0.000000e+00 : f32
    %18 = vector.broadcast %cst_13 : f32 to vector<16x400xf32>
    %19 = arith.maximumf %17, %18 : vector<16x400xf32>
    %20 = arith.truncf %19 : vector<16x400xf32> to vector<16x400xbf16>
    %c1_14 = arith.constant 1 : index
    %c0_15 = arith.constant 0 : index
    %c0_16 = arith.constant 0 : index
    %21 = vector.load %arg4[%c1_14, %c0_15, %c0_16] : memref<2x16x400xbf16, #tpu.memory_space<vmem>>, vector<1x16x400xbf16>
    %22 = vector.shape_cast %21 : vector<1x16x400xbf16> to vector<16x400xbf16>
    %23 = vector.shape_cast %20 : vector<16x400xbf16> to vector<1x16x400xbf16>
    tpu.vector_store %arg4[%c1_14, %c0_15, %c0_16], %23 {strides = array<i32>} : memref<2x16x400xbf16, #tpu.memory_space<vmem>>, vector<1x16x400xbf16>,
    return
  }
  func.func @transform_0(%arg0: i32) -> (i32, i32, i32) {
    %c0_i32 = arith.constant 0 : i32
    %c0_i32_0 = arith.constant 0 : i32
    %c0_i32_1 = arith.constant 0 : i32
    return %arg0, %c0_i32, %c0_i32_0 : i32, i32, i32
  }
  func.func @transform_1(%arg0: i32) -> (i32, i32) {
    %c0_i32 = arith.constant 0 : i32
    %c0_i32_0 = arith.constant 0 : i32
    %c0_i32_1 = arith.constant 0 : i32
    return %c0_i32, %c0_i32_0 : i32, i32
  }
  func.func @transform_2(%arg0: i32) -> (i32, i32) {
    %c0_i32 = arith.constant 0 : i32
    %c0_i32_0 = arith.constant 0 : i32
    %c0_i32_1 = arith.constant 0 : i32
    return %c0_i32, %c0_i32_0 : i32, i32
  }
  func.func @transform_3(%arg0: i32) -> (i32, i32, i32) {
    %c0_i32 = arith.constant 0 : i32
    %c0_i32_0 = arith.constant 0 : i32
    %c0_i32_1 = arith.constant 0 : i32
    return %arg0, %c0_i32, %c0_i32_0 : i32, i32, i32
  }
}

module attributes {stable_mosaic.version = 11 : i64} {
  func.func @_conv_t_kernel(%arg0: i32, %arg1: memref<2x256x81xbf16, #tpu.memory_space<vmem>>, %arg2: memref<32x256xbf16, #tpu.memory_space<vmem>>, %arg3: memref<32x1xf32, #tpu.memory_space<vmem>>, %arg4: memref<2x32x81xbf16, #tpu.memory_space<vmem>>) attributes {dimension_semantics = [#tpu.dimension_semantics<parallel>], iteration_bounds = array<i64: 1>, scalar_prefetch = 0 : i64, scratch_operands = 0 : i64, tpu.core_type = #tpu.core_type<tc>, window_params = [{transform_indices = @transform_0, window_bounds = array<i64: 2, 256, 81>}, {pipeline_mode = #tpu.pipeline_mode<synchronous>, transform_indices = @transform_1, window_bounds = array<i64: 32, 256>}, {pipeline_mode = #tpu.pipeline_mode<synchronous>, transform_indices = @transform_2, window_bounds = array<i64: 32, 1>}, {transform_indices = @transform_3, window_bounds = array<i64: 2, 32, 81>}]} {
    %c0 = arith.constant 0 : index
    %c0_0 = arith.constant 0 : index
    %0 = vector.load %arg2[%c0, %c0_0] : memref<32x256xbf16, #tpu.memory_space<vmem>>, vector<32x256xbf16>
    %c0_1 = arith.constant 0 : index
    %c0_2 = arith.constant 0 : index
    %1 = vector.load %arg3[%c0_1, %c0_2] : memref<32x1xf32, #tpu.memory_space<vmem>>, vector<32x1xf32>
    %c0_3 = arith.constant 0 : index
    %c0_4 = arith.constant 0 : index
    %c0_5 = arith.constant 0 : index
    %2 = vector.load %arg1[%c0_3, %c0_4, %c0_5] : memref<2x256x81xbf16, #tpu.memory_space<vmem>>, vector<1x256x81xbf16>
    %3 = vector.shape_cast %2 : vector<1x256x81xbf16> to vector<256x81xbf16>
    %cst = arith.constant dense<0.000000e+00> : vector<32x81xf32>
    %4 = tpu.matmul %0, %3, %cst {dimension_numbers = #tpu.dot_dimension_numbers<[1], [0], [0], [1], [0, 0, 1, 1], [], []>} : vector<32x256xbf16>, vector<256x81xbf16>, vector<32x81xf32> -> vector<32x81xf32>
    %5 = vector.broadcast %1 : vector<32x1xf32> to vector<32x81xf32>
    %6 = arith.addf %4, %5 : vector<32x81xf32>
    %cst_6 = arith.constant 0.000000e+00 : f32
    %7 = vector.broadcast %cst_6 : f32 to vector<32x81xf32>
    %8 = arith.maximumf %6, %7 : vector<32x81xf32>
    %9 = arith.truncf %8 : vector<32x81xf32> to vector<32x81xbf16>
    %c0_7 = arith.constant 0 : index
    %c0_8 = arith.constant 0 : index
    %c0_9 = arith.constant 0 : index
    %10 = vector.load %arg4[%c0_7, %c0_8, %c0_9] : memref<2x32x81xbf16, #tpu.memory_space<vmem>>, vector<1x32x81xbf16>
    %11 = vector.shape_cast %10 : vector<1x32x81xbf16> to vector<32x81xbf16>
    %12 = vector.shape_cast %9 : vector<32x81xbf16> to vector<1x32x81xbf16>
    tpu.vector_store %arg4[%c0_7, %c0_8, %c0_9], %12 {strides = array<i32>} : memref<2x32x81xbf16, #tpu.memory_space<vmem>>, vector<1x32x81xbf16>,
    %c1 = arith.constant 1 : index
    %c0_10 = arith.constant 0 : index
    %c0_11 = arith.constant 0 : index
    %13 = vector.load %arg1[%c1, %c0_10, %c0_11] : memref<2x256x81xbf16, #tpu.memory_space<vmem>>, vector<1x256x81xbf16>
    %14 = vector.shape_cast %13 : vector<1x256x81xbf16> to vector<256x81xbf16>
    %cst_12 = arith.constant dense<0.000000e+00> : vector<32x81xf32>
    %15 = tpu.matmul %0, %14, %cst_12 {dimension_numbers = #tpu.dot_dimension_numbers<[1], [0], [0], [1], [0, 0, 1, 1], [], []>} : vector<32x256xbf16>, vector<256x81xbf16>, vector<32x81xf32> -> vector<32x81xf32>
    %16 = vector.broadcast %1 : vector<32x1xf32> to vector<32x81xf32>
    %17 = arith.addf %15, %16 : vector<32x81xf32>
    %cst_13 = arith.constant 0.000000e+00 : f32
    %18 = vector.broadcast %cst_13 : f32 to vector<32x81xf32>
    %19 = arith.maximumf %17, %18 : vector<32x81xf32>
    %20 = arith.truncf %19 : vector<32x81xf32> to vector<32x81xbf16>
    %c1_14 = arith.constant 1 : index
    %c0_15 = arith.constant 0 : index
    %c0_16 = arith.constant 0 : index
    %21 = vector.load %arg4[%c1_14, %c0_15, %c0_16] : memref<2x32x81xbf16, #tpu.memory_space<vmem>>, vector<1x32x81xbf16>
    %22 = vector.shape_cast %21 : vector<1x32x81xbf16> to vector<32x81xbf16>
    %23 = vector.shape_cast %20 : vector<32x81xbf16> to vector<1x32x81xbf16>
    tpu.vector_store %arg4[%c1_14, %c0_15, %c0_16], %23 {strides = array<i32>} : memref<2x32x81xbf16, #tpu.memory_space<vmem>>, vector<1x32x81xbf16>,
    return
  }
  func.func @transform_0(%arg0: i32) -> (i32, i32, i32) {
    %c0_i32 = arith.constant 0 : i32
    %c0_i32_0 = arith.constant 0 : i32
    %c0_i32_1 = arith.constant 0 : i32
    return %arg0, %c0_i32, %c0_i32_0 : i32, i32, i32
  }
  func.func @transform_1(%arg0: i32) -> (i32, i32) {
    %c0_i32 = arith.constant 0 : i32
    %c0_i32_0 = arith.constant 0 : i32
    %c0_i32_1 = arith.constant 0 : i32
    return %c0_i32, %c0_i32_0 : i32, i32
  }
  func.func @transform_2(%arg0: i32) -> (i32, i32) {
    %c0_i32 = arith.constant 0 : i32
    %c0_i32_0 = arith.constant 0 : i32
    %c0_i32_1 = arith.constant 0 : i32
    return %c0_i32, %c0_i32_0 : i32, i32
  }
  func.func @transform_3(%arg0: i32) -> (i32, i32, i32) {
    %c0_i32 = arith.constant 0 : i32
    %c0_i32_0 = arith.constant 0 : i32
    %c0_i32_1 = arith.constant 0 : i32
    return %arg0, %c0_i32, %c0_i32_0 : i32, i32, i32
  }
}

module attributes {stable_mosaic.version = 11 : i64} {
  func.func @_fc_fused_kernel(%arg0: i32, %arg1: memref<8x2592xbf16, #tpu.memory_space<vmem>>, %arg2: memref<2592x256xbf16, #tpu.memory_space<vmem>>, %arg3: memref<1x256xf32, #tpu.memory_space<vmem>>, %arg4: memref<256x128xbf16, #tpu.memory_space<vmem>>, %arg5: memref<1x128xf32, #tpu.memory_space<vmem>>, %arg6: memref<8x128xf32, #tpu.memory_space<vmem>>) attributes {dimension_semantics = [#tpu.dimension_semantics<parallel>], iteration_bounds = array<i64: 1>, scalar_prefetch = 0 : i64, scratch_operands = 0 : i64, tpu.core_type = #tpu.core_type<tc>, window_params = [{transform_indices = @transform_0, window_bounds = array<i64: 8, 2592>}, {pipeline_mode = #tpu.pipeline_mode<synchronous>, transform_indices = @transform_1, window_bounds = array<i64: 2592, 256>}, {pipeline_mode = #tpu.pipeline_mode<synchronous>, transform_indices = @transform_2, window_bounds = array<i64: 1, 256>}, {pipeline_mode = #tpu.pipeline_mode<synchronous>, transform_indices = @transform_3, window_bounds = array<i64: 256, 128>}, {pipeline_mode = #tpu.pipeline_mode<synchronous>, transform_indices = @transform_4, window_bounds = array<i64: 1, 128>}, {transform_indices = @transform_5, window_bounds = array<i64: 8, 128>}]} {
    %c0 = arith.constant 0 : index
    %c0_0 = arith.constant 0 : index
    %0 = vector.load %arg1[%c0, %c0_0] : memref<8x2592xbf16, #tpu.memory_space<vmem>>, vector<8x2592xbf16>
    %c0_1 = arith.constant 0 : index
    %c0_2 = arith.constant 0 : index
    %1 = vector.load %arg2[%c0_1, %c0_2] : memref<2592x256xbf16, #tpu.memory_space<vmem>>, vector<2592x256xbf16>
    %cst = arith.constant dense<0.000000e+00> : vector<8x256xf32>
    %2 = tpu.matmul %0, %1, %cst {dimension_numbers = #tpu.dot_dimension_numbers<[1], [0], [0], [1], [0, 0, 1, 1], [], []>} : vector<8x2592xbf16>, vector<2592x256xbf16>, vector<8x256xf32> -> vector<8x256xf32>
    %c0_3 = arith.constant 0 : index
    %c0_4 = arith.constant 0 : index
    %3 = vector.load %arg3[%c0_3, %c0_4] : memref<1x256xf32, #tpu.memory_space<vmem>>, vector<1x256xf32>
    %4 = vector.broadcast %3 : vector<1x256xf32> to vector<8x256xf32>
    %5 = arith.addf %2, %4 : vector<8x256xf32>
    %cst_5 = arith.constant 0.000000e+00 : f32
    %6 = vector.broadcast %cst_5 : f32 to vector<8x256xf32>
    %7 = arith.maximumf %5, %6 : vector<8x256xf32>
    %8 = arith.truncf %7 : vector<8x256xf32> to vector<8x256xbf16>
    %c0_6 = arith.constant 0 : index
    %c0_7 = arith.constant 0 : index
    %9 = vector.load %arg4[%c0_6, %c0_7] : memref<256x128xbf16, #tpu.memory_space<vmem>>, vector<256x128xbf16>
    %cst_8 = arith.constant dense<0.000000e+00> : vector<8x128xf32>
    %10 = tpu.matmul %8, %9, %cst_8 {dimension_numbers = #tpu.dot_dimension_numbers<[1], [0], [0], [1], [0, 0, 1, 1], [], []>} : vector<8x256xbf16>, vector<256x128xbf16>, vector<8x128xf32> -> vector<8x128xf32>
    %c0_9 = arith.constant 0 : index
    %c0_10 = arith.constant 0 : index
    %11 = vector.load %arg5[%c0_9, %c0_10] : memref<1x128xf32, #tpu.memory_space<vmem>>, vector<1x128xf32>
    %12 = vector.broadcast %11 : vector<1x128xf32> to vector<8x128xf32>
    %13 = arith.addf %10, %12 : vector<8x128xf32>
    %c0_11 = arith.constant 0 : index
    %c0_12 = arith.constant 0 : index
    %14 = vector.load %arg6[%c0_11, %c0_12] : memref<8x128xf32, #tpu.memory_space<vmem>>, vector<8x128xf32>
    tpu.vector_store %arg6[%c0_11, %c0_12], %13 {strides = array<i32>} : memref<8x128xf32, #tpu.memory_space<vmem>>, vector<8x128xf32>,
    return
  }
  func.func @transform_0(%arg0: i32) -> (i32, i32) {
    %c0_i32 = arith.constant 0 : i32
    %c0_i32_0 = arith.constant 0 : i32
    return %arg0, %c0_i32 : i32, i32
  }
  func.func @transform_1(%arg0: i32) -> (i32, i32) {
    %c0_i32 = arith.constant 0 : i32
    %c0_i32_0 = arith.constant 0 : i32
    %c0_i32_1 = arith.constant 0 : i32
    return %c0_i32, %c0_i32_0 : i32, i32
  }
  func.func @transform_2(%arg0: i32) -> (i32, i32) {
    %c0_i32 = arith.constant 0 : i32
    %c0_i32_0 = arith.constant 0 : i32
    %c0_i32_1 = arith.constant 0 : i32
    return %c0_i32, %c0_i32_0 : i32, i32
  }
  func.func @transform_3(%arg0: i32) -> (i32, i32) {
    %c0_i32 = arith.constant 0 : i32
    %c0_i32_0 = arith.constant 0 : i32
    %c0_i32_1 = arith.constant 0 : i32
    return %c0_i32, %c0_i32_0 : i32, i32
  }
  func.func @transform_4(%arg0: i32) -> (i32, i32) {
    %c0_i32 = arith.constant 0 : i32
    %c0_i32_0 = arith.constant 0 : i32
    %c0_i32_1 = arith.constant 0 : i32
    return %c0_i32, %c0_i32_0 : i32, i32
  }
  func.func @transform_5(%arg0: i32) -> (i32, i32) {
    %c0_i32 = arith.constant 0 : i32
    %c0_i32_0 = arith.constant 0 : i32
    return %arg0, %c0_i32 : i32, i32
  }
}

</mosaic_0001>

<llo_original>
// kernel: dqn_forward.3
$region0: #{dqn_forward.3}
  #allocation0 [shape = 'u32[]', space=smem, size = 0x4, offset = 0x4, fixed_abs, tag = 'smem constant byte address 0x4 - core index']
  #allocation1 [shape = 'u32[144,128]{1,0:T(1,128)}', space=vmem, size = 0x12000, scoped, tag = 'internal scratch']
  %s0 = inlined_call_operand.vmem [shape: bf16[2,256,400], index: 0, kind: input, shape index: {}]
  %s1 = inlined_call_operand.vmem [shape: bf16[16,256], index: 1, kind: input, shape index: {}]
  %s2 = inlined_call_operand.vmem [shape: f32[16,1], index: 2, kind: input, shape index: {}]
  %s3 = inlined_call_operand.vmem [shape: bf16[2,16,400], index: 3, kind: output, shape index: {}]
  %s4 = sld [smem:[#allocation0]]
  $region22: #{dqn_forward.3} parent=0
    _
  %s6 = ssub.s32 1, %s4
  %s7 = scalar_select 0, %s6, %s4
  // Predicated region
  $region2: #{dqn_forward.3} parent=0 // pred_check
    _
  $region3: #{dqn_forward.3} parent=0 // pred_check_branch
    %9 = sbr.rel (0) target = $region5
  $region4: #{dqn_forward.3} parent=0 // pred_region
    _
  $region5: #{dqn_forward.3} parent=0 // pred_fallthru
    _
  // Predicated region
  $region6: #{dqn_forward.3} parent=0 // pred_check
    _
  $region7: #{dqn_forward.3} parent=0 // pred_check_branch
    %11 = sbr.rel (0) target = $region9
  $region8: #{dqn_forward.3} parent=0 // pred_region
    _
  $region9: #{dqn_forward.3} parent=0 // pred_fallthru
    _
  // Predicated region
  $region10: #{dqn_forward.3} parent=0 // pred_check
    _
  $region11: #{dqn_forward.3} parent=0 // pred_check_branch
    %13 = sbr.rel (0) target = $region13
  $region12: #{dqn_forward.3} parent=0 // pred_region
    _
  $region13: #{dqn_forward.3} parent=0 // pred_fallthru
    _
  %v14 = vld [vmem:[%s1] sm:$0xff]
  %v15 = vld [vmem:[%s1 + $0x8] sm:$0xff]
  %v16 = vld [vmem:[%s2] sm:$0xff]
  %v17 = vld [vmem:[%s2 + $0x8] sm:$0xff]
  %v18 = vld [vmem:[%s0] sm:$0xff]
  %v19 = vld [vmem:[%s0 + $0x8] sm:$0xff]
  %v20 = vld [vmem:[%s0 + $0x10] sm:$0xff]
  %v21 = vld [vmem:[%s0 + $0x18] sm:$0xff]
  %v22 = vld [vmem:[%s0 + $0x20] sm:$0xff]
  %v23 = vld [vmem:[%s0 + $0x28] sm:$0xff]
  %v24 = vld [vmem:[%s0 + $0x30] sm:$0xff]
  %v25 = vld [vmem:[%s0 + $0x38] sm:$0xff]
  %v26 = vld [vmem:[%s0 + $0x40] sm:$0xff]
  %v27 = vld [vmem:[%s0 + $0x48] sm:$0xff]
  %v28 = vld [vmem:[%s0 + $0x50] sm:$0xff]
  %v29 = vld [vmem:[%s0 + $0x58] sm:$0xff]
  %v30 = vld [vmem:[%s0 + $0x60] sm:$0xff]
  %v31 = vld [vmem:[%s0 + $0x68] sm:$0xff]
  %v32 = vld [vmem:[%s0 + $0x70] sm:$0xff]
  %v33 = vld [vmem:[%s0 + $0x78] sm:$0xff]
  %v34 = vld [vmem:[%s0 + $0x80] sm:$0xff]
  %v35 = vld [vmem:[%s0 + $0x88] sm:$0xff]
  %v36 = vld [vmem:[%s0 + $0x90] sm:$0xff]
  %v37 = vld [vmem:[%s0 + $0x98] sm:$0xff]
  %v38 = vld [vmem:[%s0 + $0xa0] sm:$0xff]
  %v39 = vld [vmem:[%s0 + $0xa8] sm:$0xff]
  %v40 = vld [vmem:[%s0 + $0xb0] sm:$0xff]
  %v41 = vld [vmem:[%s0 + $0xb8] sm:$0xff]
  %v42 = vld [vmem:[%s0 + $0xc0] sm:$0xff]
  %v43 = vld [vmem:[%s0 + $0xc8] sm:$0xff]
  %v44 = vld [vmem:[%s0 + $0xd0] sm:$0xff]
  %v45 = vld [vmem:[%s0 + $0xd8] sm:$0xff]
  %v46 = vld [vmem:[%s0 + $0xe0] sm:$0xff]
  %v47 = vld [vmem:[%s0 + $0xe8] sm:$0xff]
  %v48 = vld [vmem:[%s0 + $0xf0] sm:$0xff]
  %v49 = vld [vmem:[%s0 + $0xf8] sm:$0xff]
  %v50 = vld [vmem:[%s0 + $0x100] sm:$0xff]
  %v51 = vld [vmem:[%s0 + $0x108] sm:$0xff]
  %v52 = vld [vmem:[%s0 + $0x110] sm:$0xff]
  %v53 = vld [vmem:[%s0 + $0x118] sm:$0xff]
  %v54 = vld [vmem:[%s0 + $0x120] sm:$0xff]
  %v55 = vld [vmem:[%s0 + $0x128] sm:$0xff]
  %v56 = vld [vmem:[%s0 + $0x130] sm:$0xff]
  %v57 = vld [vmem:[%s0 + $0x138] sm:$0xff]
  %v58 = vld [vmem:[%s0 + $0x140] sm:$0xff]
  %v59 = vld [vmem:[%s0 + $0x148] sm:$0xff]
  %v60 = vld [vmem:[%s0 + $0x150] sm:$0xff]
  %v61 = vld [vmem:[%s0 + $0x158] sm:$0xff]
  %v62 = vld [vmem:[%s0 + $0x160] sm:$0xff]
  %v63 = vld [vmem:[%s0 + $0x168] sm:$0xff]
  %v64 = vld [vmem:[%s0 + $0x170] sm:$0xff]
  %v65 = vld [vmem:[%s0 + $0x178] sm:$0xff]
  %v66 = vld [vmem:[%s0 + $0x180] sm:$0xff]
  %v67 = vld [vmem:[%s0 + $0x188] sm:$0xff]
  %v68 = vld [vmem:[%s0 + $0x190] sm:$0xff]
  %v69 = vld [vmem:[%s0 + $0x198] sm:$0xff]
  %v70 = vld [vmem:[%s0 + $0x1a0] sm:$0xff]
  %v71 = vld [vmem:[%s0 + $0x1a8] sm:$0xff]
  %v72 = vld [vmem:[%s0 + $0x1b0] sm:$0xff]
  %v73 = vld [vmem:[%s0 + $0x1b8] sm:$0xff]
  %v74 = vld [vmem:[%s0 + $0x1c0] sm:$0xff]
  %v75 = vld [vmem:[%s0 + $0x1c8] sm:$0xff]
  %v76 = vld [vmem:[%s0 + $0x1d0] sm:$0xff]
  %v77 = vld [vmem:[%s0 + $0x1d8] sm:$0xff]
  %v78 = vld [vmem:[%s0 + $0x1e0] sm:$0xff]
  %v79 = vld [vmem:[%s0 + $0x1e8] sm:$0xff]
  %v80 = vld [vmem:[%s0 + $0x1f0] sm:$0xff]
  %v81 = vld [vmem:[%s0 + $0x1f8] sm:$0xff]
  %83 = vset.pattern.permute.xlu0 0
  %84 = vperm.xlu0 %83, %v16
  %v85 = vpop.permute.xlu0 %84
  %88 = vset.pattern.permute.xlu0 0
  %89 = vperm.xlu0 %88, %v17
  %v90 = vpop.permute.xlu0 %89
  %v94 = vunpack.c.l.b16 %v14
  %v95 = vunpack.c.h.b16 %v14
  %v96 = vunpack.c.l.b16 %v15
  %v97 = vunpack.c.h.b16 %v15
  %v98 = vpack.c.b16 %v96, %v94
  %v99 = vpack.c.b16 %v97, %v95
  %v166 = vunpack.c.l.b16 %v18
  %v167 = vunpack.c.h.b16 %v18
  %v168 = vunpack.c.l.b16 %v19
  %v169 = vunpack.c.h.b16 %v19
  %v170 = vunpack.c.l.b16 %v20
  %v171 = vunpack.c.h.b16 %v20
  %v172 = vunpack.c.l.b16 %v21
  %v173 = vunpack.c.h.b16 %v21
  %v174 = vunpack.c.l.b16 %v22
  %v175 = vunpack.c.h.b16 %v22
  %v176 = vunpack.c.l.b16 %v23
  %v177 = vunpack.c.h.b16 %v23
  %v178 = vunpack.c.l.b16 %v24
  %v179 = vunpack.c.h.b16 %v24
  %v180 = vunpack.c.l.b16 %v25
  %v181 = vunpack.c.h.b16 %v25
  %v182 = vunpack.c.l.b16 %v26
  %v183 = vunpack.c.h.b16 %v26
  %v184 = vunpack.c.l.b16 %v27
  %v185 = vunpack.c.h.b16 %v27
  %v186 = vunpack.c.l.b16 %v28
  %v187 = vunpack.c.h.b16 %v28
  %v188 = vunpack.c.l.b16 %v29
  %v189 = vunpack.c.h.b16 %v29
  %v190 = vunpack.c.l.b16 %v30
  %v191 = vunpack.c.h.b16 %v30
  %v192 = vunpack.c.l.b16 %v31
  %v193 = vunpack.c.h.b16 %v31
  %v194 = vunpack.c.l.b16 %v32
  %v195 = vunpack.c.h.b16 %v32
  %v196 = vunpack.c.l.b16 %v33
  %v197 = vunpack.c.h.b16 %v33
  %v198 = vunpack.c.l.b16 %v34
  %v199 = vunpack.c.h.b16 %v34
  %v200 = vunpack.c.l.b16 %v35
  %v201 = vunpack.c.h.b16 %v35
  %v202 = vunpack.c.l.b16 %v36
  %v203 = vunpack.c.h.b16 %v36
  %v204 = vunpack.c.l.b16 %v37
  %v205 = vunpack.c.h.b16 %v37
  %v206 = vunpack.c.l.b16 %v38
  %v207 = vunpack.c.h.b16 %v38
  %v208 = vunpack.c.l.b16 %v39
  %v209 = vunpack.c.h.b16 %v39
  %v210 = vunpack.c.l.b16 %v40
  %v211 = vunpack.c.h.b16 %v40
  %v212 = vunpack.c.l.b16 %v41
  %v213 = vunpack.c.h.b16 %v41
  %v214 = vunpack.c.l.b16 %v42
  %v215 = vunpack.c.h.b16 %v42
  %v216 = vunpack.c.l.b16 %v43
  %v217 = vunpack.c.h.b16 %v43
  %v218 = vunpack.c.l.b16 %v44
  %v219 = vunpack.c.h.b16 %v44
  %v220 = vunpack.c.l.b16 %v45
  %v221 = vunpack.c.h.b16 %v45
  %v222 = vunpack.c.l.b16 %v46
  %v223 = vunpack.c.h.b16 %v46
  %v224 = vunpack.c.l.b16 %v47
  %v225 = vunpack.c.h.b16 %v47
  %v226 = vunpack.c.l.b16 %v48
  %v227 = vunpack.c.h.b16 %v48
  %v228 = vunpack.c.l.b16 %v49
  %v229 = vunpack.c.h.b16 %v49
  %v230 = vunpack.c.l.b16 %v50
  %v231 = vunpack.c.h.b16 %v50
  %v232 = vunpack.c.l.b16 %v51
  %v233 = vunpack.c.h.b16 %v51
  %v234 = vunpack.c.l.b16 %v52
  %v235 = vunpack.c.h.b16 %v52
  %v236 = vunpack.c.l.b16 %v53
  %v237 = vunpack.c.h.b16 %v53
  %v238 = vunpack.c.l.b16 %v54
  %v239 = vunpack.c.h.b16 %v54
  %v240 = vunpack.c.l.b16 %v55
  %v241 = vunpack.c.h.b16 %v55
  %v242 = vunpack.c.l.b16 %v56
  %v243 = vunpack.c.h.b16 %v56
  %v244 = vunpack.c.l.b16 %v57
  %v245 = vunpack.c.h.b16 %v57
  %v246 = vunpack.c.l.b16 %v58
  %v247 = vunpack.c.h.b16 %v58
  %v248 = vunpack.c.l.b16 %v59
  %v249 = vunpack.c.h.b16 %v59
  %v250 = vunpack.c.l.b16 %v60
  %v251 = vunpack.c.h.b16 %v60
  %v252 = vunpack.c.l.b16 %v61
  %v253 = vunpack.c.h.b16 %v61
  %v254 = vunpack.c.l.b16 %v62
  %v255 = vunpack.c.h.b16 %v62
  %v256 = vunpack.c.l.b16 %v63
  %v257 = vunpack.c.h.b16 %v63
  %v258 = vunpack.c.l.b16 %v64
  %v259 = vunpack.c.h.b16 %v64
  %v260 = vunpack.c.l.b16 %v65
  %v261 = vunpack.c.h.b16 %v65
  %v262 = vunpack.c.l.b16 %v66
  %v263 = vunpack.c.h.b16 %v66
  %v264 = vunpack.c.l.b16 %v67
  %v265 = vunpack.c.h.b16 %v67
  %v266 = vunpack.c.l.b16 %v68
  %v267 = vunpack.c.h.b16 %v68
  %v268 = vunpack.c.l.b16 %v69
  %v269 = vunpack.c.h.b16 %v69
  %v270 = vunpack.c.l.b16 %v70
  %v271 = vunpack.c.h.b16 %v70
  %v272 = vunpack.c.l.b16 %v71
  %v273 = vunpack.c.h.b16 %v71
  %v274 = vunpack.c.l.b16 %v72
  %v275 = vunpack.c.h.b16 %v72
  %v276 = vunpack.c.l.b16 %v73
  %v277 = vunpack.c.h.b16 %v73
  %v278 = vunpack.c.l.b16 %v74
  %v279 = vunpack.c.h.b16 %v74
  %v280 = vunpack.c.l.b16 %v75
  %v281 = vunpack.c.h.b16 %v75
  %v282 = vunpack.c.l.b16 %v76
  %v283 = vunpack.c.h.b16 %v76
  %v284 = vunpack.c.l.b16 %v77
  %v285 = vunpack.c.h.b16 %v77
  %v286 = vunpack.c.l.b16 %v78
  %v287 = vunpack.c.h.b16 %v78
  %v288 = vunpack.c.l.b16 %v79
  %v289 = vunpack.c.h.b16 %v79
  %v290 = vunpack.c.l.b16 %v80
  %v291 = vunpack.c.h.b16 %v80
  %v292 = vunpack.c.l.b16 %v81
  %v293 = vunpack.c.h.b16 %v81
  %v294 = vpack.c.b16 %v170, %v166
  %v295 = vpack.c.b16 %v171, %v167
  %v296 = vpack.c.b16 %v172, %v168
  %v297 = vpack.c.b16 %v173, %v169
  %v298 = vpack.c.b16 %v178, %v174
  %v299 = vpack.c.b16 %v179, %v175
  %v300 = vpack.c.b16 %v180, %v176
  %v301 = vpack.c.b16 %v181, %v177
  %v302 = vpack.c.b16 %v186, %v182
  %v303 = vpack.c.b16 %v187, %v183
  %v304 = vpack.c.b16 %v188, %v184
  %v305 = vpack.c.b16 %v189, %v185
  %v306 = vpack.c.b16 %v194, %v190
  %v307 = vpack.c.b16 %v195, %v191
  %v308 = vpack.c.b16 %v196, %v192
  %v309 = vpack.c.b16 %v197, %v193
  %v310 = vpack.c.b16 %v202, %v198
  %v311 = vpack.c.b16 %v203, %v199
  %v312 = vpack.c.b16 %v204, %v200
  %v313 = vpack.c.b16 %v205, %v201
  %v314 = vpack.c.b16 %v210, %v206
  %v315 = vpack.c.b16 %v211, %v207
  %v316 = vpack.c.b16 %v212, %v208
  %v317 = vpack.c.b16 %v213, %v209
  %v318 = vpack.c.b16 %v218, %v214
  %v319 = vpack.c.b16 %v219, %v215
  %v320 = vpack.c.b16 %v220, %v216
  %v321 = vpack.c.b16 %v221, %v217
  %v322 = vpack.c.b16 %v226, %v222
  %v323 = vpack.c.b16 %v227, %v223
  %v324 = vpack.c.b16 %v228, %v224
  %v325 = vpack.c.b16 %v229, %v225
  %v326 = vpack.c.b16 %v234, %v230
  %v327 = vpack.c.b16 %v235, %v231
  %v328 = vpack.c.b16 %v236, %v232
  %v329 = vpack.c.b16 %v237, %v233
  %v330 = vpack.c.b16 %v242, %v238
  %v331 = vpack.c.b16 %v243, %v239
  %v332 = vpack.c.b16 %v244, %v240
  %v333 = vpack.c.b16 %v245, %v241
  %v334 = vpack.c.b16 %v250, %v246
  %v335 = vpack.c.b16 %v251, %v247
  %v336 = vpack.c.b16 %v252, %v248
  %v337 = vpack.c.b16 %v253, %v249
  %v338 = vpack.c.b16 %v258, %v254
  %v339 = vpack.c.b16 %v259, %v255
  %v340 = vpack.c.b16 %v260, %v256
  %v341 = vpack.c.b16 %v261, %v257
  %v342 = vpack.c.b16 %v266, %v262
  %v343 = vpack.c.b16 %v267, %v263
  %v344 = vpack.c.b16 %v268, %v264
  %v345 = vpack.c.b16 %v269, %v265
  %v346 = vpack.c.b16 %v274, %v270
  %v347 = vpack.c.b16 %v275, %v271
  %v348 = vpack.c.b16 %v276, %v272
  %v349 = vpack.c.b16 %v277, %v273
  %v350 = vpack.c.b16 %v282, %v278
  %v351 = vpack.c.b16 %v283, %v279
  %v352 = vpack.c.b16 %v284, %v280
  %v353 = vpack.c.b16 %v285, %v281
  %v354 = vpack.c.b16 %v290, %v286
  %v355 = vpack.c.b16 %v291, %v287
  %v356 = vpack.c.b16 %v292, %v288
  %v357 = vpack.c.b16 %v293, %v289
  %422 = vmatprep.subr.bf16.mxu0 %v295
  %423 = vmatpush1.bf16.msra.mxu0 %v294
  %424 = vmatprep.subr.bf16.mxu0 %v299
  %425 = vmatpush1.bf16.msra.mxu0 %v298
  %426 = vmatprep.subr.bf16.mxu0 %v303
  %427 = vmatpush1.bf16.msra.mxu0 %v302
  %428 = vmatprep.subr.bf16.mxu0 %v307
  %429 = vmatpush1.bf16.msra.mxu0 %v306
  %430 = vmatprep.subr.bf16.mxu0 %v311
  %431 = vmatpush1.bf16.msra.mxu0 %v310
  %432 = vmatprep.subr.bf16.mxu0 %v315
  %433 = vmatpush1.bf16.msra.mxu0 %v314
  %434 = vmatprep.subr.bf16.mxu0 %v319
  %435 = vmatpush1.bf16.msra.mxu0 %v318
  %436 = vmatprep.subr.bf16.mxu0 %v323
  %437 = vmatpush1.bf16.msra.mxu0 %v322
  %438 = vmatprep.subr.bf16.mxu0 %v327
  %439 = vmatpush1.bf16.msra.mxu0 %v326
  %440 = vmatprep.subr.bf16.mxu0 %v331
  %441 = vmatpush1.bf16.msra.mxu0 %v330
  %442 = vmatprep.subr.bf16.mxu0 %v335
  %443 = vmatpush1.bf16.msra.mxu0 %v334
  %444 = vmatprep.subr.bf16.mxu0 %v339
  %445 = vmatpush1.bf16.msra.mxu0 %v338
  %446 = vmatprep.subr.bf16.mxu0 %v343
  %447 = vmatpush1.bf16.msra.mxu0 %v342
  %448 = vmatprep.subr.bf16.mxu0 %v347
  %449 = vmatpush1.bf16.msra.mxu0 %v346
  %450 = vmatprep.subr.bf16.mxu0 %v351
  %451 = vmatpush1.bf16.msra.mxu0 %v350
  %452 = vmatprep.subr.bf16.mxu0 %v355
  %453 = vmatpush1.bf16.msra.mxu0 %v354
  %454 = vmatprep.mubr.bf16.mxu0 %v99
  %455 = vmatmul.mubr.bf16.gmra.mrb[0].mxu0 %v98
  %v456 = vpop.f32.mrb[0].mxu0
  %v457 = vadd.f32 %v85, %v456
  %v458 = vpop.f32.mrb[0].mxu0
  %v459 = vadd.f32 %v85, %v458
  %v460 = vpop.f32.mrb[0].mxu0
  %v461 = vadd.f32 %v90, %v460
  %v462 = vpop.f32.mrb[0].mxu0
  %v463 = vadd.f32 %v90, %v462
  %464 = vdwg.mxu0
  %465 = vmatprep.subr.bf16.mxu0 %v297
  %466 = vmatpush1.bf16.msra.mxu0 %v296
  %467 = vmatprep.subr.bf16.mxu0 %v301
  %468 = vmatpush1.bf16.msra.mxu0 %v300
  %469 = vmatprep.subr.bf16.mxu0 %v305
  %470 = vmatpush1.bf16.msra.mxu0 %v304
  %471 = vmatprep.subr.bf16.mxu0 %v309
  %472 = vmatpush1.bf16.msra.mxu0 %v308
  %473 = vmatprep.subr.bf16.mxu0 %v313
  %474 = vmatpush1.bf16.msra.mxu0 %v312
  %475 = vmatprep.subr.bf16.mxu0 %v317
  %476 = vmatpush1.bf16.msra.mxu0 %v316
  %477 = vmatprep.subr.bf16.mxu0 %v321
  %478 = vmatpush1.bf16.msra.mxu0 %v320
  %479 = vmatprep.subr.bf16.mxu0 %v325
  %480 = vmatpush1.bf16.msra.mxu0 %v324
  %481 = vmatprep.subr.bf16.mxu0 %v329
  %482 = vmatpush1.bf16.msra.mxu0 %v328
  %483 = vmatprep.subr.bf16.mxu0 %v333
  %484 = vmatpush1.bf16.msra.mxu0 %v332
  %485 = vmatprep.subr.bf16.mxu0 %v337
  %486 = vmatpush1.bf16.msra.mxu0 %v336
  %487 = vmatprep.subr.bf16.mxu0 %v341
  %488 = vmatpush1.bf16.msra.mxu0 %v340
  %489 = vmatprep.subr.bf16.mxu0 %v345
  %490 = vmatpush1.bf16.msra.mxu0 %v344
  %491 = vmatprep.subr.bf16.mxu0 %v349
  %492 = vmatpush1.bf16.msra.mxu0 %v348
  %493 = vmatprep.subr.bf16.mxu0 %v353
  %494 = vmatpush1.bf16.msra.mxu0 %v352
  %495 = vmatprep.subr.bf16.mxu0 %v357
  %496 = vmatpush1.bf16.msra.mxu0 %v356
  %497 = vmatprep.mubr.bf16.mxu0 %v99
  %498 = vmatmul.mubr.bf16.gmra.mrb[0].mxu0 %v98
  %v499 = vpop.f32.mrb[0].mxu0
  %v500 = vadd.f32 %v85, %v499
  %v501 = vpop.f32.mrb[0].mxu0
  %v502 = vadd.f32 %v85, %v501
  %v503 = vpop.f32.mrb[0].mxu0
  %v504 = vadd.f32 %v90, %v503
  %v505 = vpop.f32.mrb[0].mxu0
  %v506 = vadd.f32 %v90, %v505
  %507 = vdwg.mxu0
  %v508 = vmax.f32 %v457, 0.0
  %v509 = vmax.f32 %v459, 0.0
  %v510 = vmax.f32 %v500, 0.0
  %v511 = vmax.f32 %v502, 0.0
  %v512 = vmax.f32 %v461, 0.0
  %v513 = vmax.f32 %v463, 0.0
  %v514 = vmax.f32 %v504, 0.0
  %v515 = vmax.f32 %v506, 0.0
  %v516 = vpack.c.bf16 %v512, %v508
  %v517 = vpack.c.bf16 %v513, %v509
  %v518 = vpack.c.bf16 %v514, %v510
  %v519 = vpack.c.bf16 %v515, %v511
  %v524 = vunpack.c.l.b16 %v516
  %v525 = vunpack.c.l.b16 %v517
  %v526 = vunpack.c.l.b16 %v518
  %v527 = vunpack.c.l.b16 %v519
  %v528 = vunpack.c.h.b16 %v516
  %v529 = vunpack.c.h.b16 %v517
  %v530 = vunpack.c.h.b16 %v518
  %v531 = vunpack.c.h.b16 %v519
  %v532 = vpack.c.b16 %v525, %v524
  %v533 = vpack.c.b16 %v527, %v526
  %v534 = vpack.c.b16 %v529, %v528
  %v535 = vpack.c.b16 %v531, %v530
  %540 = vst [vmem:[%s3] sm:$0xff] %v532
  %vm541 = vcmask 1043456
  %vm542 = vcmask 130052
  %vm543 = vmor %vm542, %vm541
  %544 = vst.msk [vmem:[%s3 + $0x8] sm:$0xff] %vm543, %v533
  %545 = vst [vmem:[%s3 + $0x10] sm:$0xff] %v534
  %546 = vst.msk [vmem:[%s3 + $0x18] sm:$0xff] %vm543, %v535
  %s547 = scalar_lea.vmem %s0, 512
  %v548 = vld [vmem:[%s547] sm:$0xff]
  %v549 = vld [vmem:[%s547 + $0x8] sm:$0xff]
  %v550 = vld [vmem:[%s547 + $0x10] sm:$0xff]
  %v551 = vld [vmem:[%s547 + $0x18] sm:$0xff]
  %v552 = vld [vmem:[%s547 + $0x20] sm:$0xff]
  %v553 = vld [vmem:[%s547 + $0x28] sm:$0xff]
  %v554 = vld [vmem:[%s547 + $0x30] sm:$0xff]
  %v555 = vld [vmem:[%s547 + $0x38] sm:$0xff]
  %v556 = vld [vmem:[%s547 + $0x40] sm:$0xff]
  %v557 = vld [vmem:[%s547 + $0x48] sm:$0xff]
  %v558 = vld [vmem:[%s547 + $0x50] sm:$0xff]
  %v559 = vld [vmem:[%s547 + $0x58] sm:$0xff]
  %v560 = vld [vmem:[%s547 + $0x60] sm:$0xff]
  %v561 = vld [vmem:[%s547 + $0x68] sm:$0xff]
  %v562 = vld [vmem:[%s547 + $0x70] sm:$0xff]
  %v563 = vld [vmem:[%s547 + $0x78] sm:$0xff]
  %v564 = vld [vmem:[%s547 + $0x80] sm:$0xff]
  %v565 = vld [vmem:[%s547 + $0x88] sm:$0xff]
  %v566 = vld [vmem:[%s547 + $0x90] sm:$0xff]
  %v567 = vld [vmem:[%s547 + $0x98] sm:$0xff]
  %v568 = vld [vmem:[%s547 + $0xa0] sm:$0xff]
  %v569 = vld [vmem:[%s547 + $0xa8] sm:$0xff]
  %v570 = vld [vmem:[%s547 + $0xb0] sm:$0xff]
  %v571 = vld [vmem:[%s547 + $0xb8] sm:$0xff]
  %v572 = vld [vmem:[%s547 + $0xc0] sm:$0xff]
  %v573 = vld [vmem:[%s547 + $0xc8] sm:$0xff]
  %v574 = vld [vmem:[%s547 + $0xd0] sm:$0xff]
  %v575 = vld [vmem:[%s547 + $0xd8] sm:$0xff]
  %v576 = vld [vmem:[%s547 + $0xe0] sm:$0xff]
  %v577 = vld [vmem:[%s547 + $0xe8] sm:$0xff]
  %v578 = vld [vmem:[%s547 + $0xf0] sm:$0xff]
  %v579 = vld [vmem:[%s547 + $0xf8] sm:$0xff]
  %v580 = vld [vmem:[%s547 + $0x100] sm:$0xff]
  %v581 = vld [vmem:[%s547 + $0x108] sm:$0xff]
  %v582 = vld [vmem:[%s547 + $0x110] sm:$0xff]
  %v583 = vld [vmem:[%s547 + $0x118] sm:$0xff]
  %v584 = vld [vmem:[%s547 + $0x120] sm:$0xff]
  %v585 = vld [vmem:[%s547 + $0x128] sm:$0xff]
  %v586 = vld [vmem:[%s547 + $0x130] sm:$0xff]
  %v587 = vld [vmem:[%s547 + $0x138] sm:$0xff]
  %v588 = vld [vmem:[%s547 + $0x140] sm:$0xff]
  %v589 = vld [vmem:[%s547 + $0x148] sm:$0xff]
  %v590 = vld [vmem:[%s547 + $0x150] sm:$0xff]
  %v591 = vld [vmem:[%s547 + $0x158] sm:$0xff]
  %v592 = vld [vmem:[%s547 + $0x160] sm:$0xff]
  %v593 = vld [vmem:[%s547 + $0x168] sm:$0xff]
  %v594 = vld [vmem:[%s547 + $0x170] sm:$0xff]
  %v595 = vld [vmem:[%s547 + $0x178] sm:$0xff]
  %v596 = vld [vmem:[%s547 + $0x180] sm:$0xff]
  %v597 = vld [vmem:[%s547 + $0x188] sm:$0xff]
  %v598 = vld [vmem:[%s547 + $0x190] sm:$0xff]
  %v599 = vld [vmem:[%s547 + $0x198] sm:$0xff]
  %v600 = vld [vmem:[%s547 + $0x1a0] sm:$0xff]
  %v601 = vld [vmem:[%s547 + $0x1a8] sm:$0xff]
  %v602 = vld [vmem:[%s547 + $0x1b0] sm:$0xff]
  %v603 = vld [vmem:[%s547 + $0x1b8] sm:$0xff]
  %v604 = vld [vmem:[%s547 + $0x1c0] sm:$0xff]
  %v605 = vld [vmem:[%s547 + $0x1c8] sm:$0xff]
  %v606 = vld [vmem:[%s547 + $0x1d0] sm:$0xff]
  %v607 = vld [vmem:[%s547 + $0x1d8] sm:$0xff]
  %v608 = vld [vmem:[%s547 + $0x1e0] sm:$0xff]
  %v609 = vld [vmem:[%s547 + $0x1e8] sm:$0xff]
  %v610 = vld [vmem:[%s547 + $0x1f0] sm:$0xff]
  %v611 = vld [vmem:[%s547 + $0x1f8] sm:$0xff]
  %v676 = vunpack.c.l.b16 %v548
  %v677 = vunpack.c.h.b16 %v548
  %v678 = vunpack.c.l.b16 %v549
  %v679 = vunpack.c.h.b16 %v549
  %v680 = vunpack.c.l.b16 %v550
  %v681 = vunpack.c.h.b16 %v550
  %v682 = vunpack.c.l.b16 %v551
  %v683 = vunpack.c.h.b16 %v551
  %v684 = vunpack.c.l.b16 %v552
  %v685 = vunpack.c.h.b16 %v552
  %v686 = vunpack.c.l.b16 %v553
  %v687 = vunpack.c.h.b16 %v553
  %v688 = vunpack.c.l.b16 %v554
  %v689 = vunpack.c.h.b16 %v554
  %v690 = vunpack.c.l.b16 %v555
  %v691 = vunpack.c.h.b16 %v555
  %v692 = vunpack.c.l.b16 %v556
  %v693 = vunpack.c.h.b16 %v556
  %v694 = vunpack.c.l.b16 %v557
  %v695 = vunpack.c.h.b16 %v557
  %v696 = vunpack.c.l.b16 %v558
  %v697 = vunpack.c.h.b16 %v558
  %v698 = vunpack.c.l.b16 %v559
  %v699 = vunpack.c.h.b16 %v559
  %v700 = vunpack.c.l.b16 %v560
  %v701 = vunpack.c.h.b16 %v560
  %v702 = vunpack.c.l.b16 %v561
  %v703 = vunpack.c.h.b16 %v561
  %v704 = vunpack.c.l.b16 %v562
  %v705 = vunpack.c.h.b16 %v562
  %v706 = vunpack.c.l.b16 %v563
  %v707 = vunpack.c.h.b16 %v563
  %v708 = vunpack.c.l.b16 %v564
  %v709 = vunpack.c.h.b16 %v564
  %v710 = vunpack.c.l.b16 %v565
  %v711 = vunpack.c.h.b16 %v565
  %v712 = vunpack.c.l.b16 %v566
  %v713 = vunpack.c.h.b16 %v566
  %v714 = vunpack.c.l.b16 %v567
  %v715 = vunpack.c.h.b16 %v567
  %v716 = vunpack.c.l.b16 %v568
  %v717 = vunpack.c.h.b16 %v568
  %v718 = vunpack.c.l.b16 %v569
  %v719 = vunpack.c.h.b16 %v569
  %v720 = vunpack.c.l.b16 %v570
  %v721 = vunpack.c.h.b16 %v570
  %v722 = vunpack.c.l.b16 %v571
  %v723 = vunpack.c.h.b16 %v571
  %v724 = vunpack.c.l.b16 %v572
  %v725 = vunpack.c.h.b16 %v572
  %v726 = vunpack.c.l.b16 %v573
  %v727 = vunpack.c.h.b16 %v573
  %v728 = vunpack.c.l.b16 %v574
  %v729 = vunpack.c.h.b16 %v574
  %v730 = vunpack.c.l.b16 %v575
  %v731 = vunpack.c.h.b16 %v575
  %v732 = vunpack.c.l.b16 %v576
  %v733 = vunpack.c.h.b16 %v576
  %v734 = vunpack.c.l.b16 %v577
  %v735 = vunpack.c.h.b16 %v577
  %v736 = vunpack.c.l.b16 %v578
  %v737 = vunpack.c.h.b16 %v578
  %v738 = vunpack.c.l.b16 %v579
  %v739 = vunpack.c.h.b16 %v579
  %v740 = vunpack.c.l.b16 %v580
  %v741 = vunpack.c.h.b16 %v580
  %v742 = vunpack.c.l.b16 %v581
  %v743 = vunpack.c.h.b16 %v581
  %v744 = vunpack.c.l.b16 %v582
  %v745 = vunpack.c.h.b16 %v582
  %v746 = vunpack.c.l.b16 %v583
  %v747 = vunpack.c.h.b16 %v583
  %v748 = vunpack.c.l.b16 %v584
  %v749 = vunpack.c.h.b16 %v584
  %v750 = vunpack.c.l.b16 %v585
  %v751 = vunpack.c.h.b16 %v585
  %v752 = vunpack.c.l.b16 %v586
  %v753 = vunpack.c.h.b16 %v586
  %v754 = vunpack.c.l.b16 %v587
  %v755 = vunpack.c.h.b16 %v587
  %v756 = vunpack.c.l.b16 %v588
  %v757 = vunpack.c.h.b16 %v588
  %v758 = vunpack.c.l.b16 %v589
  %v759 = vunpack.c.h.b16 %v589
  %v760 = vunpack.c.l.b16 %v590
  %v761 = vunpack.c.h.b16 %v590
  %v762 = vunpack.c.l.b16 %v591
  %v763 = vunpack.c.h.b16 %v591
  %v764 = vunpack.c.l.b16 %v592
  %v765 = vunpack.c.h.b16 %v592
  %v766 = vunpack.c.l.b16 %v593
  %v767 = vunpack.c.h.b16 %v593
  %v768 = vunpack.c.l.b16 %v594
  %v769 = vunpack.c.h.b16 %v594
  %v770 = vunpack.c.l.b16 %v595
  %v771 = vunpack.c.h.b16 %v595
  %v772 = vunpack.c.l.b16 %v596
  %v773 = vunpack.c.h.b16 %v596
  %v774 = vunpack.c.l.b16 %v597
  %v775 = vunpack.c.h.b16 %v597
  %v776 = vunpack.c.l.b16 %v598
  %v777 = vunpack.c.h.b16 %v598
  %v778 = vunpack.c.l.b16 %v599
  %v779 = vunpack.c.h.b16 %v599
  %v780 = vunpack.c.l.b16 %v600
  %v781 = vunpack.c.h.b16 %v600
  %v782 = vunpack.c.l.b16 %v601
  %v783 = vunpack.c.h.b16 %v601
  %v784 = vunpack.c.l.b16 %v602
  %v785 = vunpack.c.h.b16 %v602
  %v786 = vunpack.c.l.b16 %v603
  %v787 = vunpack.c.h.b16 %v603
  %v788 = vunpack.c.l.b16 %v604
  %v789 = vunpack.c.h.b16 %v604
  %v790 = vunpack.c.l.b16 %v605
  %v791 = vunpack.c.h.b16 %v605
  %v792 = vunpack.c.l.b16 %v606
  %v793 = vunpack.c.h.b16 %v606
  %v794 = vunpack.c.l.b16 %v607
  %v795 = vunpack.c.h.b16 %v607
  %v796 = vunpack.c.l.b16 %v608
  %v797 = vunpack.c.h.b16 %v608
  %v798 = vunpack.c.l.b16 %v609
  %v799 = vunpack.c.h.b16 %v609
  %v800 = vunpack.c.l.b16 %v610
  %v801 = vunpack.c.h.b16 %v610
  %v802 = vunpack.c.l.b16 %v611
  %v803 = vunpack.c.h.b16 %v611
  %v804 = vpack.c.b16 %v680, %v676
  %v805 = vpack.c.b16 %v681, %v677
  %v806 = vpack.c.b16 %v682, %v678
  %v807 = vpack.c.b16 %v683, %v679
  %v808 = vpack.c.b16 %v688, %v684
  %v809 = vpack.c.b16 %v689, %v685
  %v810 = vpack.c.b16 %v690, %v686
  %v811 = vpack.c.b16 %v691, %v687
  %v812 = vpack.c.b16 %v696, %v692
  %v813 = vpack.c.b16 %v697, %v693
  %v814 = vpack.c.b16 %v698, %v694
  %v815 = vpack.c.b16 %v699, %v695
  %v816 = vpack.c.b16 %v704, %v700
  %v817 = vpack.c.b16 %v705, %v701
  %v818 = vpack.c.b16 %v706, %v702
  %v819 = vpack.c.b16 %v707, %v703
  %v820 = vpack.c.b16 %v712, %v708
  %v821 = vpack.c.b16 %v713, %v709
  %v822 = vpack.c.b16 %v714, %v710
  %v823 = vpack.c.b16 %v715, %v711
  %v824 = vpack.c.b16 %v720, %v716
  %v825 = vpack.c.b16 %v721, %v717
  %v826 = vpack.c.b16 %v722, %v718
  %v827 = vpack.c.b16 %v723, %v719
  %v828 = vpack.c.b16 %v728, %v724
  %v829 = vpack.c.b16 %v729, %v725
  %v830 = vpack.c.b16 %v730, %v726
  %v831 = vpack.c.b16 %v731, %v727
  %v832 = vpack.c.b16 %v736, %v732
  %v833 = vpack.c.b16 %v737, %v733
  %v834 = vpack.c.b16 %v738, %v734
  %v835 = vpack.c.b16 %v739, %v735
  %v836 = vpack.c.b16 %v744, %v740
  %v837 = vpack.c.b16 %v745, %v741
  %v838 = vpack.c.b16 %v746, %v742
  %v839 = vpack.c.b16 %v747, %v743
  %v840 = vpack.c.b16 %v752, %v748
  %v841 = vpack.c.b16 %v753, %v749
  %v842 = vpack.c.b16 %v754, %v750
  %v843 = vpack.c.b16 %v755, %v751
  %v844 = vpack.c.b16 %v760, %v756
  %v845 = vpack.c.b16 %v761, %v757
  %v846 = vpack.c.b16 %v762, %v758
  %v847 = vpack.c.b16 %v763, %v759
  %v848 = vpack.c.b16 %v768, %v764
  %v849 = vpack.c.b16 %v769, %v765
  %v850 = vpack.c.b16 %v770, %v766
  %v851 = vpack.c.b16 %v771, %v767
  %v852 = vpack.c.b16 %v776, %v772
  %v853 = vpack.c.b16 %v777, %v773
  %v854 = vpack.c.b16 %v778, %v774
  %v855 = vpack.c.b16 %v779, %v775
  %v856 = vpack.c.b16 %v784, %v780
  %v857 = vpack.c.b16 %v785, %v781
  %v858 = vpack.c.b16 %v786, %v782
  %v859 = vpack.c.b16 %v787, %v783
  %v860 = vpack.c.b16 %v792, %v788
  %v861 = vpack.c.b16 %v793, %v789
  %v862 = vpack.c.b16 %v794, %v790
  %v863 = vpack.c.b16 %v795, %v791
  %v864 = vpack.c.b16 %v800, %v796
  %v865 = vpack.c.b16 %v801, %v797
  %v866 = vpack.c.b16 %v802, %v798
  %v867 = vpack.c.b16 %v803, %v799
  %932 = vmatprep.subr.bf16.mxu0 %v805
  %933 = vmatpush1.bf16.msra.mxu0 %v804
  %934 = vmatprep.subr.bf16.mxu0 %v809
  %935 = vmatpush1.bf16.msra.mxu0 %v808
  %936 = vmatprep.subr.bf16.mxu0 %v813
  %937 = vmatpush1.bf16.msra.mxu0 %v812
  %938 = vmatprep.subr.bf16.mxu0 %v817
  %939 = vmatpush1.bf16.msra.mxu0 %v816
  %940 = vmatprep.subr.bf16.mxu0 %v821
  %941 = vmatpush1.bf16.msra.mxu0 %v820
  %942 = vmatprep.subr.bf16.mxu0 %v825
  %943 = vmatpush1.bf16.msra.mxu0 %v824
  %944 = vmatprep.subr.bf16.mxu0 %v829
  %945 = vmatpush1.bf16.msra.mxu0 %v828
  %946 = vmatprep.subr.bf16.mxu0 %v833
  %947 = vmatpush1.bf16.msra.mxu0 %v832
  %948 = vmatprep.subr.bf16.mxu0 %v837
  %949 = vmatpush1.bf16.msra.mxu0 %v836
  %950 = vmatprep.subr.bf16.mxu0 %v841
  %951 = vmatpush1.bf16.msra.mxu0 %v840
  %952 = vmatprep.subr.bf16.mxu0 %v845
  %953 = vmatpush1.bf16.msra.mxu0 %v844
  %954 = vmatprep.subr.bf16.mxu0 %v849
  %955 = vmatpush1.bf16.msra.mxu0 %v848
  %956 = vmatprep.subr.bf16.mxu0 %v853
  %957 = vmatpush1.bf16.msra.mxu0 %v852
  %958 = vmatprep.subr.bf16.mxu0 %v857
  %959 = vmatpush1.bf16.msra.mxu0 %v856
  %960 = vmatprep.subr.bf16.mxu0 %v861
  %961 = vmatpush1.bf16.msra.mxu0 %v860
  %962 = vmatprep.subr.bf16.mxu0 %v865
  %963 = vmatpush1.bf16.msra.mxu0 %v864
  %964 = vmatprep.mubr.bf16.mxu0 %v99
  %965 = vmatmul.mubr.bf16.gmra.mrb[0].mxu0 %v98
  %v966 = vpop.f32.mrb[0].mxu0
  %v967 = vadd.f32 %v85, %v966
  %v968 = vpop.f32.mrb[0].mxu0
  %v969 = vadd.f32 %v85, %v968
  %v970 = vpop.f32.mrb[0].mxu0
  %v971 = vadd.f32 %v90, %v970
  %v972 = vpop.f32.mrb[0].mxu0
  %v973 = vadd.f32 %v90, %v972
  %974 = vdwg.mxu0
  %975 = vmatprep.subr.bf16.mxu0 %v807
  %976 = vmatpush1.bf16.msra.mxu0 %v806
  %977 = vmatprep.subr.bf16.mxu0 %v811
  %978 = vmatpush1.bf16.msra.mxu0 %v810
  %979 = vmatprep.subr.bf16.mxu0 %v815
  %980 = vmatpush1.bf16.msra.mxu0 %v814
  %981 = vmatprep.subr.bf16.mxu0 %v819
  %982 = vmatpush1.bf16.msra.mxu0 %v818
  %983 = vmatprep.subr.bf16.mxu0 %v823
  %984 = vmatpush1.bf16.msra.mxu0 %v822
  %985 = vmatprep.subr.bf16.mxu0 %v827
  %986 = vmatpush1.bf16.msra.mxu0 %v826
  %987 = vmatprep.subr.bf16.mxu0 %v831
  %988 = vmatpush1.bf16.msra.mxu0 %v830
  %989 = vmatprep.subr.bf16.mxu0 %v835
  %990 = vmatpush1.bf16.msra.mxu0 %v834
  %991 = vmatprep.subr.bf16.mxu0 %v839
  %992 = vmatpush1.bf16.msra.mxu0 %v838
  %993 = vmatprep.subr.bf16.mxu0 %v843
  %994 = vmatpush1.bf16.msra.mxu0 %v842
  %995 = vmatprep.subr.bf16.mxu0 %v847
  %996 = vmatpush1.bf16.msra.mxu0 %v846
  %997 = vmatprep.subr.bf16.mxu0 %v851
  %998 = vmatpush1.bf16.msra.mxu0 %v850
  %999 = vmatprep.subr.bf16.mxu0 %v855
  %1000 = vmatpush1.bf16.msra.mxu0 %v854
  %1001 = vmatprep.subr.bf16.mxu0 %v859
  %1002 = vmatpush1.bf16.msra.mxu0 %v858
  %1003 = vmatprep.subr.bf16.mxu0 %v863
  %1004 = vmatpush1.bf16.msra.mxu0 %v862
  %1005 = vmatprep.subr.bf16.mxu0 %v867
  %1006 = vmatpush1.bf16.msra.mxu0 %v866
  %1007 = vmatprep.mubr.bf16.mxu0 %v99
  %1008 = vmatmul.mubr.bf16.gmra.mrb[0].mxu0 %v98
  %v1009 = vpop.f32.mrb[0].mxu0
  %v1010 = vadd.f32 %v85, %v1009
  %v1011 = vpop.f32.mrb[0].mxu0
  %v1012 = vadd.f32 %v85, %v1011
  %v1013 = vpop.f32.mrb[0].mxu0
  %v1014 = vadd.f32 %v90, %v1013
  %v1015 = vpop.f32.mrb[0].mxu0
  %v1016 = vadd.f32 %v90, %v1015
  %1017 = vdwg.mxu0
  %v1018 = vmax.f32 %v967, 0.0
  %v1019 = vmax.f32 %v969, 0.0
  %v1020 = vmax.f32 %v1010, 0.0
  %v1021 = vmax.f32 %v1012, 0.0
  %v1022 = vmax.f32 %v971, 0.0
  %v1023 = vmax.f32 %v973, 0.0
  %v1024 = vmax.f32 %v1014, 0.0
  %v1025 = vmax.f32 %v1016, 0.0
  %v1026 = vpack.c.bf16 %v1022, %v1018
  %v1027 = vpack.c.bf16 %v1023, %v1019
  %v1028 = vpack.c.bf16 %v1024, %v1020
  %v1029 = vpack.c.bf16 %v1025, %v1021
  %v1034 = vunpack.c.l.b16 %v1026
  %v1035 = vunpack.c.l.b16 %v1027
  %v1036 = vunpack.c.l.b16 %v1028
  %v1037 = vunpack.c.l.b16 %v1029
  %v1038 = vunpack.c.h.b16 %v1026
  %v1039 = vunpack.c.h.b16 %v1027
  %v1040 = vunpack.c.h.b16 %v1028
  %v1041 = vunpack.c.h.b16 %v1029
  %v1042 = vpack.c.b16 %v1035, %v1034
  %v1043 = vpack.c.b16 %v1037, %v1036
  %v1044 = vpack.c.b16 %v1039, %v1038
  %v1045 = vpack.c.b16 %v1041, %v1040
  %s1050 = scalar_lea.vmem %s3, 32
  %1051 = vst [vmem:[%s1050] sm:$0xff] %v1042
  %1052 = vst.msk [vmem:[%s1050 + $0x8] sm:$0xff] %vm543, %v1043
  %1053 = vst [vmem:[%s1050 + $0x10] sm:$0xff] %v1044
  %1054 = vst.msk [vmem:[%s1050 + $0x18] sm:$0xff] %vm543, %v1045
  // Predicated region
  $region14: #{dqn_forward.3} parent=0 // pred_check
    _
  $region15: #{dqn_forward.3} parent=0 // pred_check_branch
    %1056 = sbr.rel (0) target = $region17
  $region16: #{dqn_forward.3} parent=0 // pred_region
    _
  $region17: #{dqn_forward.3} parent=0 // pred_fallthru
    _
  // Predicated region
  $region18: #{dqn_forward.3} parent=0 // pred_check
    _
  $region19: #{dqn_forward.3} parent=0 // pred_check_branch
    %1058 = sbr.rel (0) target = $region21
  $region20: #{dqn_forward.3} parent=0 // pred_region
    _
  $region21: #{dqn_forward.3} parent=0 // pred_fallthru
    _

// kernel: dqn_forward.4
$region0: #{dqn_forward.4}
  #allocation0 [shape = 'u32[]', space=smem, size = 0x4, offset = 0x4, fixed_abs, tag = 'smem constant byte address 0x4 - core index']
  #allocation1 [shape = 'u32[144,128]{1,0:T(1,128)}', space=vmem, size = 0x12000, scoped, tag = 'internal scratch']
  %s0 = inlined_call_operand.vmem [shape: bf16[2,256,81], index: 0, kind: input, shape index: {}]
  %s1 = inlined_call_operand.vmem [shape: bf16[32,256], index: 1, kind: input, shape index: {}]
  %s2 = inlined_call_operand.vmem [shape: f32[32,1], index: 2, kind: input, shape index: {}]
  %s3 = inlined_call_operand.vmem [shape: bf16[2,32,81], index: 3, kind: output, shape index: {}]
  %s4 = sld [smem:[#allocation0]]
  $region22: #{dqn_forward.4} parent=0
    _
  %s6 = ssub.s32 1, %s4
  %s7 = scalar_select 0, %s6, %s4
  // Predicated region
  $region2: #{dqn_forward.4} parent=0 // pred_check
    _
  $region3: #{dqn_forward.4} parent=0 // pred_check_branch
    %9 = sbr.rel (0) target = $region5
  $region4: #{dqn_forward.4} parent=0 // pred_region
    _
  $region5: #{dqn_forward.4} parent=0 // pred_fallthru
    _
  // Predicated region
  $region6: #{dqn_forward.4} parent=0 // pred_check
    _
  $region7: #{dqn_forward.4} parent=0 // pred_check_branch
    %11 = sbr.rel (0) target = $region9
  $region8: #{dqn_forward.4} parent=0 // pred_region
    _
  $region9: #{dqn_forward.4} parent=0 // pred_fallthru
    _
  // Predicated region
  $region10: #{dqn_forward.4} parent=0 // pred_check
    _
  $region11: #{dqn_forward.4} parent=0 // pred_check_branch
    %13 = sbr.rel (0) target = $region13
  $region12: #{dqn_forward.4} parent=0 // pred_region
    _
  $region13: #{dqn_forward.4} parent=0 // pred_fallthru
    _
  %v15 = vld [vmem:[%s1] sm:$0xff]
  %v16 = vld [vmem:[%s1 + $0x8] sm:$0xff]
  %v17 = vld [vmem:[%s1 + $0x10] sm:$0xff]
  %v18 = vld [vmem:[%s1 + $0x18] sm:$0xff]
  %v19 = vld [vmem:[%s2] sm:$0xff]
  %v20 = vld [vmem:[%s2 + $0x8] sm:$0xff]
  %v21 = vld [vmem:[%s2 + $0x10] sm:$0xff]
  %v22 = vld [vmem:[%s2 + $0x18] sm:$0xff]
  %v23 = vld [vmem:[%s0] sm:$0xf]
  %v24 = vld [vmem:[%s0 + $0x4] sm:$0xf]
  %v25 = vld [vmem:[%s0 + $0x8] sm:$0xf]
  %v26 = vld [vmem:[%s0 + $0xc] sm:$0xf]
  %v27 = vld [vmem:[%s0 + $0x10] sm:$0xf]
  %v28 = vld [vmem:[%s0 + $0x14] sm:$0xf]
  %v29 = vld [vmem:[%s0 + $0x18] sm:$0xf]
  %v30 = vld [vmem:[%s0 + $0x1c] sm:$0xf]
  %v31 = vld [vmem:[%s0 + $0x20] sm:$0xf]
  %v32 = vld [vmem:[%s0 + $0x24] sm:$0xf]
  %v33 = vld [vmem:[%s0 + $0x28] sm:$0xf]
  %v34 = vld [vmem:[%s0 + $0x2c] sm:$0xf]
  %v35 = vld [vmem:[%s0 + $0x30] sm:$0xf]
  %v36 = vld [vmem:[%s0 + $0x34] sm:$0xf]
  %v37 = vld [vmem:[%s0 + $0x38] sm:$0xf]
  %v38 = vld [vmem:[%s0 + $0x3c] sm:$0xf]
  %v39 = vld [vmem:[%s0 + $0x40] sm:$0xf]
  %v40 = vld [vmem:[%s0 + $0x44] sm:$0xf]
  %v41 = vld [vmem:[%s0 + $0x48] sm:$0xf]
  %v42 = vld [vmem:[%s0 + $0x4c] sm:$0xf]
  %v43 = vld [vmem:[%s0 + $0x50] sm:$0xf]
  %v44 = vld [vmem:[%s0 + $0x54] sm:$0xf]
  %v45 = vld [vmem:[%s0 + $0x58] sm:$0xf]
  %v46 = vld [vmem:[%s0 + $0x5c] sm:$0xf]
  %v47 = vld [vmem:[%s0 + $0x60] sm:$0xf]
  %v48 = vld [vmem:[%s0 + $0x64] sm:$0xf]
  %v49 = vld [vmem:[%s0 + $0x68] sm:$0xf]
  %v50 = vld [vmem:[%s0 + $0x6c] sm:$0xf]
  %v51 = vld [vmem:[%s0 + $0x70] sm:$0xf]
  %v52 = vld [vmem:[%s0 + $0x74] sm:$0xf]
  %v53 = vld [vmem:[%s0 + $0x78] sm:$0xf]
  %v54 = vld [vmem:[%s0 + $0x7c] sm:$0xf]
  %56 = vset.pattern.permute.xlu0 0
  %57 = vperm.xlu0 %56, %v19
  %v58 = vpop.permute.xlu0 %57
  %61 = vset.pattern.permute.xlu0 0
  %62 = vperm.xlu0 %61, %v20
  %v63 = vpop.permute.xlu0 %62
  %66 = vset.pattern.permute.xlu0 0
  %67 = vperm.xlu0 %66, %v21
  %v68 = vpop.permute.xlu0 %67
  %71 = vset.pattern.permute.xlu0 0
  %72 = vperm.xlu0 %71, %v22
  %v73 = vpop.permute.xlu0 %72
  %v79 = vunpack.c.l.b16 %v15
  %v80 = vunpack.c.h.b16 %v15
  %v81 = vunpack.c.l.b16 %v16
  %v82 = vunpack.c.h.b16 %v16
  %v83 = vunpack.c.l.b16 %v17
  %v84 = vunpack.c.h.b16 %v17
  %v85 = vunpack.c.l.b16 %v18
  %v86 = vunpack.c.h.b16 %v18
  %v87 = vpack.c.b16 %v81, %v79
  %v88 = vpack.c.b16 %v82, %v80
  %v89 = vpack.c.b16 %v85, %v83
  %v90 = vpack.c.b16 %v86, %v84
  %v127 = vunpack.c.l.b16 %v23
  %v128 = vunpack.c.l.b16 %v24
  %v129 = vunpack.c.l.b16 %v25
  %v130 = vunpack.c.l.b16 %v26
  %v131 = vunpack.c.l.b16 %v27
  %v132 = vunpack.c.l.b16 %v28
  %v133 = vunpack.c.l.b16 %v29
  %v134 = vunpack.c.l.b16 %v30
  %v135 = vunpack.c.l.b16 %v31
  %v136 = vunpack.c.l.b16 %v32
  %v137 = vunpack.c.l.b16 %v33
  %v138 = vunpack.c.l.b16 %v34
  %v139 = vunpack.c.l.b16 %v35
  %v140 = vunpack.c.l.b16 %v36
  %v141 = vunpack.c.l.b16 %v37
  %v142 = vunpack.c.l.b16 %v38
  %v143 = vunpack.c.l.b16 %v39
  %v144 = vunpack.c.l.b16 %v40
  %v145 = vunpack.c.l.b16 %v41
  %v146 = vunpack.c.l.b16 %v42
  %v147 = vunpack.c.l.b16 %v43
  %v148 = vunpack.c.l.b16 %v44
  %v149 = vunpack.c.l.b16 %v45
  %v150 = vunpack.c.l.b16 %v46
  %v151 = vunpack.c.l.b16 %v47
  %v152 = vunpack.c.l.b16 %v48
  %v153 = vunpack.c.l.b16 %v49
  %v154 = vunpack.c.l.b16 %v50
  %v155 = vunpack.c.l.b16 %v51
  %v156 = vunpack.c.l.b16 %v52
  %v157 = vunpack.c.l.b16 %v53
  %v158 = vunpack.c.l.b16 %v54
  %v159 = vpack.c.b16 %v128, %v127
  %v160 = vpack.c.b16 %v130, %v129
  %v161 = vpack.c.b16 %v132, %v131
  %v162 = vpack.c.b16 %v134, %v133
  %v163 = vpack.c.b16 %v136, %v135
  %v164 = vpack.c.b16 %v138, %v137
  %v165 = vpack.c.b16 %v140, %v139
  %v166 = vpack.c.b16 %v142, %v141
  %v167 = vpack.c.b16 %v144, %v143
  %v168 = vpack.c.b16 %v146, %v145
  %v169 = vpack.c.b16 %v148, %v147
  %v170 = vpack.c.b16 %v150, %v149
  %v171 = vpack.c.b16 %v152, %v151
  %v172 = vpack.c.b16 %v154, %v153
  %v173 = vpack.c.b16 %v156, %v155
  %v174 = vpack.c.b16 %v158, %v157
  %191 = vmatprep.subr.bf16.mxu0 0
  %192 = vmatpush1.bf16.msra.mxu0 %v159
  %193 = vmatprep.subr.bf16.mxu0 0
  %194 = vmatpush1.bf16.msra.mxu0 %v160
  %195 = vmatprep.subr.bf16.mxu0 0
  %196 = vmatpush1.bf16.msra.mxu0 %v161
  %197 = vmatprep.subr.bf16.mxu0 0
  %198 = vmatpush1.bf16.msra.mxu0 %v162
  %199 = vmatprep.subr.bf16.mxu0 0
  %200 = vmatpush1.bf16.msra.mxu0 %v163
  %201 = vmatprep.subr.bf16.mxu0 0
  %202 = vmatpush1.bf16.msra.mxu0 %v164
  %203 = vmatprep.subr.bf16.mxu0 0
  %204 = vmatpush1.bf16.msra.mxu0 %v165
  %205 = vmatprep.subr.bf16.mxu0 0
  %206 = vmatpush1.bf16.msra.mxu0 %v166
  %207 = vmatprep.subr.bf16.mxu0 0
  %208 = vmatpush1.bf16.msra.mxu0 %v167
  %209 = vmatprep.subr.bf16.mxu0 0
  %210 = vmatpush1.bf16.msra.mxu0 %v168
  %211 = vmatprep.subr.bf16.mxu0 0
  %212 = vmatpush1.bf16.msra.mxu0 %v169
  %213 = vmatprep.subr.bf16.mxu0 0
  %214 = vmatpush1.bf16.msra.mxu0 %v170
  %215 = vmatprep.subr.bf16.mxu0 0
  %216 = vmatpush1.bf16.msra.mxu0 %v171
  %217 = vmatprep.subr.bf16.mxu0 0
  %218 = vmatpush1.bf16.msra.mxu0 %v172
  %219 = vmatprep.subr.bf16.mxu0 0
  %220 = vmatpush1.bf16.msra.mxu0 %v173
  %221 = vmatprep.subr.bf16.mxu0 0
  %222 = vmatpush1.bf16.msra.mxu0 %v174
  %223 = vmatprep.mubr.bf16.mxu0 %v88
  %224 = vmatmul.mubr.bf16.gmra.mrb[0].mxu0 %v87
  %v225 = vpop.f32.mrb[0].mxu0
  %v226 = vadd.f32 %v58, %v225
  %v227 = vpop.f32.mrb[0].mxu0
  %v228 = vpop.f32.mrb[0].mxu0
  %v229 = vadd.f32 %v63, %v228
  %v230 = vpop.f32.mrb[0].mxu0
  %231 = vmatprep.mubr.bf16.mxu0 %v90
  %232 = vmatmul.mubr.bf16.gmra.mrb[0].mxu0 %v89
  %v233 = vpop.f32.mrb[0].mxu0
  %v234 = vadd.f32 %v68, %v233
  %v235 = vpop.f32.mrb[0].mxu0
  %v236 = vpop.f32.mrb[0].mxu0
  %v237 = vadd.f32 %v73, %v236
  %v238 = vpop.f32.mrb[0].mxu0
  %239 = vdwg.mxu0
  %v240 = vmax.f32 %v226, 0.0
  %v241 = vmax.f32 %v229, 0.0
  %v242 = vmax.f32 %v234, 0.0
  %v243 = vmax.f32 %v237, 0.0
  %v244 = vpack.c.bf16 %v241, %v240
  %v245 = vpack.c.bf16 %v243, %v242
  %v248 = vunpack.c.l.b16 %v244
  %v249 = vunpack.c.h.b16 %v244
  %v250 = vunpack.c.l.b16 %v245
  %v251 = vunpack.c.h.b16 %v245
  %v252 = vpack.c.b16 %v248, %v248
  %v253 = vpack.c.b16 %v249, %v249
  %v254 = vpack.c.b16 %v250, %v250
  %v255 = vpack.c.b16 %v251, %v251
  %vm260 = vcmask 658432
  %261 = vst.msk [vmem:[%s3] sm:$0xf] %vm260, %v252
  %262 = vst.msk [vmem:[%s3 + $0x4] sm:$0xf] %vm260, %v253
  %263 = vst.msk [vmem:[%s3 + $0x8] sm:$0xf] %vm260, %v254
  %264 = vst.msk [vmem:[%s3 + $0xc] sm:$0xf] %vm260, %v255
  %s265 = scalar_lea.vmem %s0, 128
  %v266 = vld [vmem:[%s265] sm:$0xf]
  %v267 = vld [vmem:[%s265 + $0x4] sm:$0xf]
  %v268 = vld [vmem:[%s265 + $0x8] sm:$0xf]
  %v269 = vld [vmem:[%s265 + $0xc] sm:$0xf]
  %v270 = vld [vmem:[%s265 + $0x10] sm:$0xf]
  %v271 = vld [vmem:[%s265 + $0x14] sm:$0xf]
  %v272 = vld [vmem:[%s265 + $0x18] sm:$0xf]
  %v273 = vld [vmem:[%s265 + $0x1c] sm:$0xf]
  %v274 = vld [vmem:[%s265 + $0x20] sm:$0xf]
  %v275 = vld [vmem:[%s265 + $0x24] sm:$0xf]
  %v276 = vld [vmem:[%s265 + $0x28] sm:$0xf]
  %v277 = vld [vmem:[%s265 + $0x2c] sm:$0xf]
  %v278 = vld [vmem:[%s265 + $0x30] sm:$0xf]
  %v279 = vld [vmem:[%s265 + $0x34] sm:$0xf]
  %v280 = vld [vmem:[%s265 + $0x38] sm:$0xf]
  %v281 = vld [vmem:[%s265 + $0x3c] sm:$0xf]
  %v282 = vld [vmem:[%s265 + $0x40] sm:$0xf]
  %v283 = vld [vmem:[%s265 + $0x44] sm:$0xf]
  %v284 = vld [vmem:[%s265 + $0x48] sm:$0xf]
  %v285 = vld [vmem:[%s265 + $0x4c] sm:$0xf]
  %v286 = vld [vmem:[%s265 + $0x50] sm:$0xf]
  %v287 = vld [vmem:[%s265 + $0x54] sm:$0xf]
  %v288 = vld [vmem:[%s265 + $0x58] sm:$0xf]
  %v289 = vld [vmem:[%s265 + $0x5c] sm:$0xf]
  %v290 = vld [vmem:[%s265 + $0x60] sm:$0xf]
  %v291 = vld [vmem:[%s265 + $0x64] sm:$0xf]
  %v292 = vld [vmem:[%s265 + $0x68] sm:$0xf]
  %v293 = vld [vmem:[%s265 + $0x6c] sm:$0xf]
  %v294 = vld [vmem:[%s265 + $0x70] sm:$0xf]
  %v295 = vld [vmem:[%s265 + $0x74] sm:$0xf]
  %v296 = vld [vmem:[%s265 + $0x78] sm:$0xf]
  %v297 = vld [vmem:[%s265 + $0x7c] sm:$0xf]
  %v330 = vunpack.c.l.b16 %v266
  %v331 = vunpack.c.l.b16 %v267
  %v332 = vunpack.c.l.b16 %v268
  %v333 = vunpack.c.l.b16 %v269
  %v334 = vunpack.c.l.b16 %v270
  %v335 = vunpack.c.l.b16 %v271
  %v336 = vunpack.c.l.b16 %v272
  %v337 = vunpack.c.l.b16 %v273
  %v338 = vunpack.c.l.b16 %v274
  %v339 = vunpack.c.l.b16 %v275
  %v340 = vunpack.c.l.b16 %v276
  %v341 = vunpack.c.l.b16 %v277
  %v342 = vunpack.c.l.b16 %v278
  %v343 = vunpack.c.l.b16 %v279
  %v344 = vunpack.c.l.b16 %v280
  %v345 = vunpack.c.l.b16 %v281
  %v346 = vunpack.c.l.b16 %v282
  %v347 = vunpack.c.l.b16 %v283
  %v348 = vunpack.c.l.b16 %v284
  %v349 = vunpack.c.l.b16 %v285
  %v350 = vunpack.c.l.b16 %v286
  %v351 = vunpack.c.l.b16 %v287
  %v352 = vunpack.c.l.b16 %v288
  %v353 = vunpack.c.l.b16 %v289
  %v354 = vunpack.c.l.b16 %v290
  %v355 = vunpack.c.l.b16 %v291
  %v356 = vunpack.c.l.b16 %v292
  %v357 = vunpack.c.l.b16 %v293
  %v358 = vunpack.c.l.b16 %v294
  %v359 = vunpack.c.l.b16 %v295
  %v360 = vunpack.c.l.b16 %v296
  %v361 = vunpack.c.l.b16 %v297
  %v362 = vpack.c.b16 %v331, %v330
  %v363 = vpack.c.b16 %v333, %v332
  %v364 = vpack.c.b16 %v335, %v334
  %v365 = vpack.c.b16 %v337, %v336
  %v366 = vpack.c.b16 %v339, %v338
  %v367 = vpack.c.b16 %v341, %v340
  %v368 = vpack.c.b16 %v343, %v342
  %v369 = vpack.c.b16 %v345, %v344
  %v370 = vpack.c.b16 %v347, %v346
  %v371 = vpack.c.b16 %v349, %v348
  %v372 = vpack.c.b16 %v351, %v350
  %v373 = vpack.c.b16 %v353, %v352
  %v374 = vpack.c.b16 %v355, %v354
  %v375 = vpack.c.b16 %v357, %v356
  %v376 = vpack.c.b16 %v359, %v358
  %v377 = vpack.c.b16 %v361, %v360
  %394 = vmatprep.subr.bf16.mxu0 0
  %395 = vmatpush1.bf16.msra.mxu0 %v362
  %396 = vmatprep.subr.bf16.mxu0 0
  %397 = vmatpush1.bf16.msra.mxu0 %v363
  %398 = vmatprep.subr.bf16.mxu0 0
  %399 = vmatpush1.bf16.msra.mxu0 %v364
  %400 = vmatprep.subr.bf16.mxu0 0
  %401 = vmatpush1.bf16.msra.mxu0 %v365
  %402 = vmatprep.subr.bf16.mxu0 0
  %403 = vmatpush1.bf16.msra.mxu0 %v366
  %404 = vmatprep.subr.bf16.mxu0 0
  %405 = vmatpush1.bf16.msra.mxu0 %v367
  %406 = vmatprep.subr.bf16.mxu0 0
  %407 = vmatpush1.bf16.msra.mxu0 %v368
  %408 = vmatprep.subr.bf16.mxu0 0
  %409 = vmatpush1.bf16.msra.mxu0 %v369
  %410 = vmatprep.subr.bf16.mxu0 0
  %411 = vmatpush1.bf16.msra.mxu0 %v370
  %412 = vmatprep.subr.bf16.mxu0 0
  %413 = vmatpush1.bf16.msra.mxu0 %v371
  %414 = vmatprep.subr.bf16.mxu0 0
  %415 = vmatpush1.bf16.msra.mxu0 %v372
  %416 = vmatprep.subr.bf16.mxu0 0
  %417 = vmatpush1.bf16.msra.mxu0 %v373
  %418 = vmatprep.subr.bf16.mxu0 0
  %419 = vmatpush1.bf16.msra.mxu0 %v374
  %420 = vmatprep.subr.bf16.mxu0 0
  %421 = vmatpush1.bf16.msra.mxu0 %v375
  %422 = vmatprep.subr.bf16.mxu0 0
  %423 = vmatpush1.bf16.msra.mxu0 %v376
  %424 = vmatprep.subr.bf16.mxu0 0
  %425 = vmatpush1.bf16.msra.mxu0 %v377
  %426 = vmatprep.mubr.bf16.mxu0 %v88
  %427 = vmatmul.mubr.bf16.gmra.mrb[0].mxu0 %v87
  %v428 = vpop.f32.mrb[0].mxu0
  %v429 = vadd.f32 %v58, %v428
  %v430 = vpop.f32.mrb[0].mxu0
  %v431 = vpop.f32.mrb[0].mxu0
  %v432 = vadd.f32 %v63, %v431
  %v433 = vpop.f32.mrb[0].mxu0
  %434 = vmatprep.mubr.bf16.mxu0 %v90
  %435 = vmatmul.mubr.bf16.gmra.mrb[0].mxu0 %v89
  %v436 = vpop.f32.mrb[0].mxu0
  %v437 = vadd.f32 %v68, %v436
  %v438 = vpop.f32.mrb[0].mxu0
  %v439 = vpop.f32.mrb[0].mxu0
  %v440 = vadd.f32 %v73, %v439
  %v441 = vpop.f32.mrb[0].mxu0
  %442 = vdwg.mxu0
  %v443 = vmax.f32 %v429, 0.0
  %v444 = vmax.f32 %v432, 0.0
  %v445 = vmax.f32 %v437, 0.0
  %v446 = vmax.f32 %v440, 0.0
  %v447 = vpack.c.bf16 %v444, %v443
  %v448 = vpack.c.bf16 %v446, %v445
  %v451 = vunpack.c.l.b16 %v447
  %v452 = vunpack.c.h.b16 %v447
  %v453 = vunpack.c.l.b16 %v448
  %v454 = vunpack.c.h.b16 %v448
  %v455 = vpack.c.b16 %v451, %v451
  %v456 = vpack.c.b16 %v452, %v452
  %v457 = vpack.c.b16 %v453, %v453
  %v458 = vpack.c.b16 %v454, %v454
  %s463 = scalar_lea.vmem %s3, 16
  %464 = vst.msk [vmem:[%s463] sm:$0xf] %vm260, %v455
  %465 = vst.msk [vmem:[%s463 + $0x4] sm:$0xf] %vm260, %v456
  %466 = vst.msk [vmem:[%s463 + $0x8] sm:$0xf] %vm260, %v457
  %467 = vst.msk [vmem:[%s463 + $0xc] sm:$0xf] %vm260, %v458
  // Predicated region
  $region14: #{dqn_forward.4} parent=0 // pred_check
    _
  $region15: #{dqn_forward.4} parent=0 // pred_check_branch
    %469 = sbr.rel (0) target = $region17
  $region16: #{dqn_forward.4} parent=0 // pred_region
    _
  $region17: #{dqn_forward.4} parent=0 // pred_fallthru
    _
  // Predicated region
  $region18: #{dqn_forward.4} parent=0 // pred_check
    _
  $region19: #{dqn_forward.4} parent=0 // pred_check_branch
    %471 = sbr.rel (0) target = $region21
  $region20: #{dqn_forward.4} parent=0 // pred_region
    _
  $region21: #{dqn_forward.4} parent=0 // pred_fallthru
    _

// kernel: dqn_forward.5
$region0: #{dqn_forward.5}
  #allocation0 [shape = 'u32[]', space=smem, size = 0x4, offset = 0x4, fixed_abs, tag = 'smem constant byte address 0x4 - core index']
  #allocation1 [shape = 'u32[144,128]{1,0:T(1,128)}', space=vmem, size = 0x12000, scoped, tag = 'internal scratch']
  %s0 = inlined_call_operand.vmem [shape: bf16[8,2592], index: 0, kind: input, shape index: {}]
  %s1 = inlined_call_operand.vmem [shape: bf16[2592,256], index: 1, kind: input, shape index: {}]
  %s2 = inlined_call_operand.vmem [shape: f32[1,256], index: 2, kind: input, shape index: {}]
  %s3 = inlined_call_operand.vmem [shape: bf16[256,128], index: 3, kind: input, shape index: {}]
  %s4 = inlined_call_operand.vmem [shape: f32[1,128], index: 4, kind: input, shape index: {}]
  %s5 = inlined_call_operand.vmem [shape: f32[8,128], index: 5, kind: output, shape index: {}]
  %s6 = sld [smem:[#allocation0]]
  $region30: #{dqn_forward.5} parent=0
    _
  %s8 = ssub.s32 1, %s6
  %s9 = scalar_select 0, %s8, %s6
  // Predicated region
  $region2: #{dqn_forward.5} parent=0 // pred_check
    _
  $region3: #{dqn_forward.5} parent=0 // pred_check_branch
    %11 = sbr.rel (0) target = $region5
  $region4: #{dqn_forward.5} parent=0 // pred_region
    _
  $region5: #{dqn_forward.5} parent=0 // pred_fallthru
    _
  // Predicated region
  $region6: #{dqn_forward.5} parent=0 // pred_check
    _
  $region7: #{dqn_forward.5} parent=0 // pred_check_branch
    %13 = sbr.rel (0) target = $region9
  $region8: #{dqn_forward.5} parent=0 // pred_region
    _
  $region9: #{dqn_forward.5} parent=0 // pred_fallthru
    _
  // Predicated region
  $region10: #{dqn_forward.5} parent=0 // pred_check
    _
  $region11: #{dqn_forward.5} parent=0 // pred_check_branch
    %15 = sbr.rel (0) target = $region13
  $region12: #{dqn_forward.5} parent=0 // pred_region
    _
  $region13: #{dqn_forward.5} parent=0 // pred_fallthru
    _
  // Predicated region
  $region14: #{dqn_forward.5} parent=0 // pred_check
    _
  $region15: #{dqn_forward.5} parent=0 // pred_check_branch
    %17 = sbr.rel (0) target = $region17
  $region16: #{dqn_forward.5} parent=0 // pred_region
    _
  $region17: #{dqn_forward.5} parent=0 // pred_fallthru
    _
  // Predicated region
  $region18: #{dqn_forward.5} parent=0 // pred_check
    _
  $region19: #{dqn_forward.5} parent=0 // pred_check_branch
    %19 = sbr.rel (0) target = $region21
  $region20: #{dqn_forward.5} parent=0 // pred_region
    _
  $region21: #{dqn_forward.5} parent=0 // pred_fallthru
    _
  %v21 = vld [vmem:[%s0] sm:$0xff]
  %v22 = vld [vmem:[%s0 + $0x8] sm:$0xff]
  %v23 = vld [vmem:[%s0 + $0x10] sm:$0xff]
  %v24 = vld [vmem:[%s0 + $0x18] sm:$0xff]
  %v25 = vld [vmem:[%s0 + $0x20] sm:$0xff]
  %v26 = vld [vmem:[%s0 + $0x28] sm:$0xff]
  %v27 = vld [vmem:[%s0 + $0x30] sm:$0xff]
  %v28 = vld [vmem:[%s0 + $0x38] sm:$0xff]
  %v29 = vld [vmem:[%s0 + $0x40] sm:$0xff]
  %v30 = vld [vmem:[%s0 + $0x48] sm:$0xff]
  %v31 = vld [vmem:[%s0 + $0x50] sm:$0xf]
  %v32 = vld [vmem:[%s1] sm:$0xff]
  %v33 = vld [vmem:[%s1 + $0x8] sm:$0xff]
  %v34 = vld [vmem:[%s1 + $0x10] sm:$0xff]
  %v35 = vld [vmem:[%s1 + $0x18] sm:$0xff]
  %v36 = vld [vmem:[%s1 + $0x20] sm:$0xff]
  %v37 = vld [vmem:[%s1 + $0x28] sm:$0xff]
  %v38 = vld [vmem:[%s1 + $0x30] sm:$0xff]
  %v39 = vld [vmem:[%s1 + $0x38] sm:$0xff]
  %v40 = vld [vmem:[%s1 + $0x40] sm:$0xff]
  %v41 = vld [vmem:[%s1 + $0x48] sm:$0xff]
  %v42 = vld [vmem:[%s1 + $0x50] sm:$0xff]
  %v43 = vld [vmem:[%s1 + $0x58] sm:$0xff]
  %v44 = vld [vmem:[%s1 + $0x60] sm:$0xff]
  %v45 = vld [vmem:[%s1 + $0x68] sm:$0xff]
  %v46 = vld [vmem:[%s1 + $0x70] sm:$0xff]
  %v47 = vld [vmem:[%s1 + $0x78] sm:$0xff]
  %v48 = vld [vmem:[%s1 + $0x80] sm:$0xff]
  %v49 = vld [vmem:[%s1 + $0x88] sm:$0xff]
  %v50 = vld [vmem:[%s1 + $0x90] sm:$0xff]
  %v51 = vld [vmem:[%s1 + $0x98] sm:$0xff]
  %v52 = vld [vmem:[%s1 + $0xa0] sm:$0xff]
  %v53 = vld [vmem:[%s1 + $0xa8] sm:$0xff]
  %v54 = vld [vmem:[%s1 + $0xb0] sm:$0xff]
  %v55 = vld [vmem:[%s1 + $0xb8] sm:$0xff]
  %v56 = vld [vmem:[%s1 + $0xc0] sm:$0xff]
  %v57 = vld [vmem:[%s1 + $0xc8] sm:$0xff]
  %v58 = vld [vmem:[%s1 + $0xd0] sm:$0xff]
  %v59 = vld [vmem:[%s1 + $0xd8] sm:$0xff]
  %v60 = vld [vmem:[%s1 + $0xe0] sm:$0xff]
  %v61 = vld [vmem:[%s1 + $0xe8] sm:$0xff]
  %v62 = vld [vmem:[%s1 + $0xf0] sm:$0xff]
  %v63 = vld [vmem:[%s1 + $0xf8] sm:$0xff]
  %v64 = vld [vmem:[%s1 + $0x100] sm:$0xff]
  %v65 = vld [vmem:[%s1 + $0x108] sm:$0xff]
  %v66 = vld [vmem:[%s1 + $0x110] sm:$0xff]
  %v67 = vld [vmem:[%s1 + $0x118] sm:$0xff]
  %v68 = vld [vmem:[%s1 + $0x120] sm:$0xff]
  %v69 = vld [vmem:[%s1 + $0x128] sm:$0xff]
  %v70 = vld [vmem:[%s1 + $0x130] sm:$0xff]
  %v71 = vld [vmem:[%s1 + $0x138] sm:$0xff]
  %v72 = vld [vmem:[%s1 + $0x140] sm:$0xff]
  %v73 = vld [vmem:[%s1 + $0x148] sm:$0xff]
  %v74 = vld [vmem:[%s1 + $0x150] sm:$0xff]
  %v75 = vld [vmem:[%s1 + $0x158] sm:$0xff]
  %v76 = vld [vmem:[%s1 + $0x160] sm:$0xff]
  %v77 = vld [vmem:[%s1 + $0x168] sm:$0xff]
  %v78 = vld [vmem:[%s1 + $0x170] sm:$0xff]
  %v79 = vld [vmem:[%s1 + $0x178] sm:$0xff]
  %v80 = vld [vmem:[%s1 + $0x180] sm:$0xff]
  %v81 = vld [vmem:[%s1 + $0x188] sm:$0xff]
  %v82 = vld [vmem:[%s1 + $0x190] sm:$0xff]
  %v83 = vld [vmem:[%s1 + $0x198] sm:$0xff]
  %v84 = vld [vmem:[%s1 + $0x1a0] sm:$0xff]
  %v85 = vld [vmem:[%s1 + $0x1a8] sm:$0xff]
  %v86 = vld [vmem:[%s1 + $0x1b0] sm:$0xff]
  %v87 = vld [vmem:[%s1 + $0x1b8] sm:$0xff]
  %v88 = vld [vmem:[%s1 + $0x1c0] sm:$0xff]
  %v89 = vld [vmem:[%s1 + $0x1c8] sm:$0xff]
  %v90 = vld [vmem:[%s1 + $0x1d0] sm:$0xff]
  %v91 = vld [vmem:[%s1 + $0x1d8] sm:$0xff]
  %v92 = vld [vmem:[%s1 + $0x1e0] sm:$0xff]
  %v93 = vld [vmem:[%s1 + $0x1e8] sm:$0xff]
  %v94 = vld [vmem:[%s1 + $0x1f0] sm:$0xff]
  %v95 = vld [vmem:[%s1 + $0x1f8] sm:$0xff]
  %v96 = vld [vmem:[%s1 + $0x200] sm:$0xff]
  %v97 = vld [vmem:[%s1 + $0x208] sm:$0xff]
  %v98 = vld [vmem:[%s1 + $0x210] sm:$0xff]
  %v99 = vld [vmem:[%s1 + $0x218] sm:$0xff]
  %v100 = vld [vmem:[%s1 + $0x220] sm:$0xff]
  %v101 = vld [vmem:[%s1 + $0x228] sm:$0xff]
  %v102 = vld [vmem:[%s1 + $0x230] sm:$0xff]
  %v103 = vld [vmem:[%s1 + $0x238] sm:$0xff]
  %v104 = vld [vmem:[%s1 + $0x240] sm:$0xff]
  %v105 = vld [vmem:[%s1 + $0x248] sm:$0xff]
  %v106 = vld [vmem:[%s1 + $0x250] sm:$0xff]
  %v107 = vld [vmem:[%s1 + $0x258] sm:$0xff]
  %v108 = vld [vmem:[%s1 + $0x260] sm:$0xff]
  %v109 = vld [vmem:[%s1 + $0x268] sm:$0xff]
  %v110 = vld [vmem:[%s1 + $0x270] sm:$0xff]
  %v111 = vld [vmem:[%s1 + $0x278] sm:$0xff]
  %v112 = vld [vmem:[%s1 + $0x280] sm:$0xff]
  %v113 = vld [vmem:[%s1 + $0x288] sm:$0xff]
  %v114 = vld [vmem:[%s1 + $0x290] sm:$0xff]
  %v115 = vld [vmem:[%s1 + $0x298] sm:$0xff]
  %v116 = vld [vmem:[%s1 + $0x2a0] sm:$0xff]
  %v117 = vld [vmem:[%s1 + $0x2a8] sm:$0xff]
  %v118 = vld [vmem:[%s1 + $0x2b0] sm:$0xff]
  %v119 = vld [vmem:[%s1 + $0x2b8] sm:$0xff]
  %v120 = vld [vmem:[%s1 + $0x2c0] sm:$0xff]
  %v121 = vld [vmem:[%s1 + $0x2c8] sm:$0xff]
  %v122 = vld [vmem:[%s1 + $0x2d0] sm:$0xff]
  %v123 = vld [vmem:[%s1 + $0x2d8] sm:$0xff]
  %v124 = vld [vmem:[%s1 + $0x2e0] sm:$0xff]
  %v125 = vld [vmem:[%s1 + $0x2e8] sm:$0xff]
  %v126 = vld [vmem:[%s1 + $0x2f0] sm:$0xff]
  %v127 = vld [vmem:[%s1 + $0x2f8] sm:$0xff]
  %v128 = vld [vmem:[%s1 + $0x300] sm:$0xff]
  %v129 = vld [vmem:[%s1 + $0x308] sm:$0xff]
  %v130 = vld [vmem:[%s1 + $0x310] sm:$0xff]
  %v131 = vld [vmem:[%s1 + $0x318] sm:$0xff]
  %v132 = vld [vmem:[%s1 + $0x320] sm:$0xff]
  %v133 = vld [vmem:[%s1 + $0x328] sm:$0xff]
  %v134 = vld [vmem:[%s1 + $0x330] sm:$0xff]
  %v135 = vld [vmem:[%s1 + $0x338] sm:$0xff]
  %v136 = vld [vmem:[%s1 + $0x340] sm:$0xff]
  %v137 = vld [vmem:[%s1 + $0x348] sm:$0xff]
  %v138 = vld [vmem:[%s1 + $0x350] sm:$0xff]
  %v139 = vld [vmem:[%s1 + $0x358] sm:$0xff]
  %v140 = vld [vmem:[%s1 + $0x360] sm:$0xff]
  %v141 = vld [vmem:[%s1 + $0x368] sm:$0xff]
  %v142 = vld [vmem:[%s1 + $0x370] sm:$0xff]
  %v143 = vld [vmem:[%s1 + $0x378] sm:$0xff]
  %v144 = vld [vmem:[%s1 + $0x380] sm:$0xff]
  %v145 = vld [vmem:[%s1 + $0x388] sm:$0xff]
  %v146 = vld [vmem:[%s1 + $0x390] sm:$0xff]
  %v147 = vld [vmem:[%s1 + $0x398] sm:$0xff]
  %v148 = vld [vmem:[%s1 + $0x3a0] sm:$0xff]
  %v149 = vld [vmem:[%s1 + $0x3a8] sm:$0xff]
  %v150 = vld [vmem:[%s1 + $0x3b0] sm:$0xff]
  %v151 = vld [vmem:[%s1 + $0x3b8] sm:$0xff]
  %v152 = vld [vmem:[%s1 + $0x3c0] sm:$0xff]
  %v153 = vld [vmem:[%s1 + $0x3c8] sm:$0xff]
  %v154 = vld [vmem:[%s1 + $0x3d0] sm:$0xff]
  %v155 = vld [vmem:[%s1 + $0x3d8] sm:$0xff]
  %v156 = vld [vmem:[%s1 + $0x3e0] sm:$0xff]
  %v157 = vld [vmem:[%s1 + $0x3e8] sm:$0xff]
  %v158 = vld [vmem:[%s1 + $0x3f0] sm:$0xff]
  %v159 = vld [vmem:[%s1 + $0x3f8] sm:$0xff]
  %v160 = vld [vmem:[%s1 + $0x400] sm:$0xff]
  %v161 = vld [vmem:[%s1 + $0x408] sm:$0xff]
  %v162 = vld [vmem:[%s1 + $0x410] sm:$0xff]
  %v163 = vld [vmem:[%s1 + $0x418] sm:$0xff]
  %v164 = vld [vmem:[%s1 + $0x420] sm:$0xff]
  %v165 = vld [vmem:[%s1 + $0x428] sm:$0xff]
  %v166 = vld [vmem:[%s1 + $0x430] sm:$0xff]
  %v167 = vld [vmem:[%s1 + $0x438] sm:$0xff]
  %v168 = vld [vmem:[%s1 + $0x440] sm:$0xff]
  %v169 = vld [vmem:[%s1 + $0x448] sm:$0xff]
  %v170 = vld [vmem:[%s1 + $0x450] sm:$0xff]
  %v171 = vld [vmem:[%s1 + $0x458] sm:$0xff]
  %v172 = vld [vmem:[%s1 + $0x460] sm:$0xff]
  %v173 = vld [vmem:[%s1 + $0x468] sm:$0xff]
  %v174 = vld [vmem:[%s1 + $0x470] sm:$0xff]
  %v175 = vld [vmem:[%s1 + $0x478] sm:$0xff]
  %v176 = vld [vmem:[%s1 + $0x480] sm:$0xff]
  %v177 = vld [vmem:[%s1 + $0x488] sm:$0xff]
  %v178 = vld [vmem:[%s1 + $0x490] sm:$0xff]
  %v179 = vld [vmem:[%s1 + $0x498] sm:$0xff]
  %v180 = vld [vmem:[%s1 + $0x4a0] sm:$0xff]
  %v181 = vld [vmem:[%s1 + $0x4a8] sm:$0xff]
  %v182 = vld [vmem:[%s1 + $0x4b0] sm:$0xff]
  %v183 = vld [vmem:[%s1 + $0x4b8] sm:$0xff]
  %v184 = vld [vmem:[%s1 + $0x4c0] sm:$0xff]
  %v185 = vld [vmem:[%s1 + $0x4c8] sm:$0xff]
  %v186 = vld [vmem:[%s1 + $0x4d0] sm:$0xff]
  %v187 = vld [vmem:[%s1 + $0x4d8] sm:$0xff]
  %v188 = vld [vmem:[%s1 + $0x4e0] sm:$0xff]
  %v189 = vld [vmem:[%s1 + $0x4e8] sm:$0xff]
  %v190 = vld [vmem:[%s1 + $0x4f0] sm:$0xff]
  %v191 = vld [vmem:[%s1 + $0x4f8] sm:$0xff]
  %v192 = vld [vmem:[%s1 + $0x500] sm:$0xff]
  %v193 = vld [vmem:[%s1 + $0x508] sm:$0xff]
  %v194 = vld [vmem:[%s1 + $0x510] sm:$0xff]
  %v195 = vld [vmem:[%s1 + $0x518] sm:$0xff]
  %v196 = vld [vmem:[%s1 + $0x520] sm:$0xff]
  %v197 = vld [vmem:[%s1 + $0x528] sm:$0xff]
  %v198 = vld [vmem:[%s1 + $0x530] sm:$0xff]
  %v199 = vld [vmem:[%s1 + $0x538] sm:$0xff]
  %v200 = vld [vmem:[%s1 + $0x540] sm:$0xff]
  %v201 = vld [vmem:[%s1 + $0x548] sm:$0xff]
  %v202 = vld [vmem:[%s1 + $0x550] sm:$0xff]
  %v203 = vld [vmem:[%s1 + $0x558] sm:$0xff]
  %v204 = vld [vmem:[%s1 + $0x560] sm:$0xff]
  %v205 = vld [vmem:[%s1 + $0x568] sm:$0xff]
  %v206 = vld [vmem:[%s1 + $0x570] sm:$0xff]
  %v207 = vld [vmem:[%s1 + $0x578] sm:$0xff]
  %v208 = vld [vmem:[%s1 + $0x580] sm:$0xff]
  %v209 = vld [vmem:[%s1 + $0x588] sm:$0xff]
  %v210 = vld [vmem:[%s1 + $0x590] sm:$0xff]
  %v211 = vld [vmem:[%s1 + $0x598] sm:$0xff]
  %v212 = vld [vmem:[%s1 + $0x5a0] sm:$0xff]
  %v213 = vld [vmem:[%s1 + $0x5a8] sm:$0xff]
  %v214 = vld [vmem:[%s1 + $0x5b0] sm:$0xff]
  %v215 = vld [vmem:[%s1 + $0x5b8] sm:$0xff]
  %v216 = vld [vmem:[%s1 + $0x5c0] sm:$0xff]
  %v217 = vld [vmem:[%s1 + $0x5c8] sm:$0xff]
  %v218 = vld [vmem:[%s1 + $0x5d0] sm:$0xff]
  %v219 = vld [vmem:[%s1 + $0x5d8] sm:$0xff]
  %v220 = vld [vmem:[%s1 + $0x5e0] sm:$0xff]
  %v221 = vld [vmem:[%s1 + $0x5e8] sm:$0xff]
  %v222 = vld [vmem:[%s1 + $0x5f0] sm:$0xff]
  %v223 = vld [vmem:[%s1 + $0x5f8] sm:$0xff]
  %v224 = vld [vmem:[%s1 + $0x600] sm:$0xff]
  %v225 = vld [vmem:[%s1 + $0x608] sm:$0xff]
  %v226 = vld [vmem:[%s1 + $0x610] sm:$0xff]
  %v227 = vld [vmem:[%s1 + $0x618] sm:$0xff]
  %v228 = vld [vmem:[%s1 + $0x620] sm:$0xff]
  %v229 = vld [vmem:[%s1 + $0x628] sm:$0xff]
  %v230 = vld [vmem:[%s1 + $0x630] sm:$0xff]
  %v231 = vld [vmem:[%s1 + $0x638] sm:$0xff]
  %v232 = vld [vmem:[%s1 + $0x640] sm:$0xff]
  %v233 = vld [vmem:[%s1 + $0x648] sm:$0xff]
  %v234 = vld [vmem:[%s1 + $0x650] sm:$0xff]
  %v235 = vld [vmem:[%s1 + $0x658] sm:$0xff]
  %v236 = vld [vmem:[%s1 + $0x660] sm:$0xff]
  %v237 = vld [vmem:[%s1 + $0x668] sm:$0xff]
  %v238 = vld [vmem:[%s1 + $0x670] sm:$0xff]
  %v239 = vld [vmem:[%s1 + $0x678] sm:$0xff]
  %v240 = vld [vmem:[%s1 + $0x680] sm:$0xff]
  %v241 = vld [vmem:[%s1 + $0x688] sm:$0xff]
  %v242 = vld [vmem:[%s1 + $0x690] sm:$0xff]
  %v243 = vld [vmem:[%s1 + $0x698] sm:$0xff]
  %v244 = vld [vmem:[%s1 + $0x6a0] sm:$0xff]
  %v245 = vld [vmem:[%s1 + $0x6a8] sm:$0xff]
  %v246 = vld [vmem:[%s1 + $0x6b0] sm:$0xff]
  %v247 = vld [vmem:[%s1 + $0x6b8] sm:$0xff]
  %v248 = vld [vmem:[%s1 + $0x6c0] sm:$0xff]
  %v249 = vld [vmem:[%s1 + $0x6c8] sm:$0xff]
  %v250 = vld [vmem:[%s1 + $0x6d0] sm:$0xff]
  %v251 = vld [vmem:[%s1 + $0x6d8] sm:$0xff]
  %v252 = vld [vmem:[%s1 + $0x6e0] sm:$0xff]
  %v253 = vld [vmem:[%s1 + $0x6e8] sm:$0xff]
  %v254 = vld [vmem:[%s1 + $0x6f0] sm:$0xff]
  %v255 = vld [vmem:[%s1 + $0x6f8] sm:$0xff]
  %v256 = vld [vmem:[%s1 + $0x700] sm:$0xff]
  %v257 = vld [vmem:[%s1 + $0x708] sm:$0xff]
  %v258 = vld [vmem:[%s1 + $0x710] sm:$0xff]
  %v259 = vld [vmem:[%s1 + $0x718] sm:$0xff]
  %v260 = vld [vmem:[%s1 + $0x720] sm:$0xff]
  %v261 = vld [vmem:[%s1 + $0x728] sm:$0xff]
  %v262 = vld [vmem:[%s1 + $0x730] sm:$0xff]
  %v263 = vld [vmem:[%s1 + $0x738] sm:$0xff]
  %v264 = vld [vmem:[%s1 + $0x740] sm:$0xff]
  %v265 = vld [vmem:[%s1 + $0x748] sm:$0xff]
  %v266 = vld [vmem:[%s1 + $0x750] sm:$0xff]
  %v267 = vld [vmem:[%s1 + $0x758] sm:$0xff]
  %v268 = vld [vmem:[%s1 + $0x760] sm:$0xff]
  %v269 = vld [vmem:[%s1 + $0x768] sm:$0xff]
  %v270 = vld [vmem:[%s1 + $0x770] sm:$0xff]
  %v271 = vld [vmem:[%s1 + $0x778] sm:$0xff]
  %v272 = vld [vmem:[%s1 + $0x780] sm:$0xff]
  %v273 = vld [vmem:[%s1 + $0x788] sm:$0xff]
  %v274 = vld [vmem:[%s1 + $0x790] sm:$0xff]
  %v275 = vld [vmem:[%s1 + $0x798] sm:$0xff]
  %v276 = vld [vmem:[%s1 + $0x7a0] sm:$0xff]
  %v277 = vld [vmem:[%s1 + $0x7a8] sm:$0xff]
  %v278 = vld [vmem:[%s1 + $0x7b0] sm:$0xff]
  %v279 = vld [vmem:[%s1 + $0x7b8] sm:$0xff]
  %v280 = vld [vmem:[%s1 + $0x7c0] sm:$0xff]
  %v281 = vld [vmem:[%s1 + $0x7c8] sm:$0xff]
  %v282 = vld [vmem:[%s1 + $0x7d0] sm:$0xff]
  %v283 = vld [vmem:[%s1 + $0x7d8] sm:$0xff]
  %v284 = vld [vmem:[%s1 + $0x7e0] sm:$0xff]
  %v285 = vld [vmem:[%s1 + $0x7e8] sm:$0xff]
  %v286 = vld [vmem:[%s1 + $0x7f0] sm:$0xff]
  %v287 = vld [vmem:[%s1 + $0x7f8] sm:$0xff]
  %v288 = vld [vmem:[%s1 + $0x800] sm:$0xff]
  %v289 = vld [vmem:[%s1 + $0x808] sm:$0xff]
  %v290 = vld [vmem:[%s1 + $0x810] sm:$0xff]
  %v291 = vld [vmem:[%s1 + $0x818] sm:$0xff]
  %v292 = vld [vmem:[%s1 + $0x820] sm:$0xff]
  %v293 = vld [vmem:[%s1 + $0x828] sm:$0xff]
  %v294 = vld [vmem:[%s1 + $0x830] sm:$0xff]
  %v295 = vld [vmem:[%s1 + $0x838] sm:$0xff]
  %v296 = vld [vmem:[%s1 + $0x840] sm:$0xff]
  %v297 = vld [vmem:[%s1 + $0x848] sm:$0xff]
  %v298 = vld [vmem:[%s1 + $0x850] sm:$0xff]
  %v299 = vld [vmem:[%s1 + $0x858] sm:$0xff]
  %v300 = vld [vmem:[%s1 + $0x860] sm:$0xff]
  %v301 = vld [vmem:[%s1 + $0x868] sm:$0xff]
  %v302 = vld [vmem:[%s1 + $0x870] sm:$0xff]
  %v303 = vld [vmem:[%s1 + $0x878] sm:$0xff]
  %v304 = vld [vmem:[%s1 + $0x880] sm:$0xff]
  %v305 = vld [vmem:[%s1 + $0x888] sm:$0xff]
  %v306 = vld [vmem:[%s1 + $0x890] sm:$0xff]
  %v307 = vld [vmem:[%s1 + $0x898] sm:$0xff]
  %v308 = vld [vmem:[%s1 + $0x8a0] sm:$0xff]
  %v309 = vld [vmem:[%s1 + $0x8a8] sm:$0xff]
  %v310 = vld [vmem:[%s1 + $0x8b0] sm:$0xff]
  %v311 = vld [vmem:[%s1 + $0x8b8] sm:$0xff]
  %v312 = vld [vmem:[%s1 + $0x8c0] sm:$0xff]
  %v313 = vld [vmem:[%s1 + $0x8c8] sm:$0xff]
  %v314 = vld [vmem:[%s1 + $0x8d0] sm:$0xff]
  %v315 = vld [vmem:[%s1 + $0x8d8] sm:$0xff]
  %v316 = vld [vmem:[%s1 + $0x8e0] sm:$0xff]
  %v317 = vld [vmem:[%s1 + $0x8e8] sm:$0xff]
  %v318 = vld [vmem:[%s1 + $0x8f0] sm:$0xff]
  %v319 = vld [vmem:[%s1 + $0x8f8] sm:$0xff]
  %v320 = vld [vmem:[%s1 + $0x900] sm:$0xff]
  %v321 = vld [vmem:[%s1 + $0x908] sm:$0xff]
  %v322 = vld [vmem:[%s1 + $0x910] sm:$0xff]
  %v323 = vld [vmem:[%s1 + $0x918] sm:$0xff]
  %v324 = vld [vmem:[%s1 + $0x920] sm:$0xff]
  %v325 = vld [vmem:[%s1 + $0x928] sm:$0xff]
  %v326 = vld [vmem:[%s1 + $0x930] sm:$0xff]
  %v327 = vld [vmem:[%s1 + $0x938] sm:$0xff]
  %v328 = vld [vmem:[%s1 + $0x940] sm:$0xff]
  %v329 = vld [vmem:[%s1 + $0x948] sm:$0xff]
  %v330 = vld [vmem:[%s1 + $0x950] sm:$0xff]
  %v331 = vld [vmem:[%s1 + $0x958] sm:$0xff]
  %v332 = vld [vmem:[%s1 + $0x960] sm:$0xff]
  %v333 = vld [vmem:[%s1 + $0x968] sm:$0xff]
  %v334 = vld [vmem:[%s1 + $0x970] sm:$0xff]
  %v335 = vld [vmem:[%s1 + $0x978] sm:$0xff]
  %v336 = vld [vmem:[%s1 + $0x980] sm:$0xff]
  %v337 = vld [vmem:[%s1 + $0x988] sm:$0xff]
  %v338 = vld [vmem:[%s1 + $0x990] sm:$0xff]
  %v339 = vld [vmem:[%s1 + $0x998] sm:$0xff]
  %v340 = vld [vmem:[%s1 + $0x9a0] sm:$0xff]
  %v341 = vld [vmem:[%s1 + $0x9a8] sm:$0xff]
  %v342 = vld [vmem:[%s1 + $0x9b0] sm:$0xff]
  %v343 = vld [vmem:[%s1 + $0x9b8] sm:$0xff]
  %v344 = vld [vmem:[%s1 + $0x9c0] sm:$0xff]
  %v345 = vld [vmem:[%s1 + $0x9c8] sm:$0xff]
  %v346 = vld [vmem:[%s1 + $0x9d0] sm:$0xff]
  %v347 = vld [vmem:[%s1 + $0x9d8] sm:$0xff]
  %v348 = vld [vmem:[%s1 + $0x9e0] sm:$0xff]
  %v349 = vld [vmem:[%s1 + $0x9e8] sm:$0xff]
  %v350 = vld [vmem:[%s1 + $0x9f0] sm:$0xff]
  %v351 = vld [vmem:[%s1 + $0x9f8] sm:$0xff]
  %v352 = vld [vmem:[%s1 + $0xa00] sm:$0xff]
  %v353 = vld [vmem:[%s1 + $0xa08] sm:$0xff]
  %v354 = vld [vmem:[%s1 + $0xa10] sm:$0xff]
  %v355 = vld [vmem:[%s1 + $0xa18] sm:$0xff]
  %v356 = vld [vmem:[%s2] sm:$0x3]
  %v358 = vlaneseq
  %v359 = vshrl.u32 %v358, 7
  %v360 = vsub.s32 0, %v359
  %v361 = vrot.slane %v356, %v360
  %v362 = vlaneseq
  %v363 = vshrl.u32 %v362, 7
  %v364 = vsub.s32 1, %v363
  %v365 = vrot.slane %v356, %v364
  %v379 = vunpack.c.l.b16 %v21
  %v380 = vunpack.c.h.b16 %v21
  %v381 = vunpack.c.l.b16 %v22
  %v382 = vunpack.c.h.b16 %v22
  %v383 = vunpack.c.l.b16 %v23
  %v384 = vunpack.c.h.b16 %v23
  %v385 = vunpack.c.l.b16 %v24
  %v386 = vunpack.c.h.b16 %v24
  %v387 = vunpack.c.l.b16 %v25
  %v388 = vunpack.c.h.b16 %v25
  %v389 = vunpack.c.l.b16 %v26
  %v390 = vunpack.c.h.b16 %v26
  %v391 = vunpack.c.l.b16 %v27
  %v392 = vunpack.c.h.b16 %v27
  %v393 = vunpack.c.l.b16 %v28
  %v394 = vunpack.c.h.b16 %v28
  %v395 = vunpack.c.l.b16 %v29
  %v396 = vunpack.c.h.b16 %v29
  %v397 = vunpack.c.l.b16 %v30
  %v398 = vunpack.c.h.b16 %v30
  %v399 = vunpack.c.l.b16 %v31
  %v400 = vpack.c.b16 %v379, %v379
  %v401 = vpack.c.b16 %v380, %v380
  %v402 = vpack.c.b16 %v381, %v381
  %v403 = vpack.c.b16 %v382, %v382
  %v404 = vpack.c.b16 %v383, %v383
  %v405 = vpack.c.b16 %v384, %v384
  %v406 = vpack.c.b16 %v385, %v385
  %v407 = vpack.c.b16 %v386, %v386
  %v408 = vpack.c.b16 %v387, %v387
  %v409 = vpack.c.b16 %v388, %v388
  %v410 = vpack.c.b16 %v389, %v389
  %v411 = vpack.c.b16 %v390, %v390
  %v412 = vpack.c.b16 %v391, %v391
  %v413 = vpack.c.b16 %v392, %v392
  %v414 = vpack.c.b16 %v393, %v393
  %v415 = vpack.c.b16 %v394, %v394
  %v416 = vpack.c.b16 %v395, %v395
  %v417 = vpack.c.b16 %v396, %v396
  %v418 = vpack.c.b16 %v397, %v397
  %v419 = vpack.c.b16 %v398, %v398
  %v420 = vpack.c.b16 %v399, %v399
  %v765 = vunpack.c.l.b16 %v32
  %v766 = vunpack.c.h.b16 %v32
  %v767 = vunpack.c.l.b16 %v33
  %v768 = vunpack.c.h.b16 %v33
  %v769 = vunpack.c.l.b16 %v34
  %v770 = vunpack.c.h.b16 %v34
  %v771 = vunpack.c.l.b16 %v35
  %v772 = vunpack.c.h.b16 %v35
  %v773 = vunpack.c.l.b16 %v36
  %v774 = vunpack.c.h.b16 %v36
  %v775 = vunpack.c.l.b16 %v37
  %v776 = vunpack.c.h.b16 %v37
  %v777 = vunpack.c.l.b16 %v38
  %v778 = vunpack.c.h.b16 %v38
  %v779 = vunpack.c.l.b16 %v39
  %v780 = vunpack.c.h.b16 %v39
  %v781 = vunpack.c.l.b16 %v40
  %v782 = vunpack.c.h.b16 %v40
  %v783 = vunpack.c.l.b16 %v41
  %v784 = vunpack.c.h.b16 %v41
  %v785 = vunpack.c.l.b16 %v42
  %v786 = vunpack.c.h.b16 %v42
  %v787 = vunpack.c.l.b16 %v43
  %v788 = vunpack.c.h.b16 %v43
  %v789 = vunpack.c.l.b16 %v44
  %v790 = vunpack.c.h.b16 %v44
  %v791 = vunpack.c.l.b16 %v45
  %v792 = vunpack.c.h.b16 %v45
  %v793 = vunpack.c.l.b16 %v46
  %v794 = vunpack.c.h.b16 %v46
  %v795 = vunpack.c.l.b16 %v47
  %v796 = vunpack.c.h.b16 %v47
  %v797 = vunpack.c.l.b16 %v48
  %v798 = vunpack.c.h.b16 %v48
  %v799 = vunpack.c.l.b16 %v49
  %v800 = vunpack.c.h.b16 %v49
  %v801 = vunpack.c.l.b16 %v50
  %v802 = vunpack.c.h.b16 %v50
  %v803 = vunpack.c.l.b16 %v51
  %v804 = vunpack.c.h.b16 %v51
  %v805 = vunpack.c.l.b16 %v52
  %v806 = vunpack.c.h.b16 %v52
  %v807 = vunpack.c.l.b16 %v53
  %v808 = vunpack.c.h.b16 %v53
  %v809 = vunpack.c.l.b16 %v54
  %v810 = vunpack.c.h.b16 %v54
  %v811 = vunpack.c.l.b16 %v55
  %v812 = vunpack.c.h.b16 %v55
  %v813 = vunpack.c.l.b16 %v56
  %v814 = vunpack.c.h.b16 %v56
  %v815 = vunpack.c.l.b16 %v57
  %v816 = vunpack.c.h.b16 %v57
  %v817 = vunpack.c.l.b16 %v58
  %v818 = vunpack.c.h.b16 %v58
  %v819 = vunpack.c.l.b16 %v59
  %v820 = vunpack.c.h.b16 %v59
  %v821 = vunpack.c.l.b16 %v60
  %v822 = vunpack.c.h.b16 %v60
  %v823 = vunpack.c.l.b16 %v61
  %v824 = vunpack.c.h.b16 %v61
  %v825 = vunpack.c.l.b16 %v62
  %v826 = vunpack.c.h.b16 %v62
  %v827 = vunpack.c.l.b16 %v63
  %v828 = vunpack.c.h.b16 %v63
  %v829 = vunpack.c.l.b16 %v64
  %v830 = vunpack.c.h.b16 %v64
  %v831 = vunpack.c.l.b16 %v65
  %v832 = vunpack.c.h.b16 %v65
  %v833 = vunpack.c.l.b16 %v66
  %v834 = vunpack.c.h.b16 %v66
  %v835 = vunpack.c.l.b16 %v67
  %v836 = vunpack.c.h.b16 %v67
  %v837 = vunpack.c.l.b16 %v68
  %v838 = vunpack.c.h.b16 %v68
  %v839 = vunpack.c.l.b16 %v69
  %v840 = vunpack.c.h.b16 %v69
  %v841 = vunpack.c.l.b16 %v70
  %v842 = vunpack.c.h.b16 %v70
  %v843 = vunpack.c.l.b16 %v71
  %v844 = vunpack.c.h.b16 %v71
  %v845 = vunpack.c.l.b16 %v72
  %v846 = vunpack.c.h.b16 %v72
  %v847 = vunpack.c.l.b16 %v73
  %v848 = vunpack.c.h.b16 %v73
  %v849 = vunpack.c.l.b16 %v74
  %v850 = vunpack.c.h.b16 %v74
  %v851 = vunpack.c.l.b16 %v75
  %v852 = vunpack.c.h.b16 %v75
  %v853 = vunpack.c.l.b16 %v76
  %v854 = vunpack.c.h.b16 %v76
  %v855 = vunpack.c.l.b16 %v77
  %v856 = vunpack.c.h.b16 %v77
  %v857 = vunpack.c.l.b16 %v78
  %v858 = vunpack.c.h.b16 %v78
  %v859 = vunpack.c.l.b16 %v79
  %v860 = vunpack.c.h.b16 %v79
  %v861 = vunpack.c.l.b16 %v80
  %v862 = vunpack.c.h.b16 %v80
  %v863 = vunpack.c.l.b16 %v81
  %v864 = vunpack.c.h.b16 %v81
  %v865 = vunpack.c.l.b16 %v82
  %v866 = vunpack.c.h.b16 %v82
  %v867 = vunpack.c.l.b16 %v83
  %v868 = vunpack.c.h.b16 %v83
  %v869 = vunpack.c.l.b16 %v84
  %v870 = vunpack.c.h.b16 %v84
  %v871 = vunpack.c.l.b16 %v85
  %v872 = vunpack.c.h.b16 %v85
  %v873 = vunpack.c.l.b16 %v86
  %v874 = vunpack.c.h.b16 %v86
  %v875 = vunpack.c.l.b16 %v87
  %v876 = vunpack.c.h.b16 %v87
  %v877 = vunpack.c.l.b16 %v88
  %v878 = vunpack.c.h.b16 %v88
  %v879 = vunpack.c.l.b16 %v89
  %v880 = vunpack.c.h.b16 %v89
  %v881 = vunpack.c.l.b16 %v90
  %v882 = vunpack.c.h.b16 %v90
  %v883 = vunpack.c.l.b16 %v91
  %v884 = vunpack.c.h.b16 %v91
  %v885 = vunpack.c.l.b16 %v92
  %v886 = vunpack.c.h.b16 %v92
  %v887 = vunpack.c.l.b16 %v93
  %v888 = vunpack.c.h.b16 %v93
  %v889 = vunpack.c.l.b16 %v94
  %v890 = vunpack.c.h.b16 %v94
  %v891 = vunpack.c.l.b16 %v95
  %v892 = vunpack.c.h.b16 %v95
  %v893 = vunpack.c.l.b16 %v96
  %v894 = vunpack.c.h.b16 %v96
  %v895 = vunpack.c.l.b16 %v97
  %v896 = vunpack.c.h.b16 %v97
  %v897 = vunpack.c.l.b16 %v98
  %v898 = vunpack.c.h.b16 %v98
  %v899 = vunpack.c.l.b16 %v99
  %v900 = vunpack.c.h.b16 %v99
  %v901 = vunpack.c.l.b16 %v100
  %v902 = vunpack.c.h.b16 %v100
  %v903 = vunpack.c.l.b16 %v101
  %v904 = vunpack.c.h.b16 %v101
  %v905 = vunpack.c.l.b16 %v102
  %v906 = vunpack.c.h.b16 %v102
  %v907 = vunpack.c.l.b16 %v103
  %v908 = vunpack.c.h.b16 %v103
  %v909 = vunpack.c.l.b16 %v104
  %v910 = vunpack.c.h.b16 %v104
  %v911 = vunpack.c.l.b16 %v105
  %v912 = vunpack.c.h.b16 %v105
  %v913 = vunpack.c.l.b16 %v106
  %v914 = vunpack.c.h.b16 %v106
  %v915 = vunpack.c.l.b16 %v107
  %v916 = vunpack.c.h.b16 %v107
  %v917 = vunpack.c.l.b16 %v108
  %v918 = vunpack.c.h.b16 %v108
  %v919 = vunpack.c.l.b16 %v109
  %v920 = vunpack.c.h.b16 %v109
  %v921 = vunpack.c.l.b16 %v110
  %v922 = vunpack.c.h.b16 %v110
  %v923 = vunpack.c.l.b16 %v111
  %v924 = vunpack.c.h.b16 %v111
  %v925 = vunpack.c.l.b16 %v112
  %v926 = vunpack.c.h.b16 %v112
  %v927 = vunpack.c.l.b16 %v113
  %v928 = vunpack.c.h.b16 %v113
  %v929 = vunpack.c.l.b16 %v114
  %v930 = vunpack.c.h.b16 %v114
  %v931 = vunpack.c.l.b16 %v115
  %v932 = vunpack.c.h.b16 %v115
  %v933 = vunpack.c.l.b16 %v116
  %v934 = vunpack.c.h.b16 %v116
  %v935 = vunpack.c.l.b16 %v117
  %v936 = vunpack.c.h.b16 %v117
  %v937 = vunpack.c.l.b16 %v118
  %v938 = vunpack.c.h.b16 %v118
  %v939 = vunpack.c.l.b16 %v119
  %v940 = vunpack.c.h.b16 %v119
  %v941 = vunpack.c.l.b16 %v120
  %v942 = vunpack.c.h.b16 %v120
  %v943 = vunpack.c.l.b16 %v121
  %v944 = vunpack.c.h.b16 %v121
  %v945 = vunpack.c.l.b16 %v122
  %v946 = vunpack.c.h.b16 %v122
  %v947 = vunpack.c.l.b16 %v123
  %v948 = vunpack.c.h.b16 %v123
  %v949 = vunpack.c.l.b16 %v124
  %v950 = vunpack.c.h.b16 %v124
  %v951 = vunpack.c.l.b16 %v125
  %v952 = vunpack.c.h.b16 %v125
  %v953 = vunpack.c.l.b16 %v126
  %v954 = vunpack.c.h.b16 %v126
  %v955 = vunpack.c.l.b16 %v127
  %v956 = vunpack.c.h.b16 %v127
  %v957 = vunpack.c.l.b16 %v128
  %v958 = vunpack.c.h.b16 %v128
  %v959 = vunpack.c.l.b16 %v129
  %v960 = vunpack.c.h.b16 %v129
  %v961 = vunpack.c.l.b16 %v130
  %v962 = vunpack.c.h.b16 %v130
  %v963 = vunpack.c.l.b16 %v131
  %v964 = vunpack.c.h.b16 %v131
  %v965 = vunpack.c.l.b16 %v132
  %v966 = vunpack.c.h.b16 %v132
  %v967 = vunpack.c.l.b16 %v133
  %v968 = vunpack.c.h.b16 %v133
  %v969 = vunpack.c.l.b16 %v134
  %v970 = vunpack.c.h.b16 %v134
  %v971 = vunpack.c.l.b16 %v135
  %v972 = vunpack.c.h.b16 %v135
  %v973 = vunpack.c.l.b16 %v136
  %v974 = vunpack.c.h.b16 %v136
  %v975 = vunpack.c.l.b16 %v137
  %v976 = vunpack.c.h.b16 %v137
  %v977 = vunpack.c.l.b16 %v138
  %v978 = vunpack.c.h.b16 %v138
  %v979 = vunpack.c.l.b16 %v139
  %v980 = vunpack.c.h.b16 %v139
  %v981 = vunpack.c.l.b16 %v140
  %v982 = vunpack.c.h.b16 %v140
  %v983 = vunpack.c.l.b16 %v141
  %v984 = vunpack.c.h.b16 %v141
  %v985 = vunpack.c.l.b16 %v142
  %v986 = vunpack.c.h.b16 %v142
  %v987 = vunpack.c.l.b16 %v143
  %v988 = vunpack.c.h.b16 %v143
  %v989 = vunpack.c.l.b16 %v144
  %v990 = vunpack.c.h.b16 %v144
  %v991 = vunpack.c.l.b16 %v145
  %v992 = vunpack.c.h.b16 %v145
  %v993 = vunpack.c.l.b16 %v146
  %v994 = vunpack.c.h.b16 %v146
  %v995 = vunpack.c.l.b16 %v147
  %v996 = vunpack.c.h.b16 %v147
  %v997 = vunpack.c.l.b16 %v148
  %v998 = vunpack.c.h.b16 %v148
  %v999 = vunpack.c.l.b16 %v149
  %v1000 = vunpack.c.h.b16 %v149
  %v1001 = vunpack.c.l.b16 %v150
  %v1002 = vunpack.c.h.b16 %v150
  %v1003 = vunpack.c.l.b16 %v151
  %v1004 = vunpack.c.h.b16 %v151
  %v1005 = vunpack.c.l.b16 %v152
  %v1006 = vunpack.c.h.b16 %v152
  %v1007 = vunpack.c.l.b16 %v153
  %v1008 = vunpack.c.h.b16 %v153
  %v1009 = vunpack.c.l.b16 %v154
  %v1010 = vunpack.c.h.b16 %v154
  %v1011 = vunpack.c.l.b16 %v155
  %v1012 = vunpack.c.h.b16 %v155
  %v1013 = vunpack.c.l.b16 %v156
  %v1014 = vunpack.c.h.b16 %v156
  %v1015 = vunpack.c.l.b16 %v157
  %v1016 = vunpack.c.h.b16 %v157
  %v1017 = vunpack.c.l.b16 %v158
  %v1018 = vunpack.c.h.b16 %v158
  %v1019 = vunpack.c.l.b16 %v159
  %v1020 = vunpack.c.h.b16 %v159
  %v1021 = vunpack.c.l.b16 %v160
  %v1022 = vunpack.c.h.b16 %v160
  %v1023 = vunpack.c.l.b16 %v161
  %v1024 = vunpack.c.h.b16 %v161
  %v1025 = vunpack.c.l.b16 %v162
  %v1026 = vunpack.c.h.b16 %v162
  %v1027 = vunpack.c.l.b16 %v163
  %v1028 = vunpack.c.h.b16 %v163
  %v1029 = vunpack.c.l.b16 %v164
  %v1030 = vunpack.c.h.b16 %v164
  %v1031 = vunpack.c.l.b16 %v165
  %v1032 = vunpack.c.h.b16 %v165
  %v1033 = vunpack.c.l.b16 %v166
  %v1034 = vunpack.c.h.b16 %v166
  %v1035 = vunpack.c.l.b16 %v167
  %v1036 = vunpack.c.h.b16 %v167
  %v1037 = vunpack.c.l.b16 %v168
  %v1038 = vunpack.c.h.b16 %v168
  %v1039 = vunpack.c.l.b16 %v169
  %v1040 = vunpack.c.h.b16 %v169
  %v1041 = vunpack.c.l.b16 %v170
  %v1042 = vunpack.c.h.b16 %v170
  %v1043 = vunpack.c.l.b16 %v171
  %v1044 = vunpack.c.h.b16 %v171
  %v1045 = vunpack.c.l.b16 %v172
  %v1046 = vunpack.c.h.b16 %v172
  %v1047 = vunpack.c.l.b16 %v173
  %v1048 = vunpack.c.h.b16 %v173
  %v1049 = vunpack.c.l.b16 %v174
  %v1050 = vunpack.c.h.b16 %v174
  %v1051 = vunpack.c.l.b16 %v175
  %v1052 = vunpack.c.h.b16 %v175
  %v1053 = vunpack.c.l.b16 %v176
  %v1054 = vunpack.c.h.b16 %v176
  %v1055 = vunpack.c.l.b16 %v177
  %v1056 = vunpack.c.h.b16 %v177
  %v1057 = vunpack.c.l.b16 %v178
  %v1058 = vunpack.c.h.b16 %v178
  %v1059 = vunpack.c.l.b16 %v179
  %v1060 = vunpack.c.h.b16 %v179
  %v1061 = vunpack.c.l.b16 %v180
  %v1062 = vunpack.c.h.b16 %v180
  %v1063 = vunpack.c.l.b16 %v181
  %v1064 = vunpack.c.h.b16 %v181
  %v1065 = vunpack.c.l.b16 %v182
  %v1066 = vunpack.c.h.b16 %v182
  %v1067 = vunpack.c.l.b16 %v183
  %v1068 = vunpack.c.h.b16 %v183
  %v1069 = vunpack.c.l.b16 %v184
  %v1070 = vunpack.c.h.b16 %v184
  %v1071 = vunpack.c.l.b16 %v185
  %v1072 = vunpack.c.h.b16 %v185
  %v1073 = vunpack.c.l.b16 %v186
  %v1074 = vunpack.c.h.b16 %v186
  %v1075 = vunpack.c.l.b16 %v187
  %v1076 = vunpack.c.h.b16 %v187
  %v1077 = vunpack.c.l.b16 %v188
  %v1078 = vunpack.c.h.b16 %v188
  %v1079 = vunpack.c.l.b16 %v189
  %v1080 = vunpack.c.h.b16 %v189
  %v1081 = vunpack.c.l.b16 %v190
  %v1082 = vunpack.c.h.b16 %v190
  %v1083 = vunpack.c.l.b16 %v191
  %v1084 = vunpack.c.h.b16 %v191
  %v1085 = vunpack.c.l.b16 %v192
  %v1086 = vunpack.c.h.b16 %v192
  %v1087 = vunpack.c.l.b16 %v193
  %v1088 = vunpack.c.h.b16 %v193
  %v1089 = vunpack.c.l.b16 %v194
  %v1090 = vunpack.c.h.b16 %v194
  %v1091 = vunpack.c.l.b16 %v195
  %v1092 = vunpack.c.h.b16 %v195
  %v1093 = vunpack.c.l.b16 %v196
  %v1094 = vunpack.c.h.b16 %v196
  %v1095 = vunpack.c.l.b16 %v197
  %v1096 = vunpack.c.h.b16 %v197
  %v1097 = vunpack.c.l.b16 %v198
  %v1098 = vunpack.c.h.b16 %v198
  %v1099 = vunpack.c.l.b16 %v199
  %v1100 = vunpack.c.h.b16 %v199
  %v1101 = vunpack.c.l.b16 %v200
  %v1102 = vunpack.c.h.b16 %v200
  %v1103 = vunpack.c.l.b16 %v201
  %v1104 = vunpack.c.h.b16 %v201
  %v1105 = vunpack.c.l.b16 %v202
  %v1106 = vunpack.c.h.b16 %v202
  %v1107 = vunpack.c.l.b16 %v203
  %v1108 = vunpack.c.h.b16 %v203
  %v1109 = vunpack.c.l.b16 %v204
  %v1110 = vunpack.c.h.b16 %v204
  %v1111 = vunpack.c.l.b16 %v205
  %v1112 = vunpack.c.h.b16 %v205
  %v1113 = vunpack.c.l.b16 %v206
  %v1114 = vunpack.c.h.b16 %v206
  %v1115 = vunpack.c.l.b16 %v207
  %v1116 = vunpack.c.h.b16 %v207
  %v1117 = vunpack.c.l.b16 %v208
  %v1118 = vunpack.c.h.b16 %v208
  %v1119 = vunpack.c.l.b16 %v209
  %v1120 = vunpack.c.h.b16 %v209
  %v1121 = vunpack.c.l.b16 %v210
  %v1122 = vunpack.c.h.b16 %v210
  %v1123 = vunpack.c.l.b16 %v211
  %v1124 = vunpack.c.h.b16 %v211
  %v1125 = vunpack.c.l.b16 %v212
  %v1126 = vunpack.c.h.b16 %v212
  %v1127 = vunpack.c.l.b16 %v213
  %v1128 = vunpack.c.h.b16 %v213
  %v1129 = vunpack.c.l.b16 %v214
  %v1130 = vunpack.c.h.b16 %v214
  %v1131 = vunpack.c.l.b16 %v215
  %v1132 = vunpack.c.h.b16 %v215
  %v1133 = vunpack.c.l.b16 %v216
  %v1134 = vunpack.c.h.b16 %v216
  %v1135 = vunpack.c.l.b16 %v217
  %v1136 = vunpack.c.h.b16 %v217
  %v1137 = vunpack.c.l.b16 %v218
  %v1138 = vunpack.c.h.b16 %v218
  %v1139 = vunpack.c.l.b16 %v219
  %v1140 = vunpack.c.h.b16 %v219
  %v1141 = vunpack.c.l.b16 %v220
  %v1142 = vunpack.c.h.b16 %v220
  %v1143 = vunpack.c.l.b16 %v221
  %v1144 = vunpack.c.h.b16 %v221
  %v1145 = vunpack.c.l.b16 %v222
  %v1146 = vunpack.c.h.b16 %v222
  %v1147 = vunpack.c.l.b16 %v223
  %v1148 = vunpack.c.h.b16 %v223
  %v1149 = vunpack.c.l.b16 %v224
  %v1150 = vunpack.c.h.b16 %v224
  %v1151 = vunpack.c.l.b16 %v225
  %v1152 = vunpack.c.h.b16 %v225
  %v1153 = vunpack.c.l.b16 %v226
  %v1154 = vunpack.c.h.b16 %v226
  %v1155 = vunpack.c.l.b16 %v227
  %v1156 = vunpack.c.h.b16 %v227
  %v1157 = vunpack.c.l.b16 %v228
  %v1158 = vunpack.c.h.b16 %v228
  %v1159 = vunpack.c.l.b16 %v229
  %v1160 = vunpack.c.h.b16 %v229
  %v1161 = vunpack.c.l.b16 %v230
  %v1162 = vunpack.c.h.b16 %v230
  %v1163 = vunpack.c.l.b16 %v231
  %v1164 = vunpack.c.h.b16 %v231
  %v1165 = vunpack.c.l.b16 %v232
  %v1166 = vunpack.c.h.b16 %v232
  %v1167 = vunpack.c.l.b16 %v233
  %v1168 = vunpack.c.h.b16 %v233
  %v1169 = vunpack.c.l.b16 %v234
  %v1170 = vunpack.c.h.b16 %v234
  %v1171 = vunpack.c.l.b16 %v235
  %v1172 = vunpack.c.h.b16 %v235
  %v1173 = vunpack.c.l.b16 %v236
  %v1174 = vunpack.c.h.b16 %v236
  %v1175 = vunpack.c.l.b16 %v237
  %v1176 = vunpack.c.h.b16 %v237
  %v1177 = vunpack.c.l.b16 %v238
  %v1178 = vunpack.c.h.b16 %v238
  %v1179 = vunpack.c.l.b16 %v239
  %v1180 = vunpack.c.h.b16 %v239
  %v1181 = vunpack.c.l.b16 %v240
  %v1182 = vunpack.c.h.b16 %v240
  %v1183 = vunpack.c.l.b16 %v241
  %v1184 = vunpack.c.h.b16 %v241
  %v1185 = vunpack.c.l.b16 %v242
  %v1186 = vunpack.c.h.b16 %v242
  %v1187 = vunpack.c.l.b16 %v243
  %v1188 = vunpack.c.h.b16 %v243
  %v1189 = vunpack.c.l.b16 %v244
  %v1190 = vunpack.c.h.b16 %v244
  %v1191 = vunpack.c.l.b16 %v245
  %v1192 = vunpack.c.h.b16 %v245
  %v1193 = vunpack.c.l.b16 %v246
  %v1194 = vunpack.c.h.b16 %v246
  %v1195 = vunpack.c.l.b16 %v247
  %v1196 = vunpack.c.h.b16 %v247
  %v1197 = vunpack.c.l.b16 %v248
  %v1198 = vunpack.c.h.b16 %v248
  %v1199 = vunpack.c.l.b16 %v249
  %v1200 = vunpack.c.h.b16 %v249
  %v1201 = vunpack.c.l.b16 %v250
  %v1202 = vunpack.c.h.b16 %v250
  %v1203 = vunpack.c.l.b16 %v251
  %v1204 = vunpack.c.h.b16 %v251
  %v1205 = vunpack.c.l.b16 %v252
  %v1206 = vunpack.c.h.b16 %v252
  %v1207 = vunpack.c.l.b16 %v253
  %v1208 = vunpack.c.h.b16 %v253
  %v1209 = vunpack.c.l.b16 %v254
  %v1210 = vunpack.c.h.b16 %v254
  %v1211 = vunpack.c.l.b16 %v255
  %v1212 = vunpack.c.h.b16 %v255
  %v1213 = vunpack.c.l.b16 %v256
  %v1214 = vunpack.c.h.b16 %v256
  %v1215 = vunpack.c.l.b16 %v257
  %v1216 = vunpack.c.h.b16 %v257
  %v1217 = vunpack.c.l.b16 %v258
  %v1218 = vunpack.c.h.b16 %v258
  %v1219 = vunpack.c.l.b16 %v259
  %v1220 = vunpack.c.h.b16 %v259
  %v1221 = vunpack.c.l.b16 %v260
  %v1222 = vunpack.c.h.b16 %v260
  %v1223 = vunpack.c.l.b16 %v261
  %v1224 = vunpack.c.h.b16 %v261
  %v1225 = vunpack.c.l.b16 %v262
  %v1226 = vunpack.c.h.b16 %v262
  %v1227 = vunpack.c.l.b16 %v263
  %v1228 = vunpack.c.h.b16 %v263
  %v1229 = vunpack.c.l.b16 %v264
  %v1230 = vunpack.c.h.b16 %v264
  %v1231 = vunpack.c.l.b16 %v265
  %v1232 = vunpack.c.h.b16 %v265
  %v1233 = vunpack.c.l.b16 %v266
  %v1234 = vunpack.c.h.b16 %v266
  %v1235 = vunpack.c.l.b16 %v267
  %v1236 = vunpack.c.h.b16 %v267
  %v1237 = vunpack.c.l.b16 %v268
  %v1238 = vunpack.c.h.b16 %v268
  %v1239 = vunpack.c.l.b16 %v269
  %v1240 = vunpack.c.h.b16 %v269
  %v1241 = vunpack.c.l.b16 %v270
  %v1242 = vunpack.c.h.b16 %v270
  %v1243 = vunpack.c.l.b16 %v271
  %v1244 = vunpack.c.h.b16 %v271
  %v1245 = vunpack.c.l.b16 %v272
  %v1246 = vunpack.c.h.b16 %v272
  %v1247 = vunpack.c.l.b16 %v273
  %v1248 = vunpack.c.h.b16 %v273
  %v1249 = vunpack.c.l.b16 %v274
  %v1250 = vunpack.c.h.b16 %v274
  %v1251 = vunpack.c.l.b16 %v275
  %v1252 = vunpack.c.h.b16 %v275
  %v1253 = vunpack.c.l.b16 %v276
  %v1254 = vunpack.c.h.b16 %v276
  %v1255 = vunpack.c.l.b16 %v277
  %v1256 = vunpack.c.h.b16 %v277
  %v1257 = vunpack.c.l.b16 %v278
  %v1258 = vunpack.c.h.b16 %v278
  %v1259 = vunpack.c.l.b16 %v279
  %v1260 = vunpack.c.h.b16 %v279
  %v1261 = vunpack.c.l.b16 %v280
  %v1262 = vunpack.c.h.b16 %v280
  %v1263 = vunpack.c.l.b16 %v281
  %v1264 = vunpack.c.h.b16 %v281
  %v1265 = vunpack.c.l.b16 %v282
  %v1266 = vunpack.c.h.b16 %v282
  %v1267 = vunpack.c.l.b16 %v283
  %v1268 = vunpack.c.h.b16 %v283
  %v1269 = vunpack.c.l.b16 %v284
  %v1270 = vunpack.c.h.b16 %v284
  %v1271 = vunpack.c.l.b16 %v285
  %v1272 = vunpack.c.h.b16 %v285
  %v1273 = vunpack.c.l.b16 %v286
  %v1274 = vunpack.c.h.b16 %v286
  %v1275 = vunpack.c.l.b16 %v287
  %v1276 = vunpack.c.h.b16 %v287
  %v1277 = vunpack.c.l.b16 %v288
  %v1278 = vunpack.c.h.b16 %v288
  %v1279 = vunpack.c.l.b16 %v289
  %v1280 = vunpack.c.h.b16 %v289
  %v1281 = vunpack.c.l.b16 %v290
  %v1282 = vunpack.c.h.b16 %v290
  %v1283 = vunpack.c.l.b16 %v291
  %v1284 = vunpack.c.h.b16 %v291
  %v1285 = vunpack.c.l.b16 %v292
  %v1286 = vunpack.c.h.b16 %v292
  %v1287 = vunpack.c.l.b16 %v293
  %v1288 = vunpack.c.h.b16 %v293
  %v1289 = vunpack.c.l.b16 %v294
  %v1290 = vunpack.c.h.b16 %v294
  %v1291 = vunpack.c.l.b16 %v295
  %v1292 = vunpack.c.h.b16 %v295
  %v1293 = vunpack.c.l.b16 %v296
  %v1294 = vunpack.c.h.b16 %v296
  %v1295 = vunpack.c.l.b16 %v297
  %v1296 = vunpack.c.h.b16 %v297
  %v1297 = vunpack.c.l.b16 %v298
  %v1298 = vunpack.c.h.b16 %v298
  %v1299 = vunpack.c.l.b16 %v299
  %v1300 = vunpack.c.h.b16 %v299
  %v1301 = vunpack.c.l.b16 %v300
  %v1302 = vunpack.c.h.b16 %v300
  %v1303 = vunpack.c.l.b16 %v301
  %v1304 = vunpack.c.h.b16 %v301
  %v1305 = vunpack.c.l.b16 %v302
  %v1306 = vunpack.c.h.b16 %v302
  %v1307 = vunpack.c.l.b16 %v303
  %v1308 = vunpack.c.h.b16 %v303
  %v1309 = vunpack.c.l.b16 %v304
  %v1310 = vunpack.c.h.b16 %v304
  %v1311 = vunpack.c.l.b16 %v305
  %v1312 = vunpack.c.h.b16 %v305
  %v1313 = vunpack.c.l.b16 %v306
  %v1314 = vunpack.c.h.b16 %v306
  %v1315 = vunpack.c.l.b16 %v307
  %v1316 = vunpack.c.h.b16 %v307
  %v1317 = vunpack.c.l.b16 %v308
  %v1318 = vunpack.c.h.b16 %v308
  %v1319 = vunpack.c.l.b16 %v309
  %v1320 = vunpack.c.h.b16 %v309
  %v1321 = vunpack.c.l.b16 %v310
  %v1322 = vunpack.c.h.b16 %v310
  %v1323 = vunpack.c.l.b16 %v311
  %v1324 = vunpack.c.h.b16 %v311
  %v1325 = vunpack.c.l.b16 %v312
  %v1326 = vunpack.c.h.b16 %v312
  %v1327 = vunpack.c.l.b16 %v313
  %v1328 = vunpack.c.h.b16 %v313
  %v1329 = vunpack.c.l.b16 %v314
  %v1330 = vunpack.c.h.b16 %v314
  %v1331 = vunpack.c.l.b16 %v315
  %v1332 = vunpack.c.h.b16 %v315
  %v1333 = vunpack.c.l.b16 %v316
  %v1334 = vunpack.c.h.b16 %v316
  %v1335 = vunpack.c.l.b16 %v317
  %v1336 = vunpack.c.h.b16 %v317
  %v1337 = vunpack.c.l.b16 %v318
  %v1338 = vunpack.c.h.b16 %v318
  %v1339 = vunpack.c.l.b16 %v319
  %v1340 = vunpack.c.h.b16 %v319
  %v1341 = vunpack.c.l.b16 %v320
  %v1342 = vunpack.c.h.b16 %v320
  %v1343 = vunpack.c.l.b16 %v321
  %v1344 = vunpack.c.h.b16 %v321
  %v1345 = vunpack.c.l.b16 %v322
  %v1346 = vunpack.c.h.b16 %v322
  %v1347 = vunpack.c.l.b16 %v323
  %v1348 = vunpack.c.h.b16 %v323
  %v1349 = vunpack.c.l.b16 %v324
  %v1350 = vunpack.c.h.b16 %v324
  %v1351 = vunpack.c.l.b16 %v325
  %v1352 = vunpack.c.h.b16 %v325
  %v1353 = vunpack.c.l.b16 %v326
  %v1354 = vunpack.c.h.b16 %v326
  %v1355 = vunpack.c.l.b16 %v327
  %v1356 = vunpack.c.h.b16 %v327
  %v1357 = vunpack.c.l.b16 %v328
  %v1358 = vunpack.c.h.b16 %v328
  %v1359 = vunpack.c.l.b16 %v329
  %v1360 = vunpack.c.h.b16 %v329
  %v1361 = vunpack.c.l.b16 %v330
  %v1362 = vunpack.c.h.b16 %v330
  %v1363 = vunpack.c.l.b16 %v331
  %v1364 = vunpack.c.h.b16 %v331
  %v1365 = vunpack.c.l.b16 %v332
  %v1366 = vunpack.c.h.b16 %v332
  %v1367 = vunpack.c.l.b16 %v333
  %v1368 = vunpack.c.h.b16 %v333
  %v1369 = vunpack.c.l.b16 %v334
  %v1370 = vunpack.c.h.b16 %v334
  %v1371 = vunpack.c.l.b16 %v335
  %v1372 = vunpack.c.h.b16 %v335
  %v1373 = vunpack.c.l.b16 %v336
  %v1374 = vunpack.c.h.b16 %v336
  %v1375 = vunpack.c.l.b16 %v337
  %v1376 = vunpack.c.h.b16 %v337
  %v1377 = vunpack.c.l.b16 %v338
  %v1378 = vunpack.c.h.b16 %v338
  %v1379 = vunpack.c.l.b16 %v339
  %v1380 = vunpack.c.h.b16 %v339
  %v1381 = vunpack.c.l.b16 %v340
  %v1382 = vunpack.c.h.b16 %v340
  %v1383 = vunpack.c.l.b16 %v341
  %v1384 = vunpack.c.h.b16 %v341
  %v1385 = vunpack.c.l.b16 %v342
  %v1386 = vunpack.c.h.b16 %v342
  %v1387 = vunpack.c.l.b16 %v343
  %v1388 = vunpack.c.h.b16 %v343
  %v1389 = vunpack.c.l.b16 %v344
  %v1390 = vunpack.c.h.b16 %v344
  %v1391 = vunpack.c.l.b16 %v345
  %v1392 = vunpack.c.h.b16 %v345
  %v1393 = vunpack.c.l.b16 %v346
  %v1394 = vunpack.c.h.b16 %v346
  %v1395 = vunpack.c.l.b16 %v347
  %v1396 = vunpack.c.h.b16 %v347
  %v1397 = vunpack.c.l.b16 %v348
  %v1398 = vunpack.c.h.b16 %v348
  %v1399 = vunpack.c.l.b16 %v349
  %v1400 = vunpack.c.h.b16 %v349
  %v1401 = vunpack.c.l.b16 %v350
  %v1402 = vunpack.c.h.b16 %v350
  %v1403 = vunpack.c.l.b16 %v351
  %v1404 = vunpack.c.h.b16 %v351
  %v1405 = vunpack.c.l.b16 %v352
  %v1406 = vunpack.c.h.b16 %v352
  %v1407 = vunpack.c.l.b16 %v353
  %v1408 = vunpack.c.h.b16 %v353
  %v1409 = vunpack.c.l.b16 %v354
  %v1410 = vunpack.c.h.b16 %v354
  %v1411 = vunpack.c.l.b16 %v355
  %v1412 = vunpack.c.h.b16 %v355
  %v1413 = vpack.c.b16 %v767, %v765
  %v1414 = vpack.c.b16 %v768, %v766
  %v1415 = vpack.c.b16 %v771, %v769
  %v1416 = vpack.c.b16 %v772, %v770
  %v1417 = vpack.c.b16 %v775, %v773
  %v1418 = vpack.c.b16 %v776, %v774
  %v1419 = vpack.c.b16 %v779, %v777
  %v1420 = vpack.c.b16 %v780, %v778
  %v1421 = vpack.c.b16 %v783, %v781
  %v1422 = vpack.c.b16 %v784, %v782
  %v1423 = vpack.c.b16 %v787, %v785
  %v1424 = vpack.c.b16 %v788, %v786
  %v1425 = vpack.c.b16 %v791, %v789
  %v1426 = vpack.c.b16 %v792, %v790
  %v1427 = vpack.c.b16 %v795, %v793
  %v1428 = vpack.c.b16 %v796, %v794
  %v1429 = vpack.c.b16 %v799, %v797
  %v1430 = vpack.c.b16 %v800, %v798
  %v1431 = vpack.c.b16 %v803, %v801
  %v1432 = vpack.c.b16 %v804, %v802
  %v1433 = vpack.c.b16 %v807, %v805
  %v1434 = vpack.c.b16 %v808, %v806
  %v1435 = vpack.c.b16 %v811, %v809
  %v1436 = vpack.c.b16 %v812, %v810
  %v1437 = vpack.c.b16 %v815, %v813
  %v1438 = vpack.c.b16 %v816, %v814
  %v1439 = vpack.c.b16 %v819, %v817
  %v1440 = vpack.c.b16 %v820, %v818
  %v1441 = vpack.c.b16 %v823, %v821
  %v1442 = vpack.c.b16 %v824, %v822
  %v1443 = vpack.c.b16 %v827, %v825
  %v1444 = vpack.c.b16 %v828, %v826
  %v1445 = vpack.c.b16 %v831, %v829
  %v1446 = vpack.c.b16 %v832, %v830
  %v1447 = vpack.c.b16 %v835, %v833
  %v1448 = vpack.c.b16 %v836, %v834
  %v1449 = vpack.c.b16 %v839, %v837
  %v1450 = vpack.c.b16 %v840, %v838
  %v1451 = vpack.c.b16 %v843, %v841
  %v1452 = vpack.c.b16 %v844, %v842
  %v1453 = vpack.c.b16 %v847, %v845
  %v1454 = vpack.c.b16 %v848, %v846
  %v1455 = vpack.c.b16 %v851, %v849
  %v1456 = vpack.c.b16 %v852, %v850
  %v1457 = vpack.c.b16 %v855, %v853
  %v1458 = vpack.c.b16 %v856, %v854
  %v1459 = vpack.c.b16 %v859, %v857
  %v1460 = vpack.c.b16 %v860, %v858
  %v1461 = vpack.c.b16 %v863, %v861
  %v1462 = vpack.c.b16 %v864, %v862
  %v1463 = vpack.c.b16 %v867, %v865
  %v1464 = vpack.c.b16 %v868, %v866
  %v1465 = vpack.c.b16 %v871, %v869
  %v1466 = vpack.c.b16 %v872, %v870
  %v1467 = vpack.c.b16 %v875, %v873
  %v1468 = vpack.c.b16 %v876, %v874
  %v1469 = vpack.c.b16 %v879, %v877
  %v1470 = vpack.c.b16 %v880, %v878
  %v1471 = vpack.c.b16 %v883, %v881
  %v1472 = vpack.c.b16 %v884, %v882
  %v1473 = vpack.c.b16 %v887, %v885
  %v1474 = vpack.c.b16 %v888, %v886
  %v1475 = vpack.c.b16 %v891, %v889
  %v1476 = vpack.c.b16 %v892, %v890
  %v1477 = vpack.c.b16 %v895, %v893
  %v1478 = vpack.c.b16 %v896, %v894
  %v1479 = vpack.c.b16 %v899, %v897
  %v1480 = vpack.c.b16 %v900, %v898
  %v1481 = vpack.c.b16 %v903, %v901
  %v1482 = vpack.c.b16 %v904, %v902
  %v1483 = vpack.c.b16 %v907, %v905
  %v1484 = vpack.c.b16 %v908, %v906
  %v1485 = vpack.c.b16 %v911, %v909
  %v1486 = vpack.c.b16 %v912, %v910
  %v1487 = vpack.c.b16 %v915, %v913
  %v1488 = vpack.c.b16 %v916, %v914
  %v1489 = vpack.c.b16 %v919, %v917
  %v1490 = vpack.c.b16 %v920, %v918
  %v1491 = vpack.c.b16 %v923, %v921
  %v1492 = vpack.c.b16 %v924, %v922
  %v1493 = vpack.c.b16 %v927, %v925
  %v1494 = vpack.c.b16 %v928, %v926
  %v1495 = vpack.c.b16 %v931, %v929
  %v1496 = vpack.c.b16 %v932, %v930
  %v1497 = vpack.c.b16 %v935, %v933
  %v1498 = vpack.c.b16 %v936, %v934
  %v1499 = vpack.c.b16 %v939, %v937
  %v1500 = vpack.c.b16 %v940, %v938
  %v1501 = vpack.c.b16 %v943, %v941
  %v1502 = vpack.c.b16 %v944, %v942
  %v1503 = vpack.c.b16 %v947, %v945
  %v1504 = vpack.c.b16 %v948, %v946
  %v1505 = vpack.c.b16 %v951, %v949
  %v1506 = vpack.c.b16 %v952, %v950
  %v1507 = vpack.c.b16 %v955, %v953
  %v1508 = vpack.c.b16 %v956, %v954
  %v1509 = vpack.c.b16 %v959, %v957
  %v1510 = vpack.c.b16 %v960, %v958
  %v1511 = vpack.c.b16 %v963, %v961
  %v1512 = vpack.c.b16 %v964, %v962
  %v1513 = vpack.c.b16 %v967, %v965
  %v1514 = vpack.c.b16 %v968, %v966
  %v1515 = vpack.c.b16 %v971, %v969
  %v1516 = vpack.c.b16 %v972, %v970
  %v1517 = vpack.c.b16 %v975, %v973
  %v1518 = vpack.c.b16 %v976, %v974
  %v1519 = vpack.c.b16 %v979, %v977
  %v1520 = vpack.c.b16 %v980, %v978
  %v1521 = vpack.c.b16 %v983, %v981
  %v1522 = vpack.c.b16 %v984, %v982
  %v1523 = vpack.c.b16 %v987, %v985
  %v1524 = vpack.c.b16 %v988, %v986
  %v1525 = vpack.c.b16 %v991, %v989
  %v1526 = vpack.c.b16 %v992, %v990
  %v1527 = vpack.c.b16 %v995, %v993
  %v1528 = vpack.c.b16 %v996, %v994
  %v1529 = vpack.c.b16 %v999, %v997
  %v1530 = vpack.c.b16 %v1000, %v998
  %v1531 = vpack.c.b16 %v1003, %v1001
  %v1532 = vpack.c.b16 %v1004, %v1002
  %v1533 = vpack.c.b16 %v1007, %v1005
  %v1534 = vpack.c.b16 %v1008, %v1006
  %v1535 = vpack.c.b16 %v1011, %v1009
  %v1536 = vpack.c.b16 %v1012, %v1010
  %v1537 = vpack.c.b16 %v1015, %v1013
  %v1538 = vpack.c.b16 %v1016, %v1014
  %v1539 = vpack.c.b16 %v1019, %v1017
  %v1540 = vpack.c.b16 %v1020, %v1018
  %v1541 = vpack.c.b16 %v1023, %v1021
  %v1542 = vpack.c.b16 %v1024, %v1022
  %v1543 = vpack.c.b16 %v1027, %v1025
  %v1544 = vpack.c.b16 %v1028, %v1026
  %v1545 = vpack.c.b16 %v1031, %v1029
  %v1546 = vpack.c.b16 %v1032, %v1030
  %v1547 = vpack.c.b16 %v1035, %v1033
  %v1548 = vpack.c.b16 %v1036, %v1034
  %v1549 = vpack.c.b16 %v1039, %v1037
  %v1550 = vpack.c.b16 %v1040, %v1038
  %v1551 = vpack.c.b16 %v1043, %v1041
  %v1552 = vpack.c.b16 %v1044, %v1042
  %v1553 = vpack.c.b16 %v1047, %v1045
  %v1554 = vpack.c.b16 %v1048, %v1046
  %v1555 = vpack.c.b16 %v1051, %v1049
  %v1556 = vpack.c.b16 %v1052, %v1050
  %v1557 = vpack.c.b16 %v1055, %v1053
  %v1558 = vpack.c.b16 %v1056, %v1054
  %v1559 = vpack.c.b16 %v1059, %v1057
  %v1560 = vpack.c.b16 %v1060, %v1058
  %v1561 = vpack.c.b16 %v1063, %v1061
  %v1562 = vpack.c.b16 %v1064, %v1062
  %v1563 = vpack.c.b16 %v1067, %v1065
  %v1564 = vpack.c.b16 %v1068, %v1066
  %v1565 = vpack.c.b16 %v1071, %v1069
  %v1566 = vpack.c.b16 %v1072, %v1070
  %v1567 = vpack.c.b16 %v1075, %v1073
  %v1568 = vpack.c.b16 %v1076, %v1074
  %v1569 = vpack.c.b16 %v1079, %v1077
  %v1570 = vpack.c.b16 %v1080, %v1078
  %v1571 = vpack.c.b16 %v1083, %v1081
  %v1572 = vpack.c.b16 %v1084, %v1082
  %v1573 = vpack.c.b16 %v1087, %v1085
  %v1574 = vpack.c.b16 %v1088, %v1086
  %v1575 = vpack.c.b16 %v1091, %v1089
  %v1576 = vpack.c.b16 %v1092, %v1090
  %v1577 = vpack.c.b16 %v1095, %v1093
  %v1578 = vpack.c.b16 %v1096, %v1094
  %v1579 = vpack.c.b16 %v1099, %v1097
  %v1580 = vpack.c.b16 %v1100, %v1098
  %v1581 = vpack.c.b16 %v1103, %v1101
  %v1582 = vpack.c.b16 %v1104, %v1102
  %v1583 = vpack.c.b16 %v1107, %v1105
  %v1584 = vpack.c.b16 %v1108, %v1106
  %v1585 = vpack.c.b16 %v1111, %v1109
  %v1586 = vpack.c.b16 %v1112, %v1110
  %v1587 = vpack.c.b16 %v1115, %v1113
  %v1588 = vpack.c.b16 %v1116, %v1114
  %v1589 = vpack.c.b16 %v1119, %v1117
  %v1590 = vpack.c.b16 %v1120, %v1118
  %v1591 = vpack.c.b16 %v1123, %v1121
  %v1592 = vpack.c.b16 %v1124, %v1122
  %v1593 = vpack.c.b16 %v1127, %v1125
  %v1594 = vpack.c.b16 %v1128, %v1126
  %v1595 = vpack.c.b16 %v1131, %v1129
  %v1596 = vpack.c.b16 %v1132, %v1130
  %v1597 = vpack.c.b16 %v1135, %v1133
  %v1598 = vpack.c.b16 %v1136, %v1134
  %v1599 = vpack.c.b16 %v1139, %v1137
  %v1600 = vpack.c.b16 %v1140, %v1138
  %v1601 = vpack.c.b16 %v1143, %v1141
  %v1602 = vpack.c.b16 %v1144, %v1142
  %v1603 = vpack.c.b16 %v1147, %v1145
  %v1604 = vpack.c.b16 %v1148, %v1146
  %v1605 = vpack.c.b16 %v1151, %v1149
  %v1606 = vpack.c.b16 %v1152, %v1150
  %v1607 = vpack.c.b16 %v1155, %v1153
  %v1608 = vpack.c.b16 %v1156, %v1154
  %v1609 = vpack.c.b16 %v1159, %v1157
  %v1610 = vpack.c.b16 %v1160, %v1158
  %v1611 = vpack.c.b16 %v1163, %v1161
  %v1612 = vpack.c.b16 %v1164, %v1162
  %v1613 = vpack.c.b16 %v1167, %v1165
  %v1614 = vpack.c.b16 %v1168, %v1166
  %v1615 = vpack.c.b16 %v1171, %v1169
  %v1616 = vpack.c.b16 %v1172, %v1170
  %v1617 = vpack.c.b16 %v1175, %v1173
  %v1618 = vpack.c.b16 %v1176, %v1174
  %v1619 = vpack.c.b16 %v1179, %v1177
  %v1620 = vpack.c.b16 %v1180, %v1178
  %v1621 = vpack.c.b16 %v1183, %v1181
  %v1622 = vpack.c.b16 %v1184, %v1182
  %v1623 = vpack.c.b16 %v1187, %v1185
  %v1624 = vpack.c.b16 %v1188, %v1186
  %v1625 = vpack.c.b16 %v1191, %v1189
  %v1626 = vpack.c.b16 %v1192, %v1190
  %v1627 = vpack.c.b16 %v1195, %v1193
  %v1628 = vpack.c.b16 %v1196, %v1194
  %v1629 = vpack.c.b16 %v1199, %v1197
  %v1630 = vpack.c.b16 %v1200, %v1198
  %v1631 = vpack.c.b16 %v1203, %v1201
  %v1632 = vpack.c.b16 %v1204, %v1202
  %v1633 = vpack.c.b16 %v1207, %v1205
  %v1634 = vpack.c.b16 %v1208, %v1206
  %v1635 = vpack.c.b16 %v1211, %v1209
  %v1636 = vpack.c.b16 %v1212, %v1210
  %v1637 = vpack.c.b16 %v1215, %v1213
  %v1638 = vpack.c.b16 %v1216, %v1214
  %v1639 = vpack.c.b16 %v1219, %v1217
  %v1640 = vpack.c.b16 %v1220, %v1218
  %v1641 = vpack.c.b16 %v1223, %v1221
  %v1642 = vpack.c.b16 %v1224, %v1222
  %v1643 = vpack.c.b16 %v1227, %v1225
  %v1644 = vpack.c.b16 %v1228, %v1226
  %v1645 = vpack.c.b16 %v1231, %v1229
  %v1646 = vpack.c.b16 %v1232, %v1230
  %v1647 = vpack.c.b16 %v1235, %v1233
  %v1648 = vpack.c.b16 %v1236, %v1234
  %v1649 = vpack.c.b16 %v1239, %v1237
  %v1650 = vpack.c.b16 %v1240, %v1238
  %v1651 = vpack.c.b16 %v1243, %v1241
  %v1652 = vpack.c.b16 %v1244, %v1242
  %v1653 = vpack.c.b16 %v1247, %v1245
  %v1654 = vpack.c.b16 %v1248, %v1246
  %v1655 = vpack.c.b16 %v1251, %v1249
  %v1656 = vpack.c.b16 %v1252, %v1250
  %v1657 = vpack.c.b16 %v1255, %v1253
  %v1658 = vpack.c.b16 %v1256, %v1254
  %v1659 = vpack.c.b16 %v1259, %v1257
  %v1660 = vpack.c.b16 %v1260, %v1258
  %v1661 = vpack.c.b16 %v1263, %v1261
  %v1662 = vpack.c.b16 %v1264, %v1262
  %v1663 = vpack.c.b16 %v1267, %v1265
  %v1664 = vpack.c.b16 %v1268, %v1266
  %v1665 = vpack.c.b16 %v1271, %v1269
  %v1666 = vpack.c.b16 %v1272, %v1270
  %v1667 = vpack.c.b16 %v1275, %v1273
  %v1668 = vpack.c.b16 %v1276, %v1274
  %v1669 = vpack.c.b16 %v1279, %v1277
  %v1670 = vpack.c.b16 %v1280, %v1278
  %v1671 = vpack.c.b16 %v1283, %v1281
  %v1672 = vpack.c.b16 %v1284, %v1282
  %v1673 = vpack.c.b16 %v1287, %v1285
  %v1674 = vpack.c.b16 %v1288, %v1286
  %v1675 = vpack.c.b16 %v1291, %v1289
  %v1676 = vpack.c.b16 %v1292, %v1290
  %v1677 = vpack.c.b16 %v1295, %v1293
  %v1678 = vpack.c.b16 %v1296, %v1294
  %v1679 = vpack.c.b16 %v1299, %v1297
  %v1680 = vpack.c.b16 %v1300, %v1298
  %v1681 = vpack.c.b16 %v1303, %v1301
  %v1682 = vpack.c.b16 %v1304, %v1302
  %v1683 = vpack.c.b16 %v1307, %v1305
  %v1684 = vpack.c.b16 %v1308, %v1306
  %v1685 = vpack.c.b16 %v1311, %v1309
  %v1686 = vpack.c.b16 %v1312, %v1310
  %v1687 = vpack.c.b16 %v1315, %v1313
  %v1688 = vpack.c.b16 %v1316, %v1314
  %v1689 = vpack.c.b16 %v1319, %v1317
  %v1690 = vpack.c.b16 %v1320, %v1318
  %v1691 = vpack.c.b16 %v1323, %v1321
  %v1692 = vpack.c.b16 %v1324, %v1322
  %v1693 = vpack.c.b16 %v1327, %v1325
  %v1694 = vpack.c.b16 %v1328, %v1326
  %v1695 = vpack.c.b16 %v1331, %v1329
  %v1696 = vpack.c.b16 %v1332, %v1330
  %v1697 = vpack.c.b16 %v1335, %v1333
  %v1698 = vpack.c.b16 %v1336, %v1334
  %v1699 = vpack.c.b16 %v1339, %v1337
  %v1700 = vpack.c.b16 %v1340, %v1338
  %v1701 = vpack.c.b16 %v1343, %v1341
  %v1702 = vpack.c.b16 %v1344, %v1342
  %v1703 = vpack.c.b16 %v1347, %v1345
  %v1704 = vpack.c.b16 %v1348, %v1346
  %v1705 = vpack.c.b16 %v1351, %v1349
  %v1706 = vpack.c.b16 %v1352, %v1350
  %v1707 = vpack.c.b16 %v1355, %v1353
  %v1708 = vpack.c.b16 %v1356, %v1354
  %v1709 = vpack.c.b16 %v1359, %v1357
  %v1710 = vpack.c.b16 %v1360, %v1358
  %v1711 = vpack.c.b16 %v1363, %v1361
  %v1712 = vpack.c.b16 %v1364, %v1362
  %v1713 = vpack.c.b16 %v1367, %v1365
  %v1714 = vpack.c.b16 %v1368, %v1366
  %v1715 = vpack.c.b16 %v1371, %v1369
  %v1716 = vpack.c.b16 %v1372, %v1370
  %v1717 = vpack.c.b16 %v1375, %v1373
  %v1718 = vpack.c.b16 %v1376, %v1374
  %v1719 = vpack.c.b16 %v1379, %v1377
  %v1720 = vpack.c.b16 %v1380, %v1378
  %v1721 = vpack.c.b16 %v1383, %v1381
  %v1722 = vpack.c.b16 %v1384, %v1382
  %v1723 = vpack.c.b16 %v1387, %v1385
  %v1724 = vpack.c.b16 %v1388, %v1386
  %v1725 = vpack.c.b16 %v1391, %v1389
  %v1726 = vpack.c.b16 %v1392, %v1390
  %v1727 = vpack.c.b16 %v1395, %v1393
  %v1728 = vpack.c.b16 %v1396, %v1394
  %v1729 = vpack.c.b16 %v1399, %v1397
  %v1730 = vpack.c.b16 %v1400, %v1398
  %v1731 = vpack.c.b16 %v1403, %v1401
  %v1732 = vpack.c.b16 %v1404, %v1402
  %v1733 = vpack.c.b16 %v1407, %v1405
  %v1734 = vpack.c.b16 %v1408, %v1406
  %v1735 = vpack.c.b16 %v1411, %v1409
  %v1736 = vpack.c.b16 %v1412, %v1410
  %vm2061 = vcmask 261120
  %v2063 = vsel %vm2061, %v420, 0
  %2065 = vmatprep.subr.bf16.mxu0 %v1414
  %2066 = vmatpush1.bf16.msra.mxu0 %v1413
  %2067 = vmatprep.subr.bf16.mxu0 %v1416
  %2068 = vmatpush1.bf16.msra.mxu0 %v1415
  %2069 = vmatprep.subr.bf16.mxu0 %v1418
  %2070 = vmatpush1.bf16.msra.mxu0 %v1417
  %2071 = vmatprep.subr.bf16.mxu0 %v1420
  %2072 = vmatpush1.bf16.msra.mxu0 %v1419
  %2073 = vmatprep.subr.bf16.mxu0 %v1422
  %2074 = vmatpush1.bf16.msra.mxu0 %v1421
  %2075 = vmatprep.subr.bf16.mxu0 %v1424
  %2076 = vmatpush1.bf16.msra.mxu0 %v1423
  %2077 = vmatprep.subr.bf16.mxu0 %v1426
  %2078 = vmatpush1.bf16.msra.mxu0 %v1425
  %2079 = vmatprep.subr.bf16.mxu0 %v1428
  %2080 = vmatpush1.bf16.msra.mxu0 %v1427
  %2081 = vmatprep.subr.bf16.mxu0 %v1430
  %2082 = vmatpush1.bf16.msra.mxu0 %v1429
  %2083 = vmatprep.subr.bf16.mxu0 %v1432
  %2084 = vmatpush1.bf16.msra.mxu0 %v1431
  %2085 = vmatprep.subr.bf16.mxu0 %v1434
  %2086 = vmatpush1.bf16.msra.mxu0 %v1433
  %2087 = vmatprep.subr.bf16.mxu0 %v1436
  %2088 = vmatpush1.bf16.msra.mxu0 %v1435
  %2089 = vmatprep.subr.bf16.mxu0 %v1438
  %2090 = vmatpush1.bf16.msra.mxu0 %v1437
  %2091 = vmatprep.subr.bf16.mxu0 %v1440
  %2092 = vmatpush1.bf16.msra.mxu0 %v1439
  %2093 = vmatprep.subr.bf16.mxu0 %v1442
  %2094 = vmatpush1.bf16.msra.mxu0 %v1441
  %2095 = vmatprep.subr.bf16.mxu0 %v1444
  %2096 = vmatpush1.bf16.msra.mxu0 %v1443
  %2097 = vmatprep.mubr.bf16.mxu0 %v401
  %2098 = vmatmul.mubr.bf16.gmra.mrb[0].mxu0 %v400
  %v2099 = vpop.f32.mrb[0].mxu0
  %v2100 = vadd.f32 %v361, %v2099
  %v2101 = vpop.f32.mrb[0].mxu0
  %v2102 = vadd.f32 %v365, %v2101
  %v2103 = vpop.f32.mrb[0].mxu0
  %v2104 = vpop.f32.mrb[0].mxu0
  %2105 = vdwg.mxu0
  %2106 = vmatprep.subr.bf16.mxu0 %v1446
  %2107 = vmatpush1.bf16.msra.mxu0 %v1445
  %2108 = vmatprep.subr.bf16.mxu0 %v1448
  %2109 = vmatpush1.bf16.msra.mxu0 %v1447
  %2110 = vmatprep.subr.bf16.mxu0 %v1450
  %2111 = vmatpush1.bf16.msra.mxu0 %v1449
  %2112 = vmatprep.subr.bf16.mxu0 %v1452
  %2113 = vmatpush1.bf16.msra.mxu0 %v1451
  %2114 = vmatprep.subr.bf16.mxu0 %v1454
  %2115 = vmatpush1.bf16.msra.mxu0 %v1453
  %2116 = vmatprep.subr.bf16.mxu0 %v1456
  %2117 = vmatpush1.bf16.msra.mxu0 %v1455
  %2118 = vmatprep.subr.bf16.mxu0 %v1458
  %2119 = vmatpush1.bf16.msra.mxu0 %v1457
  %2120 = vmatprep.subr.bf16.mxu0 %v1460
  %2121 = vmatpush1.bf16.msra.mxu0 %v1459
  %2122 = vmatprep.subr.bf16.mxu0 %v1462
  %2123 = vmatpush1.bf16.msra.mxu0 %v1461
  %2124 = vmatprep.subr.bf16.mxu0 %v1464
  %2125 = vmatpush1.bf16.msra.mxu0 %v1463
  %2126 = vmatprep.subr.bf16.mxu0 %v1466
  %2127 = vmatpush1.bf16.msra.mxu0 %v1465
  %2128 = vmatprep.subr.bf16.mxu0 %v1468
  %2129 = vmatpush1.bf16.msra.mxu0 %v1467
  %2130 = vmatprep.subr.bf16.mxu0 %v1470
  %2131 = vmatpush1.bf16.msra.mxu0 %v1469
  %2132 = vmatprep.subr.bf16.mxu0 %v1472
  %2133 = vmatpush1.bf16.msra.mxu0 %v1471
  %2134 = vmatprep.subr.bf16.mxu0 %v1474
  %2135 = vmatpush1.bf16.msra.mxu0 %v1473
  %2136 = vmatprep.subr.bf16.mxu0 %v1476
  %2137 = vmatpush1.bf16.msra.mxu0 %v1475
  %2138 = vmatprep.mubr.bf16.mxu0 %v403
  %2139 = vmatmul.mubr.bf16.gmra.mrb[0].mxu0 %v402
  %v2140 = vpop.f32.mrb[0].mxu0
  %v2141 = vadd.f32 %v2100, %v2140
  %v2142 = vpop.f32.mrb[0].mxu0
  %v2143 = vadd.f32 %v2102, %v2142
  %v2144 = vpop.f32.mrb[0].mxu0
  %v2145 = vpop.f32.mrb[0].mxu0
  %2146 = vdwg.mxu0
  %2147 = vmatprep.subr.bf16.mxu0 %v1478
  %2148 = vmatpush1.bf16.msra.mxu0 %v1477
  %2149 = vmatprep.subr.bf16.mxu0 %v1480
  %2150 = vmatpush1.bf16.msra.mxu0 %v1479
  %2151 = vmatprep.subr.bf16.mxu0 %v1482
  %2152 = vmatpush1.bf16.msra.mxu0 %v1481
  %2153 = vmatprep.subr.bf16.mxu0 %v1484
  %2154 = vmatpush1.bf16.msra.mxu0 %v1483
  %2155 = vmatprep.subr.bf16.mxu0 %v1486
  %2156 = vmatpush1.bf16.msra.mxu0 %v1485
  %2157 = vmatprep.subr.bf16.mxu0 %v1488
  %2158 = vmatpush1.bf16.msra.mxu0 %v1487
  %2159 = vmatprep.subr.bf16.mxu0 %v1490
  %2160 = vmatpush1.bf16.msra.mxu0 %v1489
  %2161 = vmatprep.subr.bf16.mxu0 %v1492
  %2162 = vmatpush1.bf16.msra.mxu0 %v1491
  %2163 = vmatprep.subr.bf16.mxu0 %v1494
  %2164 = vmatpush1.bf16.msra.mxu0 %v1493
  %2165 = vmatprep.subr.bf16.mxu0 %v1496
  %2166 = vmatpush1.bf16.msra.mxu0 %v1495
  %2167 = vmatprep.subr.bf16.mxu0 %v1498
  %2168 = vmatpush1.bf16.msra.mxu0 %v1497
  %2169 = vmatprep.subr.bf16.mxu0 %v1500
  %2170 = vmatpush1.bf16.msra.mxu0 %v1499
  %2171 = vmatprep.subr.bf16.mxu0 %v1502
  %2172 = vmatpush1.bf16.msra.mxu0 %v1501
  %2173 = vmatprep.subr.bf16.mxu0 %v1504
  %2174 = vmatpush1.bf16.msra.mxu0 %v1503
  %2175 = vmatprep.subr.bf16.mxu0 %v1506
  %2176 = vmatpush1.bf16.msra.mxu0 %v1505
  %2177 = vmatprep.subr.bf16.mxu0 %v1508
  %2178 = vmatpush1.bf16.msra.mxu0 %v1507
  %2179 = vmatprep.mubr.bf16.mxu0 %v405
  %2180 = vmatmul.mubr.bf16.gmra.mrb[0].mxu0 %v404
  %v2181 = vpop.f32.mrb[0].mxu0
  %v2182 = vadd.f32 %v2141, %v2181
  %v2183 = vpop.f32.mrb[0].mxu0
  %v2184 = vadd.f32 %v2143, %v2183
  %v2185 = vpop.f32.mrb[0].mxu0
  %v2186 = vpop.f32.mrb[0].mxu0
  %2187 = vdwg.mxu0
  %2188 = vmatprep.subr.bf16.mxu0 %v1510
  %2189 = vmatpush1.bf16.msra.mxu0 %v1509
  %2190 = vmatprep.subr.bf16.mxu0 %v1512
  %2191 = vmatpush1.bf16.msra.mxu0 %v1511
  %2192 = vmatprep.subr.bf16.mxu0 %v1514
  %2193 = vmatpush1.bf16.msra.mxu0 %v1513
  %2194 = vmatprep.subr.bf16.mxu0 %v1516
  %2195 = vmatpush1.bf16.msra.mxu0 %v1515
  %2196 = vmatprep.subr.bf16.mxu0 %v1518
  %2197 = vmatpush1.bf16.msra.mxu0 %v1517
  %2198 = vmatprep.subr.bf16.mxu0 %v1520
  %2199 = vmatpush1.bf16.msra.mxu0 %v1519
  %2200 = vmatprep.subr.bf16.mxu0 %v1522
  %2201 = vmatpush1.bf16.msra.mxu0 %v1521
  %2202 = vmatprep.subr.bf16.mxu0 %v1524
  %2203 = vmatpush1.bf16.msra.mxu0 %v1523
  %2204 = vmatprep.subr.bf16.mxu0 %v1526
  %2205 = vmatpush1.bf16.msra.mxu0 %v1525
  %2206 = vmatprep.subr.bf16.mxu0 %v1528
  %2207 = vmatpush1.bf16.msra.mxu0 %v1527
  %2208 = vmatprep.subr.bf16.mxu0 %v1530
  %2209 = vmatpush1.bf16.msra.mxu0 %v1529
  %2210 = vmatprep.subr.bf16.mxu0 %v1532
  %2211 = vmatpush1.bf16.msra.mxu0 %v1531
  %2212 = vmatprep.subr.bf16.mxu0 %v1534
  %2213 = vmatpush1.bf16.msra.mxu0 %v1533
  %2214 = vmatprep.subr.bf16.mxu0 %v1536
  %2215 = vmatpush1.bf16.msra.mxu0 %v1535
  %2216 = vmatprep.subr.bf16.mxu0 %v1538
  %2217 = vmatpush1.bf16.msra.mxu0 %v1537
  %2218 = vmatprep.subr.bf16.mxu0 %v1540
  %2219 = vmatpush1.bf16.msra.mxu0 %v1539
  %2220 = vmatprep.mubr.bf16.mxu0 %v407
  %2221 = vmatmul.mubr.bf16.gmra.mrb[0].mxu0 %v406
  %v2222 = vpop.f32.mrb[0].mxu0
  %v2223 = vadd.f32 %v2182, %v2222
  %v2224 = vpop.f32.mrb[0].mxu0
  %v2225 = vadd.f32 %v2184, %v2224
  %v2226 = vpop.f32.mrb[0].mxu0
  %v2227 = vpop.f32.mrb[0].mxu0
  %2228 = vdwg.mxu0
  %2229 = vmatprep.subr.bf16.mxu0 %v1542
  %2230 = vmatpush1.bf16.msra.mxu0 %v1541
  %2231 = vmatprep.subr.bf16.mxu0 %v1544
  %2232 = vmatpush1.bf16.msra.mxu0 %v1543
  %2233 = vmatprep.subr.bf16.mxu0 %v1546
  %2234 = vmatpush1.bf16.msra.mxu0 %v1545
  %2235 = vmatprep.subr.bf16.mxu0 %v1548
  %2236 = vmatpush1.bf16.msra.mxu0 %v1547
  %2237 = vmatprep.subr.bf16.mxu0 %v1550
  %2238 = vmatpush1.bf16.msra.mxu0 %v1549
  %2239 = vmatprep.subr.bf16.mxu0 %v1552
  %2240 = vmatpush1.bf16.msra.mxu0 %v1551
  %2241 = vmatprep.subr.bf16.mxu0 %v1554
  %2242 = vmatpush1.bf16.msra.mxu0 %v1553
  %2243 = vmatprep.subr.bf16.mxu0 %v1556
  %2244 = vmatpush1.bf16.msra.mxu0 %v1555
  %2245 = vmatprep.subr.bf16.mxu0 %v1558
  %2246 = vmatpush1.bf16.msra.mxu0 %v1557
  %2247 = vmatprep.subr.bf16.mxu0 %v1560
  %2248 = vmatpush1.bf16.msra.mxu0 %v1559
  %2249 = vmatprep.subr.bf16.mxu0 %v1562
  %2250 = vmatpush1.bf16.msra.mxu0 %v1561
  %2251 = vmatprep.subr.bf16.mxu0 %v1564
  %2252 = vmatpush1.bf16.msra.mxu0 %v1563
  %2253 = vmatprep.subr.bf16.mxu0 %v1566
  %2254 = vmatpush1.bf16.msra.mxu0 %v1565
  %2255 = vmatprep.subr.bf16.mxu0 %v1568
  %2256 = vmatpush1.bf16.msra.mxu0 %v1567
  %2257 = vmatprep.subr.bf16.mxu0 %v1570
  %2258 = vmatpush1.bf16.msra.mxu0 %v1569
  %2259 = vmatprep.subr.bf16.mxu0 %v1572
  %2260 = vmatpush1.bf16.msra.mxu0 %v1571
  %2261 = vmatprep.mubr.bf16.mxu0 %v409
  %2262 = vmatmul.mubr.bf16.gmra.mrb[0].mxu0 %v408
  %v2263 = vpop.f32.mrb[0].mxu0
  %v2264 = vadd.f32 %v2223, %v2263
  %v2265 = vpop.f32.mrb[0].mxu0
  %v2266 = vadd.f32 %v2225, %v2265
  %v2267 = vpop.f32.mrb[0].mxu0
  %v2268 = vpop.f32.mrb[0].mxu0
  %2269 = vdwg.mxu0
  %2270 = vmatprep.subr.bf16.mxu0 %v1574
  %2271 = vmatpush1.bf16.msra.mxu0 %v1573
  %2272 = vmatprep.subr.bf16.mxu0 %v1576
  %2273 = vmatpush1.bf16.msra.mxu0 %v1575
  %2274 = vmatprep.subr.bf16.mxu0 %v1578
  %2275 = vmatpush1.bf16.msra.mxu0 %v1577
  %2276 = vmatprep.subr.bf16.mxu0 %v1580
  %2277 = vmatpush1.bf16.msra.mxu0 %v1579
  %2278 = vmatprep.subr.bf16.mxu0 %v1582
  %2279 = vmatpush1.bf16.msra.mxu0 %v1581
  %2280 = vmatprep.subr.bf16.mxu0 %v1584
  %2281 = vmatpush1.bf16.msra.mxu0 %v1583
  %2282 = vmatprep.subr.bf16.mxu0 %v1586
  %2283 = vmatpush1.bf16.msra.mxu0 %v1585
  %2284 = vmatprep.subr.bf16.mxu0 %v1588
  %2285 = vmatpush1.bf16.msra.mxu0 %v1587
  %2286 = vmatprep.subr.bf16.mxu0 %v1590
  %2287 = vmatpush1.bf16.msra.mxu0 %v1589
  %2288 = vmatprep.subr.bf16.mxu0 %v1592
  %2289 = vmatpush1.bf16.msra.mxu0 %v1591
  %2290 = vmatprep.subr.bf16.mxu0 %v1594
  %2291 = vmatpush1.bf16.msra.mxu0 %v1593
  %2292 = vmatprep.subr.bf16.mxu0 %v1596
  %2293 = vmatpush1.bf16.msra.mxu0 %v1595
  %2294 = vmatprep.subr.bf16.mxu0 %v1598
  %2295 = vmatpush1.bf16.msra.mxu0 %v1597
  %2296 = vmatprep.subr.bf16.mxu0 %v1600
  %2297 = vmatpush1.bf16.msra.mxu0 %v1599
  %2298 = vmatprep.subr.bf16.mxu0 %v1602
  %2299 = vmatpush1.bf16.msra.mxu0 %v1601
  %2300 = vmatprep.subr.bf16.mxu0 %v1604
  %2301 = vmatpush1.bf16.msra.mxu0 %v1603
  %2302 = vmatprep.mubr.bf16.mxu0 %v411
  %2303 = vmatmul.mubr.bf16.gmra.mrb[0].mxu0 %v410
  %v2304 = vpop.f32.mrb[0].mxu0
  %v2305 = vadd.f32 %v2264, %v2304
  %v2306 = vpop.f32.mrb[0].mxu0
  %v2307 = vadd.f32 %v2266, %v2306
  %v2308 = vpop.f32.mrb[0].mxu0
  %v2309 = vpop.f32.mrb[0].mxu0
  %2310 = vdwg.mxu0
  %2311 = vmatprep.subr.bf16.mxu0 %v1606
  %2312 = vmatpush1.bf16.msra.mxu0 %v1605
  %2313 = vmatprep.subr.bf16.mxu0 %v1608
  %2314 = vmatpush1.bf16.msra.mxu0 %v1607
  %2315 = vmatprep.subr.bf16.mxu0 %v1610
  %2316 = vmatpush1.bf16.msra.mxu0 %v1609
  %2317 = vmatprep.subr.bf16.mxu0 %v1612
  %2318 = vmatpush1.bf16.msra.mxu0 %v1611
  %2319 = vmatprep.subr.bf16.mxu0 %v1614
  %2320 = vmatpush1.bf16.msra.mxu0 %v1613
  %2321 = vmatprep.subr.bf16.mxu0 %v1616
  %2322 = vmatpush1.bf16.msra.mxu0 %v1615
  %2323 = vmatprep.subr.bf16.mxu0 %v1618
  %2324 = vmatpush1.bf16.msra.mxu0 %v1617
  %2325 = vmatprep.subr.bf16.mxu0 %v1620
  %2326 = vmatpush1.bf16.msra.mxu0 %v1619
  %2327 = vmatprep.subr.bf16.mxu0 %v1622
  %2328 = vmatpush1.bf16.msra.mxu0 %v1621
  %2329 = vmatprep.subr.bf16.mxu0 %v1624
  %2330 = vmatpush1.bf16.msra.mxu0 %v1623
  %2331 = vmatprep.subr.bf16.mxu0 %v1626
  %2332 = vmatpush1.bf16.msra.mxu0 %v1625
  %2333 = vmatprep.subr.bf16.mxu0 %v1628
  %2334 = vmatpush1.bf16.msra.mxu0 %v1627
  %2335 = vmatprep.subr.bf16.mxu0 %v1630
  %2336 = vmatpush1.bf16.msra.mxu0 %v1629
  %2337 = vmatprep.subr.bf16.mxu0 %v1632
  %2338 = vmatpush1.bf16.msra.mxu0 %v1631
  %2339 = vmatprep.subr.bf16.mxu0 %v1634
  %2340 = vmatpush1.bf16.msra.mxu0 %v1633
  %2341 = vmatprep.subr.bf16.mxu0 %v1636
  %2342 = vmatpush1.bf16.msra.mxu0 %v1635
  %2343 = vmatprep.mubr.bf16.mxu0 %v413
  %2344 = vmatmul.mubr.bf16.gmra.mrb[0].mxu0 %v412
  %v2345 = vpop.f32.mrb[0].mxu0
  %v2346 = vadd.f32 %v2305, %v2345
  %v2347 = vpop.f32.mrb[0].mxu0
  %v2348 = vadd.f32 %v2307, %v2347
  %v2349 = vpop.f32.mrb[0].mxu0
  %v2350 = vpop.f32.mrb[0].mxu0
  %2351 = vdwg.mxu0
  %2352 = vmatprep.subr.bf16.mxu0 %v1638
  %2353 = vmatpush1.bf16.msra.mxu0 %v1637
  %2354 = vmatprep.subr.bf16.mxu0 %v1640
  %2355 = vmatpush1.bf16.msra.mxu0 %v1639
  %2356 = vmatprep.subr.bf16.mxu0 %v1642
  %2357 = vmatpush1.bf16.msra.mxu0 %v1641
  %2358 = vmatprep.subr.bf16.mxu0 %v1644
  %2359 = vmatpush1.bf16.msra.mxu0 %v1643
  %2360 = vmatprep.subr.bf16.mxu0 %v1646
  %2361 = vmatpush1.bf16.msra.mxu0 %v1645
  %2362 = vmatprep.subr.bf16.mxu0 %v1648
  %2363 = vmatpush1.bf16.msra.mxu0 %v1647
  %2364 = vmatprep.subr.bf16.mxu0 %v1650
  %2365 = vmatpush1.bf16.msra.mxu0 %v1649
  %2366 = vmatprep.subr.bf16.mxu0 %v1652
  %2367 = vmatpush1.bf16.msra.mxu0 %v1651
  %2368 = vmatprep.subr.bf16.mxu0 %v1654
  %2369 = vmatpush1.bf16.msra.mxu0 %v1653
  %2370 = vmatprep.subr.bf16.mxu0 %v1656
  %2371 = vmatpush1.bf16.msra.mxu0 %v1655
  %2372 = vmatprep.subr.bf16.mxu0 %v1658
  %2373 = vmatpush1.bf16.msra.mxu0 %v1657
  %2374 = vmatprep.subr.bf16.mxu0 %v1660
  %2375 = vmatpush1.bf16.msra.mxu0 %v1659
  %2376 = vmatprep.subr.bf16.mxu0 %v1662
  %2377 = vmatpush1.bf16.msra.mxu0 %v1661
  %2378 = vmatprep.subr.bf16.mxu0 %v1664
  %2379 = vmatpush1.bf16.msra.mxu0 %v1663
  %2380 = vmatprep.subr.bf16.mxu0 %v1666
  %2381 = vmatpush1.bf16.msra.mxu0 %v1665
  %2382 = vmatprep.subr.bf16.mxu0 %v1668
  %2383 = vmatpush1.bf16.msra.mxu0 %v1667
  %2384 = vmatprep.mubr.bf16.mxu0 %v415
  %2385 = vmatmul.mubr.bf16.gmra.mrb[0].mxu0 %v414
  %v2386 = vpop.f32.mrb[0].mxu0
  %v2387 = vadd.f32 %v2346, %v2386
  %v2388 = vpop.f32.mrb[0].mxu0
  %v2389 = vadd.f32 %v2348, %v2388
  %v2390 = vpop.f32.mrb[0].mxu0
  %v2391 = vpop.f32.mrb[0].mxu0
  %2392 = vdwg.mxu0
  %2393 = vmatprep.subr.bf16.mxu0 %v1670
  %2394 = vmatpush1.bf16.msra.mxu0 %v1669
  %2395 = vmatprep.subr.bf16.mxu0 %v1672
  %2396 = vmatpush1.bf16.msra.mxu0 %v1671
  %2397 = vmatprep.subr.bf16.mxu0 %v1674
  %2398 = vmatpush1.bf16.msra.mxu0 %v1673
  %2399 = vmatprep.subr.bf16.mxu0 %v1676
  %2400 = vmatpush1.bf16.msra.mxu0 %v1675
  %2401 = vmatprep.subr.bf16.mxu0 %v1678
  %2402 = vmatpush1.bf16.msra.mxu0 %v1677
  %2403 = vmatprep.subr.bf16.mxu0 %v1680
  %2404 = vmatpush1.bf16.msra.mxu0 %v1679
  %2405 = vmatprep.subr.bf16.mxu0 %v1682
  %2406 = vmatpush1.bf16.msra.mxu0 %v1681
  %2407 = vmatprep.subr.bf16.mxu0 %v1684
  %2408 = vmatpush1.bf16.msra.mxu0 %v1683
  %2409 = vmatprep.subr.bf16.mxu0 %v1686
  %2410 = vmatpush1.bf16.msra.mxu0 %v1685
  %2411 = vmatprep.subr.bf16.mxu0 %v1688
  %2412 = vmatpush1.bf16.msra.mxu0 %v1687
  %2413 = vmatprep.subr.bf16.mxu0 %v1690
  %2414 = vmatpush1.bf16.msra.mxu0 %v1689
  %2415 = vmatprep.subr.bf16.mxu0 %v1692
  %2416 = vmatpush1.bf16.msra.mxu0 %v1691
  %2417 = vmatprep.subr.bf16.mxu0 %v1694
  %2418 = vmatpush1.bf16.msra.mxu0 %v1693
  %2419 = vmatprep.subr.bf16.mxu0 %v1696
  %2420 = vmatpush1.bf16.msra.mxu0 %v1695
  %2421 = vmatprep.subr.bf16.mxu0 %v1698
  %2422 = vmatpush1.bf16.msra.mxu0 %v1697
  %2423 = vmatprep.subr.bf16.mxu0 %v1700
  %2424 = vmatpush1.bf16.msra.mxu0 %v1699
  %2425 = vmatprep.mubr.bf16.mxu0 %v417
  %2426 = vmatmul.mubr.bf16.gmra.mrb[0].mxu0 %v416
  %v2427 = vpop.f32.mrb[0].mxu0
  %v2428 = vadd.f32 %v2387, %v2427
  %v2429 = vpop.f32.mrb[0].mxu0
  %v2430 = vadd.f32 %v2389, %v2429
  %v2431 = vpop.f32.mrb[0].mxu0
  %v2432 = vpop.f32.mrb[0].mxu0
  %2433 = vdwg.mxu0
  %2434 = vmatprep.subr.bf16.mxu0 %v1702
  %2435 = vmatpush1.bf16.msra.mxu0 %v1701
  %2436 = vmatprep.subr.bf16.mxu0 %v1704
  %2437 = vmatpush1.bf16.msra.mxu0 %v1703
  %2438 = vmatprep.subr.bf16.mxu0 %v1706
  %2439 = vmatpush1.bf16.msra.mxu0 %v1705
  %2440 = vmatprep.subr.bf16.mxu0 %v1708
  %2441 = vmatpush1.bf16.msra.mxu0 %v1707
  %2442 = vmatprep.subr.bf16.mxu0 %v1710
  %2443 = vmatpush1.bf16.msra.mxu0 %v1709
  %2444 = vmatprep.subr.bf16.mxu0 %v1712
  %2445 = vmatpush1.bf16.msra.mxu0 %v1711
  %2446 = vmatprep.subr.bf16.mxu0 %v1714
  %2447 = vmatpush1.bf16.msra.mxu0 %v1713
  %2448 = vmatprep.subr.bf16.mxu0 %v1716
  %2449 = vmatpush1.bf16.msra.mxu0 %v1715
  %2450 = vmatprep.subr.bf16.mxu0 %v1718
  %2451 = vmatpush1.bf16.msra.mxu0 %v1717
  %2452 = vmatprep.subr.bf16.mxu0 %v1720
  %2453 = vmatpush1.bf16.msra.mxu0 %v1719
  %2454 = vmatprep.subr.bf16.mxu0 %v1722
  %2455 = vmatpush1.bf16.msra.mxu0 %v1721
  %2456 = vmatprep.subr.bf16.mxu0 %v1724
  %2457 = vmatpush1.bf16.msra.mxu0 %v1723
  %2458 = vmatprep.subr.bf16.mxu0 %v1726
  %2459 = vmatpush1.bf16.msra.mxu0 %v1725
  %2460 = vmatprep.subr.bf16.mxu0 %v1728
  %2461 = vmatpush1.bf16.msra.mxu0 %v1727
  %2462 = vmatprep.subr.bf16.mxu0 %v1730
  %2463 = vmatpush1.bf16.msra.mxu0 %v1729
  %2464 = vmatprep.subr.bf16.mxu0 %v1732
  %2465 = vmatpush1.bf16.msra.mxu0 %v1731
  %2466 = vmatprep.mubr.bf16.mxu0 %v419
  %2467 = vmatmul.mubr.bf16.gmra.mrb[0].mxu0 %v418
  %v2468 = vpop.f32.mrb[0].mxu0
  %v2469 = vadd.f32 %v2428, %v2468
  %v2470 = vpop.f32.mrb[0].mxu0
  %v2471 = vadd.f32 %v2430, %v2470
  %v2472 = vpop.f32.mrb[0].mxu0
  %v2473 = vpop.f32.mrb[0].mxu0
  %2474 = vdwg.mxu0
  %2475 = vmatprep.subr.bf16.mxu0 %v1734
  %2476 = vmatpush1.bf16.msra.mxu0 %v1733
  %2477 = vmatprep.subr.bf16.mxu0 %v1736
  %2478 = vmatpush1.bf16.msra.mxu0 %v1735
  %2479 = vmatprep.subr.bf16.mxu0 0
  %2480 = vmatpush1.bf16.msra.mxu0 0
  %2481 = vmatprep.subr.bf16.mxu0 0
  %2482 = vmatpush1.bf16.msra.mxu0 0
  %2483 = vmatprep.subr.bf16.mxu0 0
  %2484 = vmatpush1.bf16.msra.mxu0 0
  %2485 = vmatprep.subr.bf16.mxu0 0
  %2486 = vmatpush1.bf16.msra.mxu0 0
  %2487 = vmatprep.subr.bf16.mxu0 0
  %2488 = vmatpush1.bf16.msra.mxu0 0
  %2489 = vmatprep.subr.bf16.mxu0 0
  %2490 = vmatpush1.bf16.msra.mxu0 0
  %2491 = vmatprep.subr.bf16.mxu0 0
  %2492 = vmatpush1.bf16.msra.mxu0 0
  %2493 = vmatprep.subr.bf16.mxu0 0
  %2494 = vmatpush1.bf16.msra.mxu0 0
  %2495 = vmatprep.subr.bf16.mxu0 0
  %2496 = vmatpush1.bf16.msra.mxu0 0
  %2497 = vmatprep.subr.bf16.mxu0 0
  %2498 = vmatpush1.bf16.msra.mxu0 0
  %2499 = vmatprep.subr.bf16.mxu0 0
  %2500 = vmatpush1.bf16.msra.mxu0 0
  %2501 = vmatprep.subr.bf16.mxu0 0
  %2502 = vmatpush1.bf16.msra.mxu0 0
  %2503 = vmatprep.subr.bf16.mxu0 0
  %2504 = vmatpush1.bf16.msra.mxu0 0
  %2505 = vmatprep.subr.bf16.mxu0 0
  %2506 = vmatpush1.bf16.msra.mxu0 0
  %2507 = vmatprep.mubr.bf16.mxu0 0
  %2508 = vmatmul.mubr.bf16.gmra.mrb[0].mxu0 %v2063
  %v2509 = vpop.f32.mrb[0].mxu0
  %v2510 = vadd.f32 %v2469, %v2509
  %v2511 = vpop.f32.mrb[0].mxu0
  %v2512 = vadd.f32 %v2471, %v2511
  %v2513 = vpop.f32.mrb[0].mxu0
  %v2514 = vpop.f32.mrb[0].mxu0
  %2515 = vdwg.mxu0
  %v2516 = vmax.f32 %v2510, 0.0
  %v2517 = vmax.f32 %v2512, 0.0
  %v2518 = vpack.c.bf16 %v2516, %v2516
  %v2519 = vpack.c.bf16 %v2517, %v2517
  %v2520 = vld [vmem:[%s3] sm:$0xf]
  %v2521 = vld [vmem:[%s3 + $0x4] sm:$0xf]
  %v2522 = vld [vmem:[%s3 + $0x8] sm:$0xf]
  %v2523 = vld [vmem:[%s3 + $0xc] sm:$0xf]
  %v2524 = vld [vmem:[%s3 + $0x10] sm:$0xf]
  %v2525 = vld [vmem:[%s3 + $0x14] sm:$0xf]
  %v2526 = vld [vmem:[%s3 + $0x18] sm:$0xf]
  %v2527 = vld [vmem:[%s3 + $0x1c] sm:$0xf]
  %v2528 = vld [vmem:[%s3 + $0x20] sm:$0xf]
  %v2529 = vld [vmem:[%s3 + $0x24] sm:$0xf]
  %v2530 = vld [vmem:[%s3 + $0x28] sm:$0xf]
  %v2531 = vld [vmem:[%s3 + $0x2c] sm:$0xf]
  %v2532 = vld [vmem:[%s3 + $0x30] sm:$0xf]
  %v2533 = vld [vmem:[%s3 + $0x34] sm:$0xf]
  %v2534 = vld [vmem:[%s3 + $0x38] sm:$0xf]
  %v2535 = vld [vmem:[%s3 + $0x3c] sm:$0xf]
  %v2536 = vld [vmem:[%s3 + $0x40] sm:$0xf]
  %v2537 = vld [vmem:[%s3 + $0x44] sm:$0xf]
  %v2538 = vld [vmem:[%s3 + $0x48] sm:$0xf]
  %v2539 = vld [vmem:[%s3 + $0x4c] sm:$0xf]
  %v2540 = vld [vmem:[%s3 + $0x50] sm:$0xf]
  %v2541 = vld [vmem:[%s3 + $0x54] sm:$0xf]
  %v2542 = vld [vmem:[%s3 + $0x58] sm:$0xf]
  %v2543 = vld [vmem:[%s3 + $0x5c] sm:$0xf]
  %v2544 = vld [vmem:[%s3 + $0x60] sm:$0xf]
  %v2545 = vld [vmem:[%s3 + $0x64] sm:$0xf]
  %v2546 = vld [vmem:[%s3 + $0x68] sm:$0xf]
  %v2547 = vld [vmem:[%s3 + $0x6c] sm:$0xf]
  %v2548 = vld [vmem:[%s3 + $0x70] sm:$0xf]
  %v2549 = vld [vmem:[%s3 + $0x74] sm:$0xf]
  %v2550 = vld [vmem:[%s3 + $0x78] sm:$0xf]
  %v2551 = vld [vmem:[%s3 + $0x7c] sm:$0xf]
  %v2552 = vld [vmem:[%s4] sm:$0x1]
  %v2554 = vlaneseq
  %v2555 = vshrl.u32 %v2554, 7
  %v2556 = vsub.s32 0, %v2555
  %v2557 = vrot.slane %v2552, %v2556
  %v2591 = vunpack.c.l.b16 %v2520
  %v2592 = vunpack.c.l.b16 %v2521
  %v2593 = vunpack.c.l.b16 %v2522
  %v2594 = vunpack.c.l.b16 %v2523
  %v2595 = vunpack.c.l.b16 %v2524
  %v2596 = vunpack.c.l.b16 %v2525
  %v2597 = vunpack.c.l.b16 %v2526
  %v2598 = vunpack.c.l.b16 %v2527
  %v2599 = vunpack.c.l.b16 %v2528
  %v2600 = vunpack.c.l.b16 %v2529
  %v2601 = vunpack.c.l.b16 %v2530
  %v2602 = vunpack.c.l.b16 %v2531
  %v2603 = vunpack.c.l.b16 %v2532
  %v2604 = vunpack.c.l.b16 %v2533
  %v2605 = vunpack.c.l.b16 %v2534
  %v2606 = vunpack.c.l.b16 %v2535
  %v2607 = vunpack.c.l.b16 %v2536
  %v2608 = vunpack.c.l.b16 %v2537
  %v2609 = vunpack.c.l.b16 %v2538
  %v2610 = vunpack.c.l.b16 %v2539
  %v2611 = vunpack.c.l.b16 %v2540
  %v2612 = vunpack.c.l.b16 %v2541
  %v2613 = vunpack.c.l.b16 %v2542
  %v2614 = vunpack.c.l.b16 %v2543
  %v2615 = vunpack.c.l.b16 %v2544
  %v2616 = vunpack.c.l.b16 %v2545
  %v2617 = vunpack.c.l.b16 %v2546
  %v2618 = vunpack.c.l.b16 %v2547
  %v2619 = vunpack.c.l.b16 %v2548
  %v2620 = vunpack.c.l.b16 %v2549
  %v2621 = vunpack.c.l.b16 %v2550
  %v2622 = vunpack.c.l.b16 %v2551
  %v2623 = vpack.c.b16 %v2592, %v2591
  %v2624 = vpack.c.b16 %v2594, %v2593
  %v2625 = vpack.c.b16 %v2596, %v2595
  %v2626 = vpack.c.b16 %v2598, %v2597
  %v2627 = vpack.c.b16 %v2600, %v2599
  %v2628 = vpack.c.b16 %v2602, %v2601
  %v2629 = vpack.c.b16 %v2604, %v2603
  %v2630 = vpack.c.b16 %v2606, %v2605
  %v2631 = vpack.c.b16 %v2608, %v2607
  %v2632 = vpack.c.b16 %v2610, %v2609
  %v2633 = vpack.c.b16 %v2612, %v2611
  %v2634 = vpack.c.b16 %v2614, %v2613
  %v2635 = vpack.c.b16 %v2616, %v2615
  %v2636 = vpack.c.b16 %v2618, %v2617
  %v2637 = vpack.c.b16 %v2620, %v2619
  %v2638 = vpack.c.b16 %v2622, %v2621
  %2655 = vmatprep.subr.bf16.mxu0 0
  %2656 = vmatpush1.bf16.msra.mxu0 %v2623
  %2657 = vmatprep.subr.bf16.mxu0 0
  %2658 = vmatpush1.bf16.msra.mxu0 %v2624
  %2659 = vmatprep.subr.bf16.mxu0 0
  %2660 = vmatpush1.bf16.msra.mxu0 %v2625
  %2661 = vmatprep.subr.bf16.mxu0 0
  %2662 = vmatpush1.bf16.msra.mxu0 %v2626
  %2663 = vmatprep.subr.bf16.mxu0 0
  %2664 = vmatpush1.bf16.msra.mxu0 %v2627
  %2665 = vmatprep.subr.bf16.mxu0 0
  %2666 = vmatpush1.bf16.msra.mxu0 %v2628
  %2667 = vmatprep.subr.bf16.mxu0 0
  %2668 = vmatpush1.bf16.msra.mxu0 %v2629
  %2669 = vmatprep.subr.bf16.mxu0 0
  %2670 = vmatpush1.bf16.msra.mxu0 %v2630
  %2671 = vmatprep.subr.bf16.mxu0 0
  %2672 = vmatpush1.bf16.msra.mxu0 %v2631
  %2673 = vmatprep.subr.bf16.mxu0 0
  %2674 = vmatpush1.bf16.msra.mxu0 %v2632
  %2675 = vmatprep.subr.bf16.mxu0 0
  %2676 = vmatpush1.bf16.msra.mxu0 %v2633
  %2677 = vmatprep.subr.bf16.mxu0 0
  %2678 = vmatpush1.bf16.msra.mxu0 %v2634
  %2679 = vmatprep.subr.bf16.mxu0 0
  %2680 = vmatpush1.bf16.msra.mxu0 %v2635
  %2681 = vmatprep.subr.bf16.mxu0 0
  %2682 = vmatpush1.bf16.msra.mxu0 %v2636
  %2683 = vmatprep.subr.bf16.mxu0 0
  %2684 = vmatpush1.bf16.msra.mxu0 %v2637
  %2685 = vmatprep.subr.bf16.mxu0 0
  %2686 = vmatpush1.bf16.msra.mxu0 %v2638
  %2687 = vmatprep.mubr.bf16.mxu0 %v2519
  %2688 = vmatmul.mubr.bf16.gmra.mrb[0].mxu0 %v2518
  %v2689 = vpop.f32.mrb[0].mxu0
  %v2690 = vadd.f32 %v2557, %v2689
  %v2691 = vpop.f32.mrb[0].mxu0
  %v2692 = vpop.f32.mrb[0].mxu0
  %v2693 = vpop.f32.mrb[0].mxu0
  %2694 = vdwg.mxu0
  %2695 = vst [vmem:[%s5] sm:$0xff] %v2690
  // Predicated region
  $region22: #{dqn_forward.5} parent=0 // pred_check
    _
  $region23: #{dqn_forward.5} parent=0 // pred_check_branch
    %2697 = sbr.rel (0) target = $region25
  $region24: #{dqn_forward.5} parent=0 // pred_region
    _
  $region25: #{dqn_forward.5} parent=0 // pred_fallthru
    _
  // Predicated region
  $region26: #{dqn_forward.5} parent=0 // pred_check
    _
  $region27: #{dqn_forward.5} parent=0 // pred_check_branch
    %2699 = sbr.rel (0) target = $region29
  $region28: #{dqn_forward.5} parent=0 // pred_region
    _
  $region29: #{dqn_forward.5} parent=0 // pred_fallthru
    _

</llo_original>
